<compile_context>
chip_gen: v7x
topology: tpu7x:2x2x1
jax: 0.10.0
libtpu: 0.0.40
codegen_flags: <defaults>
</compile_context>

<pallas_src>
import functools

import jax
import jax.numpy as jnp
from jax.experimental import pallas as pl
from jax.experimental.pallas import tpu as pltpu

IN_FEATURES = 400 * 4  # 1600
H1, H2, H3 = 512, 256, 64


def _round_up(v, m):
    return (v + m - 1) // m * m


def _fc_kernel(x_ref, w1_ref, b1_ref, w2_ref, b2_ref, w3_ref, b3_ref,
               w4_ref, b4_ref, o_ref):
    """Fused 4-layer MLP: f32 tile in, bf16 operands into the MXU, f32 accumulate/output."""
    # x arrives f32 (no separate HBM cast pass); cast to bf16 in-register for the MXU.
    x = x_ref[...].astype(jnp.bfloat16)  # (TB, 1600)

    h = jnp.dot(x, w1_ref[...], preferred_element_type=jnp.float32) + b1_ref[...]
    h = jnp.maximum(h, 0.0).astype(jnp.bfloat16)

    h = jnp.dot(h, w2_ref[...], preferred_element_type=jnp.float32) + b2_ref[...]
    h = jnp.maximum(h, 0.0).astype(jnp.bfloat16)

    h = jnp.dot(h, w3_ref[...], preferred_element_type=jnp.float32) + b3_ref[...]
    h = jnp.maximum(h, 0.0).astype(jnp.bfloat16)

    out = jnp.dot(h, w4_ref[...], preferred_element_type=jnp.float32) + b4_ref[...]
    o_ref[...] = out  # f32, lane-dense 128-wide tile


def prepare_params(params, n_logits):
    """One-time (outside jit) weight prep: transpose to (in,out), bf16, pad head to 128 lanes."""
    (w1, b1), (w2, b2), (w3, b3), (w4, b4) = params
    out_pad = _round_up(n_logits, 128)

    w4t = jnp.zeros((H3, out_pad), jnp.float32).at[:, :n_logits].set(w4.T)
    b4p = jnp.zeros((out_pad,), jnp.float32).at[:n_logits].set(b4)

    return (
        w1.T.astype(jnp.bfloat16), b1[None, :].astype(jnp.float32),
        w2.T.astype(jnp.bfloat16), b2[None, :].astype(jnp.float32),
        w3.T.astype(jnp.bfloat16), b3[None, :].astype(jnp.float32),
        w4t.astype(jnp.bfloat16), b4p[None, :].astype(jnp.float32),
    )


def _pick_batch_tile(b):
    """Batch tile: multiple of 16 (bf16 sublane packing), >=2 grid tiles when the batch
    allows (so both v7x TensorCores get work), capped at 512 to amortize per-step
    pipeline overhead while keeping the double-buffered f32 x tile small in VMEM."""
    b16 = _round_up(max(b, 1), 16)
    return min(512, _round_up(-(-b16 // 2), 16))


@functools.partial(jax.jit, static_argnames=("n_logits",))
def three_layer_fc_forward(x_nchw, prepped_params, n_logits):
    """Forward pass. x_nchw: (B, C, H, W) with C*H*W == 1600. prepped_params from prepare_params."""
    b = x_nchw.shape[0]
    x = x_nchw.reshape(b, -1)  # torch.flatten(x, 1); stays f32 — bf16 cast happens in-kernel
    assert x.shape[1] == IN_FEATURES, x.shape

    w1t, b1r, w2t, b2r, w3t, b3r, w4t, b4r = prepped_params
    out_pad = w4t.shape[1]

    tb = _pick_batch_tile(b)
    b_pad = _round_up(b, tb)
    if b_pad != b:
        # Only remainder rows are padded (no full-array pass in the common divisible case).
        x = jnp.pad(x, ((0, b_pad - b), (0, 0)))

    grid = (b_pad // tb,)

    # Weights/biases: constant index_map -> VMEM-resident across the grid;
    # Buffered(1) drops the useless second pipeline buffer (VMEM headroom on v7x).
    def resident(shape):
        return pl.BlockSpec(shape, lambda i: (0,) * len(shape),
                            pipeline_mode=pl.Buffered(1))

    out = pl.pallas_call(
        _fc_kernel,
        out_shape=jax.ShapeDtypeStruct((b_pad, out_pad), jnp.float32),
        grid=grid,
        in_specs=[
            pl.BlockSpec((tb, IN_FEATURES), lambda i: (i, 0)),   # x: f32, tiled over batch
            resident(w1t.shape), resident(b1r.shape),
            resident(w2t.shape), resident(b2r.shape),
            resident(w3t.shape), resident(b3r.shape),
            resident(w4t.shape), resident(b4r.shape),
        ],
        out_specs=pl.BlockSpec((tb, out_pad), lambda i: (i, 0)),
        compiler_params=pltpu.CompilerParams(
            dimension_semantics=("parallel",),
            vmem_limit_bytes=32 << 20,
        ),
    )(x, w1t, b1r, w2t, b2r, w3t, b3r, w4t, b4r)

    return out[:b, :n_logits]


def init_params(key, n_logits):
    """Deterministic init mimicking nn.Linear default (uniform(-1/sqrt(fan_in), 1/sqrt(fan_in)))."""
    dims = [(IN_FEATURES, H1), (H1, H2), (H2, H3), (H3, n_logits)]
    params = []
    for fan_in, fan_out in dims:
        key, kw, kb = jax.random.split(key, 3)
        bound = 1.0 / (fan_in ** 0.5)
        w = jax.random.uniform(kw, (fan_out, fan_in), jnp.float32, -bound, bound)
        bvec = jax.random.uniform(kb, (fan_out,), jnp.float32, -bound, bound)
        params.append((w, bvec))
    return params


def reference_forward(x_nchw, params):
    """Plain-JAX f32 reference for sanity checking."""
    x = x_nchw.reshape(x_nchw.shape[0], -1)
    (w1, b1), (w2, b2), (w3, b3), (w4, b4) = params
    h = jnp.maximum(x @ w1.T + b1, 0.0)
    h = jnp.maximum(h @ w2.T + b2, 0.0)
    h = jnp.maximum(h @ w3.T + b3, 0.0)
    return h @ w4.T + b4


if __name__ == "__main__":
    n_logits = 10
    key = jax.random.PRNGKey(0)
    key, kx = jax.random.split(key)

    # B=2, C=4, H=W=20  ->  flattened feature dim = 4*20*20 = 1600 = 400*4
    x = jax.random.normal(kx, (2, 4, 20, 20), dtype=jnp.float32)
    params = init_params(key, n_logits)
    prepped = prepare_params(params, n_logits)

    out = three_layer_fc_forward(x, prepped, n_logits)
    out = jax.block_until_ready(out)

    ref = reference_forward(x, params)
    assert out.shape == (2, n_logits), out.shape
    # bf16 weights/activations vs f32 reference -> loosened tolerance (documented bf16 contract).
    assert jnp.allclose(out, ref, atol=2e-2, rtol=2e-2), float(jnp.max(jnp.abs(out - ref)))

    print("KERNEL_OK")
</pallas_src>

<mosaic_0001>
module attributes {stable_mosaic.version = 11 : i64} {
  func.func @_fc_kernel(%arg0: i32, %arg1: memref<16x1600xf32, #tpu.memory_space<vmem>>, %arg2: memref<1600x512xbf16, #tpu.memory_space<vmem>>, %arg3: memref<1x512xf32, #tpu.memory_space<vmem>>, %arg4: memref<512x256xbf16, #tpu.memory_space<vmem>>, %arg5: memref<1x256xf32, #tpu.memory_space<vmem>>, %arg6: memref<256x64xbf16, #tpu.memory_space<vmem>>, %arg7: memref<1x64xf32, #tpu.memory_space<vmem>>, %arg8: memref<64x128xbf16, #tpu.memory_space<vmem>>, %arg9: memref<1x128xf32, #tpu.memory_space<vmem>>, %arg10: memref<16x128xf32, #tpu.memory_space<vmem>>) attributes {dimension_semantics = [#tpu.dimension_semantics<parallel>], iteration_bounds = array<i64: 1>, scalar_prefetch = 0 : i64, scratch_operands = 0 : i64, tpu.core_type = #tpu.core_type<tc>, window_params = [{transform_indices = @transform_0, window_bounds = array<i64: 16, 1600>}, {pipeline_mode = #tpu.pipeline_mode<synchronous>, transform_indices = @transform_1, window_bounds = array<i64: 1600, 512>}, {pipeline_mode = #tpu.pipeline_mode<synchronous>, transform_indices = @transform_2, window_bounds = array<i64: 1, 512>}, {pipeline_mode = #tpu.pipeline_mode<synchronous>, transform_indices = @transform_3, window_bounds = array<i64: 512, 256>}, {pipeline_mode = #tpu.pipeline_mode<synchronous>, transform_indices = @transform_4, window_bounds = array<i64: 1, 256>}, {pipeline_mode = #tpu.pipeline_mode<synchronous>, transform_indices = @transform_5, window_bounds = array<i64: 256, 64>}, {pipeline_mode = #tpu.pipeline_mode<synchronous>, transform_indices = @transform_6, window_bounds = array<i64: 1, 64>}, {pipeline_mode = #tpu.pipeline_mode<synchronous>, transform_indices = @transform_7, window_bounds = array<i64: 64, 128>}, {pipeline_mode = #tpu.pipeline_mode<synchronous>, transform_indices = @transform_8, window_bounds = array<i64: 1, 128>}, {transform_indices = @transform_9, window_bounds = array<i64: 16, 128>}]} {
    %c0 = arith.constant 0 : index
    %c0_0 = arith.constant 0 : index
    %0 = vector.load %arg1[%c0, %c0_0] : memref<16x1600xf32, #tpu.memory_space<vmem>>, vector<16x1600xf32>
    %1 = arith.truncf %0 : vector<16x1600xf32> to vector<16x1600xbf16>
    %c0_1 = arith.constant 0 : index
    %c0_2 = arith.constant 0 : index
    %2 = vector.load %arg2[%c0_1, %c0_2] : memref<1600x512xbf16, #tpu.memory_space<vmem>>, vector<1600x512xbf16>
    %cst = arith.constant dense<0.000000e+00> : vector<16x512xf32>
    %3 = tpu.matmul %1, %2, %cst {dimension_numbers = #tpu.dot_dimension_numbers<[1], [0], [0], [1], [0, 0, 1, 1], [], []>} : vector<16x1600xbf16>, vector<1600x512xbf16>, vector<16x512xf32> -> vector<16x512xf32>
    %c0_3 = arith.constant 0 : index
    %c0_4 = arith.constant 0 : index
    %4 = vector.load %arg3[%c0_3, %c0_4] : memref<1x512xf32, #tpu.memory_space<vmem>>, vector<1x512xf32>
    %5 = vector.broadcast %4 : vector<1x512xf32> to vector<16x512xf32>
    %6 = arith.addf %3, %5 : vector<16x512xf32>
    %cst_5 = arith.constant 0.000000e+00 : f32
    %7 = vector.broadcast %cst_5 : f32 to vector<16x512xf32>
    %8 = arith.maximumf %6, %7 : vector<16x512xf32>
    %9 = arith.truncf %8 : vector<16x512xf32> to vector<16x512xbf16>
    %c0_6 = arith.constant 0 : index
    %c0_7 = arith.constant 0 : index
    %10 = vector.load %arg4[%c0_6, %c0_7] : memref<512x256xbf16, #tpu.memory_space<vmem>>, vector<512x256xbf16>
    %cst_8 = arith.constant dense<0.000000e+00> : vector<16x256xf32>
    %11 = tpu.matmul %9, %10, %cst_8 {dimension_numbers = #tpu.dot_dimension_numbers<[1], [0], [0], [1], [0, 0, 1, 1], [], []>} : vector<16x512xbf16>, vector<512x256xbf16>, vector<16x256xf32> -> vector<16x256xf32>
    %c0_9 = arith.constant 0 : index
    %c0_10 = arith.constant 0 : index
    %12 = vector.load %arg5[%c0_9, %c0_10] : memref<1x256xf32, #tpu.memory_space<vmem>>, vector<1x256xf32>
    %13 = vector.broadcast %12 : vector<1x256xf32> to vector<16x256xf32>
    %14 = arith.addf %11, %13 : vector<16x256xf32>
    %cst_11 = arith.constant 0.000000e+00 : f32
    %15 = vector.broadcast %cst_11 : f32 to vector<16x256xf32>
    %16 = arith.maximumf %14, %15 : vector<16x256xf32>
    %17 = arith.truncf %16 : vector<16x256xf32> to vector<16x256xbf16>
    %c0_12 = arith.constant 0 : index
    %c0_13 = arith.constant 0 : index
    %18 = vector.load %arg6[%c0_12, %c0_13] : memref<256x64xbf16, #tpu.memory_space<vmem>>, vector<256x64xbf16>
    %cst_14 = arith.constant dense<0.000000e+00> : vector<16x64xf32>
    %19 = tpu.matmul %17, %18, %cst_14 {dimension_numbers = #tpu.dot_dimension_numbers<[1], [0], [0], [1], [0, 0, 1, 1], [], []>} : vector<16x256xbf16>, vector<256x64xbf16>, vector<16x64xf32> -> vector<16x64xf32>
    %c0_15 = arith.constant 0 : index
    %c0_16 = arith.constant 0 : index
    %20 = vector.load %arg7[%c0_15, %c0_16] : memref<1x64xf32, #tpu.memory_space<vmem>>, vector<1x64xf32>
    %21 = vector.broadcast %20 : vector<1x64xf32> to vector<16x64xf32>
    %22 = arith.addf %19, %21 : vector<16x64xf32>
    %cst_17 = arith.constant 0.000000e+00 : f32
    %23 = vector.broadcast %cst_17 : f32 to vector<16x64xf32>
    %24 = arith.maximumf %22, %23 : vector<16x64xf32>
    %25 = arith.truncf %24 : vector<16x64xf32> to vector<16x64xbf16>
    %c0_18 = arith.constant 0 : index
    %c0_19 = arith.constant 0 : index
    %26 = vector.load %arg8[%c0_18, %c0_19] : memref<64x128xbf16, #tpu.memory_space<vmem>>, vector<64x128xbf16>
    %cst_20 = arith.constant dense<0.000000e+00> : vector<16x128xf32>
    %27 = tpu.matmul %25, %26, %cst_20 {dimension_numbers = #tpu.dot_dimension_numbers<[1], [0], [0], [1], [0, 0, 1, 1], [], []>} : vector<16x64xbf16>, vector<64x128xbf16>, vector<16x128xf32> -> vector<16x128xf32>
    %c0_21 = arith.constant 0 : index
    %c0_22 = arith.constant 0 : index
    %28 = vector.load %arg9[%c0_21, %c0_22] : memref<1x128xf32, #tpu.memory_space<vmem>>, vector<1x128xf32>
    %29 = vector.broadcast %28 : vector<1x128xf32> to vector<16x128xf32>
    %30 = arith.addf %27, %29 : vector<16x128xf32>
    %c0_23 = arith.constant 0 : index
    %c0_24 = arith.constant 0 : index
    %31 = vector.load %arg10[%c0_23, %c0_24] : memref<16x128xf32, #tpu.memory_space<vmem>>, vector<16x128xf32>
    tpu.vector_store %arg10[%c0_23, %c0_24], %30 {strides = array<i32>} : memref<16x128xf32, #tpu.memory_space<vmem>>, vector<16x128xf32>,
    return
  }
  func.func @transform_0(%arg0: i32) -> (i32, i32) {
    %c0_i32 = arith.constant 0 : i32
    %c0_i32_0 = arith.constant 0 : i32
    return %arg0, %c0_i32 : i32, i32
  }
  func.func @transform_1(%arg0: i32) -> (i32, i32) {
    %c0_i32 = arith.constant 0 : i32
    %c0_i32_0 = arith.constant 0 : i32
    %c0_i32_1 = arith.constant 0 : i32
    return %c0_i32, %c0_i32_0 : i32, i32
  }
  func.func @transform_2(%arg0: i32) -> (i32, i32) {
    %c0_i32 = arith.constant 0 : i32
    %c0_i32_0 = arith.constant 0 : i32
    %c0_i32_1 = arith.constant 0 : i32
    return %c0_i32, %c0_i32_0 : i32, i32
  }
  func.func @transform_3(%arg0: i32) -> (i32, i32) {
    %c0_i32 = arith.constant 0 : i32
    %c0_i32_0 = arith.constant 0 : i32
    %c0_i32_1 = arith.constant 0 : i32
    return %c0_i32, %c0_i32_0 : i32, i32
  }
  func.func @transform_4(%arg0: i32) -> (i32, i32) {
    %c0_i32 = arith.constant 0 : i32
    %c0_i32_0 = arith.constant 0 : i32
    %c0_i32_1 = arith.constant 0 : i32
    return %c0_i32, %c0_i32_0 : i32, i32
  }
  func.func @transform_5(%arg0: i32) -> (i32, i32) {
    %c0_i32 = arith.constant 0 : i32
    %c0_i32_0 = arith.constant 0 : i32
    %c0_i32_1 = arith.constant 0 : i32
    return %c0_i32, %c0_i32_0 : i32, i32
  }
  func.func @transform_6(%arg0: i32) -> (i32, i32) {
    %c0_i32 = arith.constant 0 : i32
    %c0_i32_0 = arith.constant 0 : i32
    %c0_i32_1 = arith.constant 0 : i32
    return %c0_i32, %c0_i32_0 : i32, i32
  }
  func.func @transform_7(%arg0: i32) -> (i32, i32) {
    %c0_i32 = arith.constant 0 : i32
    %c0_i32_0 = arith.constant 0 : i32
    %c0_i32_1 = arith.constant 0 : i32
    return %c0_i32, %c0_i32_0 : i32, i32
  }
  func.func @transform_8(%arg0: i32) -> (i32, i32) {
    %c0_i32 = arith.constant 0 : i32
    %c0_i32_0 = arith.constant 0 : i32
    %c0_i32_1 = arith.constant 0 : i32
    return %c0_i32, %c0_i32_0 : i32, i32
  }
  func.func @transform_9(%arg0: i32) -> (i32, i32) {
    %c0_i32 = arith.constant 0 : i32
    %c0_i32_0 = arith.constant 0 : i32
    return %arg0, %c0_i32 : i32, i32
  }
}

</mosaic_0001>

<llo_original>
// kernel: three_layer_fc_forward.1
$region0: #{three_layer_fc_forward.1}
  #allocation0 [shape = 'u32[]', space=smem, size = 0x4, offset = 0x4, fixed_abs, tag = 'smem constant byte address 0x4 - core index']
  #allocation1 [shape = 'u32[144,128]{1,0:T(1,128)}', space=vmem, size = 0x12000, scoped, tag = 'internal scratch']
  %s0 = inlined_call_operand.vmem [shape: f32[16,1600], index: 0, kind: input, shape index: {}]
  %s1 = inlined_call_operand.hbm [shape: bf16[1600,512], index: 1, kind: input, shape index: {}]
  %s2 = inlined_call_operand.hbm [shape: f32[1,512], index: 2, kind: input, shape index: {}]
  %s3 = inlined_call_operand.hbm [shape: bf16[512,256], index: 3, kind: input, shape index: {}]
  %s4 = inlined_call_operand.hbm [shape: f32[1,256], index: 4, kind: input, shape index: {}]
  %s5 = inlined_call_operand.vmem [shape: bf16[256,64], index: 5, kind: input, shape index: {}]
  %s6 = inlined_call_operand.hbm [shape: f32[1,64], index: 6, kind: input, shape index: {}]
  %s7 = inlined_call_operand.hbm [shape: bf16[64,128], index: 7, kind: input, shape index: {}]
  %s8 = inlined_call_operand.hbm [shape: f32[1,128], index: 8, kind: input, shape index: {}]
  %s9 = inlined_call_operand.vmem [shape: f32[16,128], index: 9, kind: output, shape index: {}]
  %s10 = sld [smem:[#allocation0]]
  $region74: #{three_layer_fc_forward.1} parent=0
    _
  %s12 = ssub.s32 1, %s10
  %s13 = scalar_select 0, %s12, %s10
  $region1: #{three_layer_fc_forward.1} parent=0
    #allocation2 [shape = 'u8[1638400]{0}', space=vmem, size = 0x190000, scoped, tag = 'input window, operand 1, single buffered']
    #allocation3 [shape = 's32[1]{0}', space=sflag, size = 0x4, scoped, tag = 'scoped memory for three_layer_fc_forward.1']
    #allocation4 [shape = 'u8[2048]{0}', space=vmem, size = 0x800, scoped, tag = 'input window, operand 2, single buffered']
    #allocation5 [shape = 's32[1]{0}', space=sflag, size = 0x4, scoped, tag = 'scoped memory for three_layer_fc_forward.1']
    #allocation6 [shape = 'u8[262144]{0}', space=vmem, size = 0x40000, scoped, tag = 'input window, operand 3, single buffered']
    #allocation7 [shape = 'u8[1024]{0}', space=vmem, size = 0x400, scoped, tag = 'input window, operand 4, single buffered']
    #allocation8 [shape = 's32[1]{0}', space=sflag, size = 0x4, scoped, tag = 'scoped memory for three_layer_fc_forward.1']
    #allocation9 [shape = 'u8[512]{0}', space=vmem, size = 0x400, scoped, tag = 'input window, operand 6, single buffered']
    #allocation10 [shape = 'u8[16384]{0}', space=vmem, size = 0x4000, scoped, tag = 'input window, operand 7, single buffered']
    #allocation11 [shape = 's32[1]{0}', space=sflag, size = 0x4, scoped, tag = 'scoped memory for three_layer_fc_forward.1']
    #allocation12 [shape = 'u8[512]{0}', space=vmem, size = 0x400, scoped, tag = 'input window, operand 8, single buffered']
    %14 = vsyncpa [#allocation3], 0
    %15 = vsyncpa [#allocation5], 0
    %16 = vsyncpa [#allocation8], 0
    %17 = vsyncpa [#allocation11], 0
    // Predicated region
    $region2: #{three_layer_fc_forward.1} parent=1 // pred_check
      _
    $region3: #{three_layer_fc_forward.1} parent=1 // pred_check_branch
      %19 = sbr.rel (0) target = $region5
    $region4: #{three_layer_fc_forward.1} parent=1 // pred_region
      _
    $region5: #{three_layer_fc_forward.1} parent=1 // pred_fallthru
      _
    // Predicated region
    $region6: #{three_layer_fc_forward.1} parent=1 // pred_check
      _
    $region7: #{three_layer_fc_forward.1} parent=1 // pred_check_branch
      %21 = sbr.rel (0) target = $region9
    $region8: #{three_layer_fc_forward.1} parent=1 // pred_region
      %s23 = ssub.s32 51200, 51200
      %24 = vsyncadd [#allocation3], %s23
      %s25 = sshll.u32 [#allocation2], 4
      %s26 = int_to_ptr.vmem [resolvable:$true] %s25
      %31 = dma.hbm_to_vmem [thread:$0]  %s1, 51200, %s26, [#allocation3], 256, 256, 16
    $region9: #{three_layer_fc_forward.1} parent=1 // pred_fallthru
      _
    // Predicated region
    $region10: #{three_layer_fc_forward.1} parent=1 // pred_check
      _
    $region11: #{three_layer_fc_forward.1} parent=1 // pred_check_branch
      %33 = sbr.rel (0) target = $region13
    $region12: #{three_layer_fc_forward.1} parent=1 // pred_region
      %s35 = ssub.s32 64, 64
      %36 = vsyncadd [#allocation5], %s35
      %s38 = sshll.u32 [#allocation4], 4
      %s39 = int_to_ptr.vmem [resolvable:$true] %s38
      %41 = dma.hbm_to_vmem [thread:$0]  %s2, 64, %s39, [#allocation5]
    $region13: #{three_layer_fc_forward.1} parent=1 // pred_fallthru
      _
    // Predicated region
    $region14: #{three_layer_fc_forward.1} parent=1 // pred_check
      _
    $region15: #{three_layer_fc_forward.1} parent=1 // pred_check_branch
      %43 = sbr.rel (0) target = $region17
    $region16: #{three_layer_fc_forward.1} parent=1 // pred_region
      %s45 = ssub.s32 8192, 8192
      %46 = vsyncadd [#allocation5], %s45
      %s47 = sshll.u32 [#allocation6], 4
      %s48 = int_to_ptr.vmem [resolvable:$true] %s47
      %53 = dma.hbm_to_vmem [thread:$0]  %s3, 8192, %s48, [#allocation5], 128, 128, 8
    $region17: #{three_layer_fc_forward.1} parent=1 // pred_fallthru
      _
    // Predicated region
    $region18: #{three_layer_fc_forward.1} parent=1 // pred_check
      _
    $region19: #{three_layer_fc_forward.1} parent=1 // pred_check_branch
      %55 = sbr.rel (0) target = $region21
    $region20: #{three_layer_fc_forward.1} parent=1 // pred_region
      %s57 = ssub.s32 32, 32
      %58 = vsyncadd [#allocation8], %s57
      %s60 = sshll.u32 [#allocation7], 4
      %s61 = int_to_ptr.vmem [resolvable:$true] %s60
      %63 = dma.hbm_to_vmem [thread:$0]  %s4, 32, %s61, [#allocation8]
    $region21: #{three_layer_fc_forward.1} parent=1 // pred_fallthru
      _
    // Predicated region
    $region22: #{three_layer_fc_forward.1} parent=1 // pred_check
      _
    $region23: #{three_layer_fc_forward.1} parent=1 // pred_check_branch
      %65 = sbr.rel (0) target = $region25
    $region24: #{three_layer_fc_forward.1} parent=1 // pred_region
      _
    $region25: #{three_layer_fc_forward.1} parent=1 // pred_fallthru
      _
    // Predicated region
    $region26: #{three_layer_fc_forward.1} parent=1 // pred_check
      _
    $region27: #{three_layer_fc_forward.1} parent=1 // pred_check_branch
      %67 = sbr.rel (0) target = $region29
    $region28: #{three_layer_fc_forward.1} parent=1 // pred_region
      %s69 = ssub.s32 16, 16
      %70 = vsyncadd [#allocation8], %s69
      %s72 = sshll.u32 [#allocation9], 4
      %s73 = int_to_ptr.vmem [resolvable:$true] %s72
      %75 = dma.hbm_to_vmem [thread:$0]  %s6, 16, %s73, [#allocation8]
    $region29: #{three_layer_fc_forward.1} parent=1 // pred_fallthru
      _
    // Predicated region
    $region30: #{three_layer_fc_forward.1} parent=1 // pred_check
      _
    $region31: #{three_layer_fc_forward.1} parent=1 // pred_check_branch
      %77 = sbr.rel (0) target = $region33
    $region32: #{three_layer_fc_forward.1} parent=1 // pred_region
      %s79 = ssub.s32 512, 512
      %80 = vsyncadd [#allocation11], %s79
      %s81 = sshll.u32 [#allocation10], 4
      %s82 = int_to_ptr.vmem [resolvable:$true] %s81
      %87 = dma.hbm_to_vmem [thread:$0]  %s7, 512, %s82, [#allocation11], 64, 64, 4
    $region33: #{three_layer_fc_forward.1} parent=1 // pred_fallthru
      _
    // Predicated region
    $region34: #{three_layer_fc_forward.1} parent=1 // pred_check
      _
    $region35: #{three_layer_fc_forward.1} parent=1 // pred_check_branch
      %89 = sbr.rel (0) target = $region37
    $region36: #{three_layer_fc_forward.1} parent=1 // pred_region
      %s91 = ssub.s32 16, 16
      %92 = vsyncadd [#allocation11], %s91
      %s94 = sshll.u32 [#allocation12], 4
      %s95 = int_to_ptr.vmem [resolvable:$true] %s94
      %97 = dma.hbm_to_vmem [thread:$0]  %s8, 16, %s95, [#allocation11]
    $region37: #{three_layer_fc_forward.1} parent=1 // pred_fallthru
      _
    // Predicated region
    $region38: #{three_layer_fc_forward.1} parent=1 // pred_check
      _
    $region39: #{three_layer_fc_forward.1} parent=1 // pred_check_branch
      %99 = sbr.rel (0) target = $region41
    $region40: #{three_layer_fc_forward.1} parent=1 // pred_region
      %100 = dma.done [#allocation3], 51200
    $region41: #{three_layer_fc_forward.1} parent=1 // pred_fallthru
      _
    // Predicated region
    $region42: #{three_layer_fc_forward.1} parent=1 // pred_check
      _
    $region43: #{three_layer_fc_forward.1} parent=1 // pred_check_branch
      %102 = sbr.rel (0) target = $region45
    $region44: #{three_layer_fc_forward.1} parent=1 // pred_region
      %103 = dma.done [#allocation5], 64
    $region45: #{three_layer_fc_forward.1} parent=1 // pred_fallthru
      _
    // Predicated region
    $region46: #{three_layer_fc_forward.1} parent=1 // pred_check
      _
    $region47: #{three_layer_fc_forward.1} parent=1 // pred_check_branch
      %105 = sbr.rel (0) target = $region49
    $region48: #{three_layer_fc_forward.1} parent=1 // pred_region
      %106 = dma.done [#allocation5], 8192
    $region49: #{three_layer_fc_forward.1} parent=1 // pred_fallthru
      _
    // Predicated region
    $region50: #{three_layer_fc_forward.1} parent=1 // pred_check
      _
    $region51: #{three_layer_fc_forward.1} parent=1 // pred_check_branch
      %108 = sbr.rel (0) target = $region53
    $region52: #{three_layer_fc_forward.1} parent=1 // pred_region
      %109 = dma.done [#allocation8], 32
    $region53: #{three_layer_fc_forward.1} parent=1 // pred_fallthru
      _
    // Predicated region
    $region54: #{three_layer_fc_forward.1} parent=1 // pred_check
      _
    $region55: #{three_layer_fc_forward.1} parent=1 // pred_check_branch
      %111 = sbr.rel (0) target = $region57
    $region56: #{three_layer_fc_forward.1} parent=1 // pred_region
      %112 = dma.done [#allocation8], 16
    $region57: #{three_layer_fc_forward.1} parent=1 // pred_fallthru
      _
    // Predicated region
    $region58: #{three_layer_fc_forward.1} parent=1 // pred_check
      _
    $region59: #{three_layer_fc_forward.1} parent=1 // pred_check_branch
      %114 = sbr.rel (0) target = $region61
    $region60: #{three_layer_fc_forward.1} parent=1 // pred_region
      %115 = dma.done [#allocation11], 512
    $region61: #{three_layer_fc_forward.1} parent=1 // pred_fallthru
      _
    // Predicated region
    $region62: #{three_layer_fc_forward.1} parent=1 // pred_check
      _
    $region63: #{three_layer_fc_forward.1} parent=1 // pred_check_branch
      %117 = sbr.rel (0) target = $region65
    $region64: #{three_layer_fc_forward.1} parent=1 // pred_region
      %118 = dma.done [#allocation11], 16
    $region65: #{three_layer_fc_forward.1} parent=1 // pred_fallthru
      _
    %v120 = vld [vmem:[%s0] sm:$0xff]
    %v121 = vld [vmem:[%s0 + $0x8] sm:$0xff]
    %v122 = vld [vmem:[%s0 + $0x10] sm:$0xff]
    %v123 = vld [vmem:[%s0 + $0x18] sm:$0xff]
    %v124 = vld [vmem:[%s0 + $0x20] sm:$0xff]
    %v125 = vld [vmem:[%s0 + $0x28] sm:$0xff]
    %v126 = vld [vmem:[%s0 + $0x30] sm:$0xff]
    %v127 = vld [vmem:[%s0 + $0x38] sm:$0xff]
    %v128 = vld [vmem:[%s0 + $0x40] sm:$0xff]
    %v129 = vld [vmem:[%s0 + $0x48] sm:$0xff]
    %v130 = vld [vmem:[%s0 + $0x50] sm:$0xff]
    %v131 = vld [vmem:[%s0 + $0x58] sm:$0xff]
    %v132 = vld [vmem:[%s0 + $0x60] sm:$0xff]
    %v133 = vld [vmem:[%s0 + $0x68] sm:$0xff]
    %v134 = vld [vmem:[%s0 + $0x70] sm:$0xff]
    %v135 = vld [vmem:[%s0 + $0x78] sm:$0xff]
    %v136 = vld [vmem:[%s0 + $0x80] sm:$0xff]
    %v137 = vld [vmem:[%s0 + $0x88] sm:$0xff]
    %v138 = vld [vmem:[%s0 + $0x90] sm:$0xff]
    %v139 = vld [vmem:[%s0 + $0x98] sm:$0xff]
    %v140 = vld [vmem:[%s0 + $0xa0] sm:$0xff]
    %v141 = vld [vmem:[%s0 + $0xa8] sm:$0xff]
    %v142 = vld [vmem:[%s0 + $0xb0] sm:$0xff]
    %v143 = vld [vmem:[%s0 + $0xb8] sm:$0xff]
    %v144 = vld [vmem:[%s0 + $0xc0] sm:$0xff]
    %v145 = vld [vmem:[%s0 + $0xc8] sm:$0xff]
    %v146 = vpack.c.bf16 %v133, %v120
    %v147 = vpack.c.bf16 %v134, %v121
    %v148 = vpack.c.bf16 %v135, %v122
    %v149 = vpack.c.bf16 %v136, %v123
    %v150 = vpack.c.bf16 %v137, %v124
    %v151 = vpack.c.bf16 %v138, %v125
    %v152 = vpack.c.bf16 %v139, %v126
    %v153 = vpack.c.bf16 %v140, %v127
    %v154 = vpack.c.bf16 %v141, %v128
    %v155 = vpack.c.bf16 %v142, %v129
    %v156 = vpack.c.bf16 %v143, %v130
    %v157 = vpack.c.bf16 %v144, %v131
    %v158 = vpack.c.bf16 %v145, %v132
    %v159 = vld [vmem:[#allocation2] sm:$0xff]
    %v160 = vld [vmem:[#allocation2 + $0x8] sm:$0xff]
    %v161 = vld [vmem:[#allocation2 + $0x10] sm:$0xff]
    %v162 = vld [vmem:[#allocation2 + $0x18] sm:$0xff]
    %v163 = vld [vmem:[#allocation2 + $0x20] sm:$0xff]
    %v164 = vld [vmem:[#allocation2 + $0x28] sm:$0xff]
    %v165 = vld [vmem:[#allocation2 + $0x30] sm:$0xff]
    %v166 = vld [vmem:[#allocation2 + $0x38] sm:$0xff]
    %v167 = vld [vmem:[#allocation2 + $0x40] sm:$0xff]
    %v168 = vld [vmem:[#allocation2 + $0x48] sm:$0xff]
    %v169 = vld [vmem:[#allocation2 + $0x50] sm:$0xff]
    %v170 = vld [vmem:[#allocation2 + $0x58] sm:$0xff]
    %v171 = vld [vmem:[#allocation2 + $0x60] sm:$0xff]
    %v172 = vld [vmem:[#allocation2 + $0x68] sm:$0xff]
    %v173 = vld [vmem:[#allocation2 + $0x70] sm:$0xff]
    %v174 = vld [vmem:[#allocation2 + $0x78] sm:$0xff]
    %v175 = vld [vmem:[#allocation2 + $0x80] sm:$0xff]
    %v176 = vld [vmem:[#allocation2 + $0x88] sm:$0xff]
    %v177 = vld [vmem:[#allocation2 + $0x90] sm:$0xff]
    %v178 = vld [vmem:[#allocation2 + $0x98] sm:$0xff]
    %v179 = vld [vmem:[#allocation2 + $0xa0] sm:$0xff]
    %v180 = vld [vmem:[#allocation2 + $0xa8] sm:$0xff]
    %v181 = vld [vmem:[#allocation2 + $0xb0] sm:$0xff]
    %v182 = vld [vmem:[#allocation2 + $0xb8] sm:$0xff]
    %v183 = vld [vmem:[#allocation2 + $0xc0] sm:$0xff]
    %v184 = vld [vmem:[#allocation2 + $0xc8] sm:$0xff]
    %v185 = vld [vmem:[#allocation2 + $0xd0] sm:$0xff]
    %v186 = vld [vmem:[#allocation2 + $0xd8] sm:$0xff]
    %v187 = vld [vmem:[#allocation2 + $0xe0] sm:$0xff]
    %v188 = vld [vmem:[#allocation2 + $0xe8] sm:$0xff]
    %v189 = vld [vmem:[#allocation2 + $0xf0] sm:$0xff]
    %v190 = vld [vmem:[#allocation2 + $0xf8] sm:$0xff]
    %v191 = vld [vmem:[#allocation2 + $0x100] sm:$0xff]
    %v192 = vld [vmem:[#allocation2 + $0x108] sm:$0xff]
    %v193 = vld [vmem:[#allocation2 + $0x110] sm:$0xff]
    %v194 = vld [vmem:[#allocation2 + $0x118] sm:$0xff]
    %v195 = vld [vmem:[#allocation2 + $0x120] sm:$0xff]
    %v196 = vld [vmem:[#allocation2 + $0x128] sm:$0xff]
    %v197 = vld [vmem:[#allocation2 + $0x130] sm:$0xff]
    %v198 = vld [vmem:[#allocation2 + $0x138] sm:$0xff]
    %v199 = vld [vmem:[#allocation2 + $0x140] sm:$0xff]
    %v200 = vld [vmem:[#allocation2 + $0x148] sm:$0xff]
    %v201 = vld [vmem:[#allocation2 + $0x150] sm:$0xff]
    %v202 = vld [vmem:[#allocation2 + $0x158] sm:$0xff]
    %v203 = vld [vmem:[#allocation2 + $0x160] sm:$0xff]
    %v204 = vld [vmem:[#allocation2 + $0x168] sm:$0xff]
    %v205 = vld [vmem:[#allocation2 + $0x170] sm:$0xff]
    %v206 = vld [vmem:[#allocation2 + $0x178] sm:$0xff]
    %v207 = vld [vmem:[#allocation2 + $0x180] sm:$0xff]
    %v208 = vld [vmem:[#allocation2 + $0x188] sm:$0xff]
    %v209 = vld [vmem:[#allocation2 + $0x190] sm:$0xff]
    %v210 = vld [vmem:[#allocation2 + $0x198] sm:$0xff]
    %v211 = vld [vmem:[#allocation2 + $0x1a0] sm:$0xff]
    %v212 = vld [vmem:[#allocation2 + $0x1a8] sm:$0xff]
    %v213 = vld [vmem:[#allocation2 + $0x1b0] sm:$0xff]
    %v214 = vld [vmem:[#allocation2 + $0x1b8] sm:$0xff]
    %v215 = vld [vmem:[#allocation2 + $0x1c0] sm:$0xff]
    %v216 = vld [vmem:[#allocation2 + $0x1c8] sm:$0xff]
    %v217 = vld [vmem:[#allocation2 + $0x1d0] sm:$0xff]
    %v218 = vld [vmem:[#allocation2 + $0x1d8] sm:$0xff]
    %v219 = vld [vmem:[#allocation2 + $0x1e0] sm:$0xff]
    %v220 = vld [vmem:[#allocation2 + $0x1e8] sm:$0xff]
    %v221 = vld [vmem:[#allocation2 + $0x1f0] sm:$0xff]
    %v222 = vld [vmem:[#allocation2 + $0x1f8] sm:$0xff]
    %v223 = vld [vmem:[#allocation2 + $0x200] sm:$0xff]
    %v224 = vld [vmem:[#allocation2 + $0x208] sm:$0xff]
    %v225 = vld [vmem:[#allocation2 + $0x210] sm:$0xff]
    %v226 = vld [vmem:[#allocation2 + $0x218] sm:$0xff]
    %v227 = vld [vmem:[#allocation2 + $0x220] sm:$0xff]
    %v228 = vld [vmem:[#allocation2 + $0x228] sm:$0xff]
    %v229 = vld [vmem:[#allocation2 + $0x230] sm:$0xff]
    %v230 = vld [vmem:[#allocation2 + $0x238] sm:$0xff]
    %v231 = vld [vmem:[#allocation2 + $0x240] sm:$0xff]
    %v232 = vld [vmem:[#allocation2 + $0x248] sm:$0xff]
    %v233 = vld [vmem:[#allocation2 + $0x250] sm:$0xff]
    %v234 = vld [vmem:[#allocation2 + $0x258] sm:$0xff]
    %v235 = vld [vmem:[#allocation2 + $0x260] sm:$0xff]
    %v236 = vld [vmem:[#allocation2 + $0x268] sm:$0xff]
    %v237 = vld [vmem:[#allocation2 + $0x270] sm:$0xff]
    %v238 = vld [vmem:[#allocation2 + $0x278] sm:$0xff]
    %v239 = vld [vmem:[#allocation2 + $0x280] sm:$0xff]
    %v240 = vld [vmem:[#allocation2 + $0x288] sm:$0xff]
    %v241 = vld [vmem:[#allocation2 + $0x290] sm:$0xff]
    %v242 = vld [vmem:[#allocation2 + $0x298] sm:$0xff]
    %v243 = vld [vmem:[#allocation2 + $0x2a0] sm:$0xff]
    %v244 = vld [vmem:[#allocation2 + $0x2a8] sm:$0xff]
    %v245 = vld [vmem:[#allocation2 + $0x2b0] sm:$0xff]
    %v246 = vld [vmem:[#allocation2 + $0x2b8] sm:$0xff]
    %v247 = vld [vmem:[#allocation2 + $0x2c0] sm:$0xff]
    %v248 = vld [vmem:[#allocation2 + $0x2c8] sm:$0xff]
    %v249 = vld [vmem:[#allocation2 + $0x2d0] sm:$0xff]
    %v250 = vld [vmem:[#allocation2 + $0x2d8] sm:$0xff]
    %v251 = vld [vmem:[#allocation2 + $0x2e0] sm:$0xff]
    %v252 = vld [vmem:[#allocation2 + $0x2e8] sm:$0xff]
    %v253 = vld [vmem:[#allocation2 + $0x2f0] sm:$0xff]
    %v254 = vld [vmem:[#allocation2 + $0x2f8] sm:$0xff]
    %v255 = vld [vmem:[#allocation2 + $0x300] sm:$0xff]
    %v256 = vld [vmem:[#allocation2 + $0x308] sm:$0xff]
    %v257 = vld [vmem:[#allocation2 + $0x310] sm:$0xff]
    %v258 = vld [vmem:[#allocation2 + $0x318] sm:$0xff]
    %v259 = vld [vmem:[#allocation2 + $0x320] sm:$0xff]
    %v260 = vld [vmem:[#allocation2 + $0x328] sm:$0xff]
    %v261 = vld [vmem:[#allocation2 + $0x330] sm:$0xff]
    %v262 = vld [vmem:[#allocation2 + $0x338] sm:$0xff]
    %v263 = vld [vmem:[#allocation2 + $0x340] sm:$0xff]
    %v264 = vld [vmem:[#allocation2 + $0x348] sm:$0xff]
    %v265 = vld [vmem:[#allocation2 + $0x350] sm:$0xff]
    %v266 = vld [vmem:[#allocation2 + $0x358] sm:$0xff]
    %v267 = vld [vmem:[#allocation2 + $0x360] sm:$0xff]
    %v268 = vld [vmem:[#allocation2 + $0x368] sm:$0xff]
    %v269 = vld [vmem:[#allocation2 + $0x370] sm:$0xff]
    %v270 = vld [vmem:[#allocation2 + $0x378] sm:$0xff]
    %v271 = vld [vmem:[#allocation2 + $0x380] sm:$0xff]
    %v272 = vld [vmem:[#allocation2 + $0x388] sm:$0xff]
    %v273 = vld [vmem:[#allocation2 + $0x390] sm:$0xff]
    %v274 = vld [vmem:[#allocation2 + $0x398] sm:$0xff]
    %v275 = vld [vmem:[#allocation2 + $0x3a0] sm:$0xff]
    %v276 = vld [vmem:[#allocation2 + $0x3a8] sm:$0xff]
    %v277 = vld [vmem:[#allocation2 + $0x3b0] sm:$0xff]
    %v278 = vld [vmem:[#allocation2 + $0x3b8] sm:$0xff]
    %v279 = vld [vmem:[#allocation2 + $0x3c0] sm:$0xff]
    %v280 = vld [vmem:[#allocation2 + $0x3c8] sm:$0xff]
    %v281 = vld [vmem:[#allocation2 + $0x3d0] sm:$0xff]
    %v282 = vld [vmem:[#allocation2 + $0x3d8] sm:$0xff]
    %v283 = vld [vmem:[#allocation2 + $0x3e0] sm:$0xff]
    %v284 = vld [vmem:[#allocation2 + $0x3e8] sm:$0xff]
    %v285 = vld [vmem:[#allocation2 + $0x3f0] sm:$0xff]
    %v286 = vld [vmem:[#allocation2 + $0x3f8] sm:$0xff]
    %v287 = vld [vmem:[#allocation2 + $0x400] sm:$0xff]
    %v288 = vld [vmem:[#allocation2 + $0x408] sm:$0xff]
    %v289 = vld [vmem:[#allocation2 + $0x410] sm:$0xff]
    %v290 = vld [vmem:[#allocation2 + $0x418] sm:$0xff]
    %v291 = vld [vmem:[#allocation2 + $0x420] sm:$0xff]
    %v292 = vld [vmem:[#allocation2 + $0x428] sm:$0xff]
    %v293 = vld [vmem:[#allocation2 + $0x430] sm:$0xff]
    %v294 = vld [vmem:[#allocation2 + $0x438] sm:$0xff]
    %v295 = vld [vmem:[#allocation2 + $0x440] sm:$0xff]
    %v296 = vld [vmem:[#allocation2 + $0x448] sm:$0xff]
    %v297 = vld [vmem:[#allocation2 + $0x450] sm:$0xff]
    %v298 = vld [vmem:[#allocation2 + $0x458] sm:$0xff]
    %v299 = vld [vmem:[#allocation2 + $0x460] sm:$0xff]
    %v300 = vld [vmem:[#allocation2 + $0x468] sm:$0xff]
    %v301 = vld [vmem:[#allocation2 + $0x470] sm:$0xff]
    %v302 = vld [vmem:[#allocation2 + $0x478] sm:$0xff]
    %v303 = vld [vmem:[#allocation2 + $0x480] sm:$0xff]
    %v304 = vld [vmem:[#allocation2 + $0x488] sm:$0xff]
    %v305 = vld [vmem:[#allocation2 + $0x490] sm:$0xff]
    %v306 = vld [vmem:[#allocation2 + $0x498] sm:$0xff]
    %v307 = vld [vmem:[#allocation2 + $0x4a0] sm:$0xff]
    %v308 = vld [vmem:[#allocation2 + $0x4a8] sm:$0xff]
    %v309 = vld [vmem:[#allocation2 + $0x4b0] sm:$0xff]
    %v310 = vld [vmem:[#allocation2 + $0x4b8] sm:$0xff]
    %v311 = vld [vmem:[#allocation2 + $0x4c0] sm:$0xff]
    %v312 = vld [vmem:[#allocation2 + $0x4c8] sm:$0xff]
    %v313 = vld [vmem:[#allocation2 + $0x4d0] sm:$0xff]
    %v314 = vld [vmem:[#allocation2 + $0x4d8] sm:$0xff]
    %v315 = vld [vmem:[#allocation2 + $0x4e0] sm:$0xff]
    %v316 = vld [vmem:[#allocation2 + $0x4e8] sm:$0xff]
    %v317 = vld [vmem:[#allocation2 + $0x4f0] sm:$0xff]
    %v318 = vld [vmem:[#allocation2 + $0x4f8] sm:$0xff]
    %v319 = vld [vmem:[#allocation2 + $0x500] sm:$0xff]
    %v320 = vld [vmem:[#allocation2 + $0x508] sm:$0xff]
    %v321 = vld [vmem:[#allocation2 + $0x510] sm:$0xff]
    %v322 = vld [vmem:[#allocation2 + $0x518] sm:$0xff]
    %v323 = vld [vmem:[#allocation2 + $0x520] sm:$0xff]
    %v324 = vld [vmem:[#allocation2 + $0x528] sm:$0xff]
    %v325 = vld [vmem:[#allocation2 + $0x530] sm:$0xff]
    %v326 = vld [vmem:[#allocation2 + $0x538] sm:$0xff]
    %v327 = vld [vmem:[#allocation2 + $0x540] sm:$0xff]
    %v328 = vld [vmem:[#allocation2 + $0x548] sm:$0xff]
    %v329 = vld [vmem:[#allocation2 + $0x550] sm:$0xff]
    %v330 = vld [vmem:[#allocation2 + $0x558] sm:$0xff]
    %v331 = vld [vmem:[#allocation2 + $0x560] sm:$0xff]
    %v332 = vld [vmem:[#allocation2 + $0x568] sm:$0xff]
    %v333 = vld [vmem:[#allocation2 + $0x570] sm:$0xff]
    %v334 = vld [vmem:[#allocation2 + $0x578] sm:$0xff]
    %v335 = vld [vmem:[#allocation2 + $0x580] sm:$0xff]
    %v336 = vld [vmem:[#allocation2 + $0x588] sm:$0xff]
    %v337 = vld [vmem:[#allocation2 + $0x590] sm:$0xff]
    %v338 = vld [vmem:[#allocation2 + $0x598] sm:$0xff]
    %v339 = vld [vmem:[#allocation2 + $0x5a0] sm:$0xff]
    %v340 = vld [vmem:[#allocation2 + $0x5a8] sm:$0xff]
    %v341 = vld [vmem:[#allocation2 + $0x5b0] sm:$0xff]
    %v342 = vld [vmem:[#allocation2 + $0x5b8] sm:$0xff]
    %v343 = vld [vmem:[#allocation2 + $0x5c0] sm:$0xff]
    %v344 = vld [vmem:[#allocation2 + $0x5c8] sm:$0xff]
    %v345 = vld [vmem:[#allocation2 + $0x5d0] sm:$0xff]
    %v346 = vld [vmem:[#allocation2 + $0x5d8] sm:$0xff]
    %v347 = vld [vmem:[#allocation2 + $0x5e0] sm:$0xff]
    %v348 = vld [vmem:[#allocation2 + $0x5e8] sm:$0xff]
    %v349 = vld [vmem:[#allocation2 + $0x5f0] sm:$0xff]
    %v350 = vld [vmem:[#allocation2 + $0x5f8] sm:$0xff]
    %v351 = vld [vmem:[#allocation2 + $0x600] sm:$0xff]
    %v352 = vld [vmem:[#allocation2 + $0x608] sm:$0xff]
    %v353 = vld [vmem:[#allocation2 + $0x610] sm:$0xff]
    %v354 = vld [vmem:[#allocation2 + $0x618] sm:$0xff]
    %v355 = vld [vmem:[#allocation2 + $0x620] sm:$0xff]
    %v356 = vld [vmem:[#allocation2 + $0x628] sm:$0xff]
    %v357 = vld [vmem:[#allocation2 + $0x630] sm:$0xff]
    %v358 = vld [vmem:[#allocation2 + $0x638] sm:$0xff]
    %v359 = vld [vmem:[#allocation2 + $0x640] sm:$0xff]
    %v360 = vld [vmem:[#allocation2 + $0x648] sm:$0xff]
    %v361 = vld [vmem:[#allocation2 + $0x650] sm:$0xff]
    %v362 = vld [vmem:[#allocation2 + $0x658] sm:$0xff]
    %v363 = vld [vmem:[#allocation2 + $0x660] sm:$0xff]
    %v364 = vld [vmem:[#allocation2 + $0x668] sm:$0xff]
    %v365 = vld [vmem:[#allocation2 + $0x670] sm:$0xff]
    %v366 = vld [vmem:[#allocation2 + $0x678] sm:$0xff]
    %v367 = vld [vmem:[#allocation2 + $0x680] sm:$0xff]
    %v368 = vld [vmem:[#allocation2 + $0x688] sm:$0xff]
    %v369 = vld [vmem:[#allocation2 + $0x690] sm:$0xff]
    %v370 = vld [vmem:[#allocation2 + $0x698] sm:$0xff]
    %v371 = vld [vmem:[#allocation2 + $0x6a0] sm:$0xff]
    %v372 = vld [vmem:[#allocation2 + $0x6a8] sm:$0xff]
    %v373 = vld [vmem:[#allocation2 + $0x6b0] sm:$0xff]
    %v374 = vld [vmem:[#allocation2 + $0x6b8] sm:$0xff]
    %v375 = vld [vmem:[#allocation2 + $0x6c0] sm:$0xff]
    %v376 = vld [vmem:[#allocation2 + $0x6c8] sm:$0xff]
    %v377 = vld [vmem:[#allocation2 + $0x6d0] sm:$0xff]
    %v378 = vld [vmem:[#allocation2 + $0x6d8] sm:$0xff]
    %v379 = vld [vmem:[#allocation2 + $0x6e0] sm:$0xff]
    %v380 = vld [vmem:[#allocation2 + $0x6e8] sm:$0xff]
    %v381 = vld [vmem:[#allocation2 + $0x6f0] sm:$0xff]
    %v382 = vld [vmem:[#allocation2 + $0x6f8] sm:$0xff]
    %v383 = vld [vmem:[#allocation2 + $0x700] sm:$0xff]
    %v384 = vld [vmem:[#allocation2 + $0x708] sm:$0xff]
    %v385 = vld [vmem:[#allocation2 + $0x710] sm:$0xff]
    %v386 = vld [vmem:[#allocation2 + $0x718] sm:$0xff]
    %v387 = vld [vmem:[#allocation2 + $0x720] sm:$0xff]
    %v388 = vld [vmem:[#allocation2 + $0x728] sm:$0xff]
    %v389 = vld [vmem:[#allocation2 + $0x730] sm:$0xff]
    %v390 = vld [vmem:[#allocation2 + $0x738] sm:$0xff]
    %v391 = vld [vmem:[#allocation2 + $0x740] sm:$0xff]
    %v392 = vld [vmem:[#allocation2 + $0x748] sm:$0xff]
    %v393 = vld [vmem:[#allocation2 + $0x750] sm:$0xff]
    %v394 = vld [vmem:[#allocation2 + $0x758] sm:$0xff]
    %v395 = vld [vmem:[#allocation2 + $0x760] sm:$0xff]
    %v396 = vld [vmem:[#allocation2 + $0x768] sm:$0xff]
    %v397 = vld [vmem:[#allocation2 + $0x770] sm:$0xff]
    %v398 = vld [vmem:[#allocation2 + $0x778] sm:$0xff]
    %v399 = vld [vmem:[#allocation2 + $0x780] sm:$0xff]
    %v400 = vld [vmem:[#allocation2 + $0x788] sm:$0xff]
    %v401 = vld [vmem:[#allocation2 + $0x790] sm:$0xff]
    %v402 = vld [vmem:[#allocation2 + $0x798] sm:$0xff]
    %v403 = vld [vmem:[#allocation2 + $0x7a0] sm:$0xff]
    %v404 = vld [vmem:[#allocation2 + $0x7a8] sm:$0xff]
    %v405 = vld [vmem:[#allocation2 + $0x7b0] sm:$0xff]
    %v406 = vld [vmem:[#allocation2 + $0x7b8] sm:$0xff]
    %v407 = vld [vmem:[#allocation2 + $0x7c0] sm:$0xff]
    %v408 = vld [vmem:[#allocation2 + $0x7c8] sm:$0xff]
    %v409 = vld [vmem:[#allocation2 + $0x7d0] sm:$0xff]
    %v410 = vld [vmem:[#allocation2 + $0x7d8] sm:$0xff]
    %v411 = vld [vmem:[#allocation2 + $0x7e0] sm:$0xff]
    %v412 = vld [vmem:[#allocation2 + $0x7e8] sm:$0xff]
    %v413 = vld [vmem:[#allocation2 + $0x7f0] sm:$0xff]
    %v414 = vld [vmem:[#allocation2 + $0x7f8] sm:$0xff]
    %v415 = vld [vmem:[#allocation2 + $0x800] sm:$0xff]
    %v416 = vld [vmem:[#allocation2 + $0x808] sm:$0xff]
    %v417 = vld [vmem:[#allocation2 + $0x810] sm:$0xff]
    %v418 = vld [vmem:[#allocation2 + $0x818] sm:$0xff]
    %v419 = vld [vmem:[#allocation2 + $0x820] sm:$0xff]
    %v420 = vld [vmem:[#allocation2 + $0x828] sm:$0xff]
    %v421 = vld [vmem:[#allocation2 + $0x830] sm:$0xff]
    %v422 = vld [vmem:[#allocation2 + $0x838] sm:$0xff]
    %v423 = vld [vmem:[#allocation2 + $0x840] sm:$0xff]
    %v424 = vld [vmem:[#allocation2 + $0x848] sm:$0xff]
    %v425 = vld [vmem:[#allocation2 + $0x850] sm:$0xff]
    %v426 = vld [vmem:[#allocation2 + $0x858] sm:$0xff]
    %v427 = vld [vmem:[#allocation2 + $0x860] sm:$0xff]
    %v428 = vld [vmem:[#allocation2 + $0x868] sm:$0xff]
    %v429 = vld [vmem:[#allocation2 + $0x870] sm:$0xff]
    %v430 = vld [vmem:[#allocation2 + $0x878] sm:$0xff]
    %v431 = vld [vmem:[#allocation2 + $0x880] sm:$0xff]
    %v432 = vld [vmem:[#allocation2 + $0x888] sm:$0xff]
    %v433 = vld [vmem:[#allocation2 + $0x890] sm:$0xff]
    %v434 = vld [vmem:[#allocation2 + $0x898] sm:$0xff]
    %v435 = vld [vmem:[#allocation2 + $0x8a0] sm:$0xff]
    %v436 = vld [vmem:[#allocation2 + $0x8a8] sm:$0xff]
    %v437 = vld [vmem:[#allocation2 + $0x8b0] sm:$0xff]
    %v438 = vld [vmem:[#allocation2 + $0x8b8] sm:$0xff]
    %v439 = vld [vmem:[#allocation2 + $0x8c0] sm:$0xff]
    %v440 = vld [vmem:[#allocation2 + $0x8c8] sm:$0xff]
    %v441 = vld [vmem:[#allocation2 + $0x8d0] sm:$0xff]
    %v442 = vld [vmem:[#allocation2 + $0x8d8] sm:$0xff]
    %v443 = vld [vmem:[#allocation2 + $0x8e0] sm:$0xff]
    %v444 = vld [vmem:[#allocation2 + $0x8e8] sm:$0xff]
    %v445 = vld [vmem:[#allocation2 + $0x8f0] sm:$0xff]
    %v446 = vld [vmem:[#allocation2 + $0x8f8] sm:$0xff]
    %v447 = vld [vmem:[#allocation2 + $0x900] sm:$0xff]
    %v448 = vld [vmem:[#allocation2 + $0x908] sm:$0xff]
    %v449 = vld [vmem:[#allocation2 + $0x910] sm:$0xff]
    %v450 = vld [vmem:[#allocation2 + $0x918] sm:$0xff]
    %v451 = vld [vmem:[#allocation2 + $0x920] sm:$0xff]
    %v452 = vld [vmem:[#allocation2 + $0x928] sm:$0xff]
    %v453 = vld [vmem:[#allocation2 + $0x930] sm:$0xff]
    %v454 = vld [vmem:[#allocation2 + $0x938] sm:$0xff]
    %v455 = vld [vmem:[#allocation2 + $0x940] sm:$0xff]
    %v456 = vld [vmem:[#allocation2 + $0x948] sm:$0xff]
    %v457 = vld [vmem:[#allocation2 + $0x950] sm:$0xff]
    %v458 = vld [vmem:[#allocation2 + $0x958] sm:$0xff]
    %v459 = vld [vmem:[#allocation2 + $0x960] sm:$0xff]
    %v460 = vld [vmem:[#allocation2 + $0x968] sm:$0xff]
    %v461 = vld [vmem:[#allocation2 + $0x970] sm:$0xff]
    %v462 = vld [vmem:[#allocation2 + $0x978] sm:$0xff]
    %v463 = vld [vmem:[#allocation2 + $0x980] sm:$0xff]
    %v464 = vld [vmem:[#allocation2 + $0x988] sm:$0xff]
    %v465 = vld [vmem:[#allocation2 + $0x990] sm:$0xff]
    %v466 = vld [vmem:[#allocation2 + $0x998] sm:$0xff]
    %v467 = vld [vmem:[#allocation2 + $0x9a0] sm:$0xff]
    %v468 = vld [vmem:[#allocation2 + $0x9a8] sm:$0xff]
    %v469 = vld [vmem:[#allocation2 + $0x9b0] sm:$0xff]
    %v470 = vld [vmem:[#allocation2 + $0x9b8] sm:$0xff]
    %v471 = vld [vmem:[#allocation2 + $0x9c0] sm:$0xff]
    %v472 = vld [vmem:[#allocation2 + $0x9c8] sm:$0xff]
    %v473 = vld [vmem:[#allocation2 + $0x9d0] sm:$0xff]
    %v474 = vld [vmem:[#allocation2 + $0x9d8] sm:$0xff]
    %v475 = vld [vmem:[#allocation2 + $0x9e0] sm:$0xff]
    %v476 = vld [vmem:[#allocation2 + $0x9e8] sm:$0xff]
    %v477 = vld [vmem:[#allocation2 + $0x9f0] sm:$0xff]
    %v478 = vld [vmem:[#allocation2 + $0x9f8] sm:$0xff]
    %v479 = vld [vmem:[#allocation2 + $0xa00] sm:$0xff]
    %v480 = vld [vmem:[#allocation2 + $0xa08] sm:$0xff]
    %v481 = vld [vmem:[#allocation2 + $0xa10] sm:$0xff]
    %v482 = vld [vmem:[#allocation2 + $0xa18] sm:$0xff]
    %v483 = vld [vmem:[#allocation2 + $0xa20] sm:$0xff]
    %v484 = vld [vmem:[#allocation2 + $0xa28] sm:$0xff]
    %v485 = vld [vmem:[#allocation2 + $0xa30] sm:$0xff]
    %v486 = vld [vmem:[#allocation2 + $0xa38] sm:$0xff]
    %v487 = vld [vmem:[#allocation2 + $0xa40] sm:$0xff]
    %v488 = vld [vmem:[#allocation2 + $0xa48] sm:$0xff]
    %v489 = vld [vmem:[#allocation2 + $0xa50] sm:$0xff]
    %v490 = vld [vmem:[#allocation2 + $0xa58] sm:$0xff]
    %v491 = vld [vmem:[#allocation2 + $0xa60] sm:$0xff]
    %v492 = vld [vmem:[#allocation2 + $0xa68] sm:$0xff]
    %v493 = vld [vmem:[#allocation2 + $0xa70] sm:$0xff]
    %v494 = vld [vmem:[#allocation2 + $0xa78] sm:$0xff]
    %v495 = vld [vmem:[#allocation2 + $0xa80] sm:$0xff]
    %v496 = vld [vmem:[#allocation2 + $0xa88] sm:$0xff]
    %v497 = vld [vmem:[#allocation2 + $0xa90] sm:$0xff]
    %v498 = vld [vmem:[#allocation2 + $0xa98] sm:$0xff]
    %v499 = vld [vmem:[#allocation2 + $0xaa0] sm:$0xff]
    %v500 = vld [vmem:[#allocation2 + $0xaa8] sm:$0xff]
    %v501 = vld [vmem:[#allocation2 + $0xab0] sm:$0xff]
    %v502 = vld [vmem:[#allocation2 + $0xab8] sm:$0xff]
    %v503 = vld [vmem:[#allocation2 + $0xac0] sm:$0xff]
    %v504 = vld [vmem:[#allocation2 + $0xac8] sm:$0xff]
    %v505 = vld [vmem:[#allocation2 + $0xad0] sm:$0xff]
    %v506 = vld [vmem:[#allocation2 + $0xad8] sm:$0xff]
    %v507 = vld [vmem:[#allocation2 + $0xae0] sm:$0xff]
    %v508 = vld [vmem:[#allocation2 + $0xae8] sm:$0xff]
    %v509 = vld [vmem:[#allocation2 + $0xaf0] sm:$0xff]
    %v510 = vld [vmem:[#allocation2 + $0xaf8] sm:$0xff]
    %v511 = vld [vmem:[#allocation2 + $0xb00] sm:$0xff]
    %v512 = vld [vmem:[#allocation2 + $0xb08] sm:$0xff]
    %v513 = vld [vmem:[#allocation2 + $0xb10] sm:$0xff]
    %v514 = vld [vmem:[#allocation2 + $0xb18] sm:$0xff]
    %v515 = vld [vmem:[#allocation2 + $0xb20] sm:$0xff]
    %v516 = vld [vmem:[#allocation2 + $0xb28] sm:$0xff]
    %v517 = vld [vmem:[#allocation2 + $0xb30] sm:$0xff]
    %v518 = vld [vmem:[#allocation2 + $0xb38] sm:$0xff]
    %v519 = vld [vmem:[#allocation2 + $0xb40] sm:$0xff]
    %v520 = vld [vmem:[#allocation2 + $0xb48] sm:$0xff]
    %v521 = vld [vmem:[#allocation2 + $0xb50] sm:$0xff]
    %v522 = vld [vmem:[#allocation2 + $0xb58] sm:$0xff]
    %v523 = vld [vmem:[#allocation2 + $0xb60] sm:$0xff]
    %v524 = vld [vmem:[#allocation2 + $0xb68] sm:$0xff]
    %v525 = vld [vmem:[#allocation2 + $0xb70] sm:$0xff]
    %v526 = vld [vmem:[#allocation2 + $0xb78] sm:$0xff]
    %v527 = vld [vmem:[#allocation2 + $0xb80] sm:$0xff]
    %v528 = vld [vmem:[#allocation2 + $0xb88] sm:$0xff]
    %v529 = vld [vmem:[#allocation2 + $0xb90] sm:$0xff]
    %v530 = vld [vmem:[#allocation2 + $0xb98] sm:$0xff]
    %v531 = vld [vmem:[#allocation2 + $0xba0] sm:$0xff]
    %v532 = vld [vmem:[#allocation2 + $0xba8] sm:$0xff]
    %v533 = vld [vmem:[#allocation2 + $0xbb0] sm:$0xff]
    %v534 = vld [vmem:[#allocation2 + $0xbb8] sm:$0xff]
    %v535 = vld [vmem:[#allocation2 + $0xbc0] sm:$0xff]
    %v536 = vld [vmem:[#allocation2 + $0xbc8] sm:$0xff]
    %v537 = vld [vmem:[#allocation2 + $0xbd0] sm:$0xff]
    %v538 = vld [vmem:[#allocation2 + $0xbd8] sm:$0xff]
    %v539 = vld [vmem:[#allocation2 + $0xbe0] sm:$0xff]
    %v540 = vld [vmem:[#allocation2 + $0xbe8] sm:$0xff]
    %v541 = vld [vmem:[#allocation2 + $0xbf0] sm:$0xff]
    %v542 = vld [vmem:[#allocation2 + $0xbf8] sm:$0xff]
    %v543 = vld [vmem:[#allocation2 + $0xc00] sm:$0xff]
    %v544 = vld [vmem:[#allocation2 + $0xc08] sm:$0xff]
    %v545 = vld [vmem:[#allocation2 + $0xc10] sm:$0xff]
    %v546 = vld [vmem:[#allocation2 + $0xc18] sm:$0xff]
    %v547 = vld [vmem:[#allocation2 + $0xc20] sm:$0xff]
    %v548 = vld [vmem:[#allocation2 + $0xc28] sm:$0xff]
    %v549 = vld [vmem:[#allocation2 + $0xc30] sm:$0xff]
    %v550 = vld [vmem:[#allocation2 + $0xc38] sm:$0xff]
    %v551 = vld [vmem:[#allocation2 + $0xc40] sm:$0xff]
    %v552 = vld [vmem:[#allocation2 + $0xc48] sm:$0xff]
    %v553 = vld [vmem:[#allocation2 + $0xc50] sm:$0xff]
    %v554 = vld [vmem:[#allocation2 + $0xc58] sm:$0xff]
    %v555 = vld [vmem:[#allocation2 + $0xc60] sm:$0xff]
    %v556 = vld [vmem:[#allocation2 + $0xc68] sm:$0xff]
    %v557 = vld [vmem:[#allocation2 + $0xc70] sm:$0xff]
    %v558 = vld [vmem:[#allocation2 + $0xc78] sm:$0xff]
    %v559 = vld [vmem:[#allocation4] sm:$0xf]
    %v561 = vlaneseq
    %v562 = vshrl.u32 %v561, 7
    %v563 = vsub.s32 0, %v562
    %v564 = vrot.slane %v559, %v563
    %v565 = vlaneseq
    %v566 = vshrl.u32 %v565, 7
    %v567 = vsub.s32 1, %v566
    %v568 = vrot.slane %v559, %v567
    %v569 = vlaneseq
    %v570 = vshrl.u32 %v569, 7
    %v571 = vsub.s32 2, %v570
    %v572 = vrot.slane %v559, %v571
    %v573 = vlaneseq
    %v574 = vshrl.u32 %v573, 7
    %v575 = vsub.s32 3, %v574
    %v576 = vrot.slane %v559, %v575
    %v981 = vunpack.c.l.b16 %v159
    %v982 = vunpack.c.h.b16 %v159
    %v983 = vunpack.c.l.b16 %v160
    %v984 = vunpack.c.h.b16 %v160
    %v985 = vunpack.c.l.b16 %v161
    %v986 = vunpack.c.h.b16 %v161
    %v987 = vunpack.c.l.b16 %v162
    %v988 = vunpack.c.h.b16 %v162
    %v989 = vunpack.c.l.b16 %v163
    %v990 = vunpack.c.h.b16 %v163
    %v991 = vunpack.c.l.b16 %v164
    %v992 = vunpack.c.h.b16 %v164
    %v993 = vunpack.c.l.b16 %v165
    %v994 = vunpack.c.h.b16 %v165
    %v995 = vunpack.c.l.b16 %v166
    %v996 = vunpack.c.h.b16 %v166
    %v997 = vunpack.c.l.b16 %v167
    %v998 = vunpack.c.h.b16 %v167
    %v999 = vunpack.c.l.b16 %v168
    %v1000 = vunpack.c.h.b16 %v168
    %v1001 = vunpack.c.l.b16 %v169
    %v1002 = vunpack.c.h.b16 %v169
    %v1003 = vunpack.c.l.b16 %v170
    %v1004 = vunpack.c.h.b16 %v170
    %v1005 = vunpack.c.l.b16 %v171
    %v1006 = vunpack.c.h.b16 %v171
    %v1007 = vunpack.c.l.b16 %v172
    %v1008 = vunpack.c.h.b16 %v172
    %v1009 = vunpack.c.l.b16 %v173
    %v1010 = vunpack.c.h.b16 %v173
    %v1011 = vunpack.c.l.b16 %v174
    %v1012 = vunpack.c.h.b16 %v174
    %v1013 = vunpack.c.l.b16 %v175
    %v1014 = vunpack.c.h.b16 %v175
    %v1015 = vunpack.c.l.b16 %v176
    %v1016 = vunpack.c.h.b16 %v176
    %v1017 = vunpack.c.l.b16 %v177
    %v1018 = vunpack.c.h.b16 %v177
    %v1019 = vunpack.c.l.b16 %v178
    %v1020 = vunpack.c.h.b16 %v178
    %v1021 = vunpack.c.l.b16 %v179
    %v1022 = vunpack.c.h.b16 %v179
    %v1023 = vunpack.c.l.b16 %v180
    %v1024 = vunpack.c.h.b16 %v180
    %v1025 = vunpack.c.l.b16 %v181
    %v1026 = vunpack.c.h.b16 %v181
    %v1027 = vunpack.c.l.b16 %v182
    %v1028 = vunpack.c.h.b16 %v182
    %v1029 = vunpack.c.l.b16 %v183
    %v1030 = vunpack.c.h.b16 %v183
    %v1031 = vunpack.c.l.b16 %v184
    %v1032 = vunpack.c.h.b16 %v184
    %v1033 = vunpack.c.l.b16 %v185
    %v1034 = vunpack.c.h.b16 %v185
    %v1035 = vunpack.c.l.b16 %v186
    %v1036 = vunpack.c.h.b16 %v186
    %v1037 = vunpack.c.l.b16 %v187
    %v1038 = vunpack.c.h.b16 %v187
    %v1039 = vunpack.c.l.b16 %v188
    %v1040 = vunpack.c.h.b16 %v188
    %v1041 = vunpack.c.l.b16 %v189
    %v1042 = vunpack.c.h.b16 %v189
    %v1043 = vunpack.c.l.b16 %v190
    %v1044 = vunpack.c.h.b16 %v190
    %v1045 = vunpack.c.l.b16 %v191
    %v1046 = vunpack.c.h.b16 %v191
    %v1047 = vunpack.c.l.b16 %v192
    %v1048 = vunpack.c.h.b16 %v192
    %v1049 = vunpack.c.l.b16 %v193
    %v1050 = vunpack.c.h.b16 %v193
    %v1051 = vunpack.c.l.b16 %v194
    %v1052 = vunpack.c.h.b16 %v194
    %v1053 = vunpack.c.l.b16 %v195
    %v1054 = vunpack.c.h.b16 %v195
    %v1055 = vunpack.c.l.b16 %v196
    %v1056 = vunpack.c.h.b16 %v196
    %v1057 = vunpack.c.l.b16 %v197
    %v1058 = vunpack.c.h.b16 %v197
    %v1059 = vunpack.c.l.b16 %v198
    %v1060 = vunpack.c.h.b16 %v198
    %v1061 = vunpack.c.l.b16 %v199
    %v1062 = vunpack.c.h.b16 %v199
    %v1063 = vunpack.c.l.b16 %v200
    %v1064 = vunpack.c.h.b16 %v200
    %v1065 = vunpack.c.l.b16 %v201
    %v1066 = vunpack.c.h.b16 %v201
    %v1067 = vunpack.c.l.b16 %v202
    %v1068 = vunpack.c.h.b16 %v202
    %v1069 = vunpack.c.l.b16 %v203
    %v1070 = vunpack.c.h.b16 %v203
    %v1071 = vunpack.c.l.b16 %v204
    %v1072 = vunpack.c.h.b16 %v204
    %v1073 = vunpack.c.l.b16 %v205
    %v1074 = vunpack.c.h.b16 %v205
    %v1075 = vunpack.c.l.b16 %v206
    %v1076 = vunpack.c.h.b16 %v206
    %v1077 = vunpack.c.l.b16 %v207
    %v1078 = vunpack.c.h.b16 %v207
    %v1079 = vunpack.c.l.b16 %v208
    %v1080 = vunpack.c.h.b16 %v208
    %v1081 = vunpack.c.l.b16 %v209
    %v1082 = vunpack.c.h.b16 %v209
    %v1083 = vunpack.c.l.b16 %v210
    %v1084 = vunpack.c.h.b16 %v210
    %v1085 = vunpack.c.l.b16 %v211
    %v1086 = vunpack.c.h.b16 %v211
    %v1087 = vunpack.c.l.b16 %v212
    %v1088 = vunpack.c.h.b16 %v212
    %v1089 = vunpack.c.l.b16 %v213
    %v1090 = vunpack.c.h.b16 %v213
    %v1091 = vunpack.c.l.b16 %v214
    %v1092 = vunpack.c.h.b16 %v214
    %v1093 = vunpack.c.l.b16 %v215
    %v1094 = vunpack.c.h.b16 %v215
    %v1095 = vunpack.c.l.b16 %v216
    %v1096 = vunpack.c.h.b16 %v216
    %v1097 = vunpack.c.l.b16 %v217
    %v1098 = vunpack.c.h.b16 %v217
    %v1099 = vunpack.c.l.b16 %v218
    %v1100 = vunpack.c.h.b16 %v218
    %v1101 = vunpack.c.l.b16 %v219
    %v1102 = vunpack.c.h.b16 %v219
    %v1103 = vunpack.c.l.b16 %v220
    %v1104 = vunpack.c.h.b16 %v220
    %v1105 = vunpack.c.l.b16 %v221
    %v1106 = vunpack.c.h.b16 %v221
    %v1107 = vunpack.c.l.b16 %v222
    %v1108 = vunpack.c.h.b16 %v222
    %v1109 = vunpack.c.l.b16 %v223
    %v1110 = vunpack.c.h.b16 %v223
    %v1111 = vunpack.c.l.b16 %v224
    %v1112 = vunpack.c.h.b16 %v224
    %v1113 = vunpack.c.l.b16 %v225
    %v1114 = vunpack.c.h.b16 %v225
    %v1115 = vunpack.c.l.b16 %v226
    %v1116 = vunpack.c.h.b16 %v226
    %v1117 = vunpack.c.l.b16 %v227
    %v1118 = vunpack.c.h.b16 %v227
    %v1119 = vunpack.c.l.b16 %v228
    %v1120 = vunpack.c.h.b16 %v228
    %v1121 = vunpack.c.l.b16 %v229
    %v1122 = vunpack.c.h.b16 %v229
    %v1123 = vunpack.c.l.b16 %v230
    %v1124 = vunpack.c.h.b16 %v230
    %v1125 = vunpack.c.l.b16 %v231
    %v1126 = vunpack.c.h.b16 %v231
    %v1127 = vunpack.c.l.b16 %v232
    %v1128 = vunpack.c.h.b16 %v232
    %v1129 = vunpack.c.l.b16 %v233
    %v1130 = vunpack.c.h.b16 %v233
    %v1131 = vunpack.c.l.b16 %v234
    %v1132 = vunpack.c.h.b16 %v234
    %v1133 = vunpack.c.l.b16 %v235
    %v1134 = vunpack.c.h.b16 %v235
    %v1135 = vunpack.c.l.b16 %v236
    %v1136 = vunpack.c.h.b16 %v236
    %v1137 = vunpack.c.l.b16 %v237
    %v1138 = vunpack.c.h.b16 %v237
    %v1139 = vunpack.c.l.b16 %v238
    %v1140 = vunpack.c.h.b16 %v238
    %v1141 = vunpack.c.l.b16 %v239
    %v1142 = vunpack.c.h.b16 %v239
    %v1143 = vunpack.c.l.b16 %v240
    %v1144 = vunpack.c.h.b16 %v240
    %v1145 = vunpack.c.l.b16 %v241
    %v1146 = vunpack.c.h.b16 %v241
    %v1147 = vunpack.c.l.b16 %v242
    %v1148 = vunpack.c.h.b16 %v242
    %v1149 = vunpack.c.l.b16 %v243
    %v1150 = vunpack.c.h.b16 %v243
    %v1151 = vunpack.c.l.b16 %v244
    %v1152 = vunpack.c.h.b16 %v244
    %v1153 = vunpack.c.l.b16 %v245
    %v1154 = vunpack.c.h.b16 %v245
    %v1155 = vunpack.c.l.b16 %v246
    %v1156 = vunpack.c.h.b16 %v246
    %v1157 = vunpack.c.l.b16 %v247
    %v1158 = vunpack.c.h.b16 %v247
    %v1159 = vunpack.c.l.b16 %v248
    %v1160 = vunpack.c.h.b16 %v248
    %v1161 = vunpack.c.l.b16 %v249
    %v1162 = vunpack.c.h.b16 %v249
    %v1163 = vunpack.c.l.b16 %v250
    %v1164 = vunpack.c.h.b16 %v250
    %v1165 = vunpack.c.l.b16 %v251
    %v1166 = vunpack.c.h.b16 %v251
    %v1167 = vunpack.c.l.b16 %v252
    %v1168 = vunpack.c.h.b16 %v252
    %v1169 = vunpack.c.l.b16 %v253
    %v1170 = vunpack.c.h.b16 %v253
    %v1171 = vunpack.c.l.b16 %v254
    %v1172 = vunpack.c.h.b16 %v254
    %v1173 = vunpack.c.l.b16 %v255
    %v1174 = vunpack.c.h.b16 %v255
    %v1175 = vunpack.c.l.b16 %v256
    %v1176 = vunpack.c.h.b16 %v256
    %v1177 = vunpack.c.l.b16 %v257
    %v1178 = vunpack.c.h.b16 %v257
    %v1179 = vunpack.c.l.b16 %v258
    %v1180 = vunpack.c.h.b16 %v258
    %v1181 = vunpack.c.l.b16 %v259
    %v1182 = vunpack.c.h.b16 %v259
    %v1183 = vunpack.c.l.b16 %v260
    %v1184 = vunpack.c.h.b16 %v260
    %v1185 = vunpack.c.l.b16 %v261
    %v1186 = vunpack.c.h.b16 %v261
    %v1187 = vunpack.c.l.b16 %v262
    %v1188 = vunpack.c.h.b16 %v262
    %v1189 = vunpack.c.l.b16 %v263
    %v1190 = vunpack.c.h.b16 %v263
    %v1191 = vunpack.c.l.b16 %v264
    %v1192 = vunpack.c.h.b16 %v264
    %v1193 = vunpack.c.l.b16 %v265
    %v1194 = vunpack.c.h.b16 %v265
    %v1195 = vunpack.c.l.b16 %v266
    %v1196 = vunpack.c.h.b16 %v266
    %v1197 = vunpack.c.l.b16 %v267
    %v1198 = vunpack.c.h.b16 %v267
    %v1199 = vunpack.c.l.b16 %v268
    %v1200 = vunpack.c.h.b16 %v268
    %v1201 = vunpack.c.l.b16 %v269
    %v1202 = vunpack.c.h.b16 %v269
    %v1203 = vunpack.c.l.b16 %v270
    %v1204 = vunpack.c.h.b16 %v270
    %v1205 = vunpack.c.l.b16 %v271
    %v1206 = vunpack.c.h.b16 %v271
    %v1207 = vunpack.c.l.b16 %v272
    %v1208 = vunpack.c.h.b16 %v272
    %v1209 = vunpack.c.l.b16 %v273
    %v1210 = vunpack.c.h.b16 %v273
    %v1211 = vunpack.c.l.b16 %v274
    %v1212 = vunpack.c.h.b16 %v274
    %v1213 = vunpack.c.l.b16 %v275
    %v1214 = vunpack.c.h.b16 %v275
    %v1215 = vunpack.c.l.b16 %v276
    %v1216 = vunpack.c.h.b16 %v276
    %v1217 = vunpack.c.l.b16 %v277
    %v1218 = vunpack.c.h.b16 %v277
    %v1219 = vunpack.c.l.b16 %v278
    %v1220 = vunpack.c.h.b16 %v278
    %v1221 = vunpack.c.l.b16 %v279
    %v1222 = vunpack.c.h.b16 %v279
    %v1223 = vunpack.c.l.b16 %v280
    %v1224 = vunpack.c.h.b16 %v280
    %v1225 = vunpack.c.l.b16 %v281
    %v1226 = vunpack.c.h.b16 %v281
    %v1227 = vunpack.c.l.b16 %v282
    %v1228 = vunpack.c.h.b16 %v282
    %v1229 = vunpack.c.l.b16 %v283
    %v1230 = vunpack.c.h.b16 %v283
    %v1231 = vunpack.c.l.b16 %v284
    %v1232 = vunpack.c.h.b16 %v284
    %v1233 = vunpack.c.l.b16 %v285
    %v1234 = vunpack.c.h.b16 %v285
    %v1235 = vunpack.c.l.b16 %v286
    %v1236 = vunpack.c.h.b16 %v286
    %v1237 = vunpack.c.l.b16 %v287
    %v1238 = vunpack.c.h.b16 %v287
    %v1239 = vunpack.c.l.b16 %v288
    %v1240 = vunpack.c.h.b16 %v288
    %v1241 = vunpack.c.l.b16 %v289
    %v1242 = vunpack.c.h.b16 %v289
    %v1243 = vunpack.c.l.b16 %v290
    %v1244 = vunpack.c.h.b16 %v290
    %v1245 = vunpack.c.l.b16 %v291
    %v1246 = vunpack.c.h.b16 %v291
    %v1247 = vunpack.c.l.b16 %v292
    %v1248 = vunpack.c.h.b16 %v292
    %v1249 = vunpack.c.l.b16 %v293
    %v1250 = vunpack.c.h.b16 %v293
    %v1251 = vunpack.c.l.b16 %v294
    %v1252 = vunpack.c.h.b16 %v294
    %v1253 = vunpack.c.l.b16 %v295
    %v1254 = vunpack.c.h.b16 %v295
    %v1255 = vunpack.c.l.b16 %v296
    %v1256 = vunpack.c.h.b16 %v296
    %v1257 = vunpack.c.l.b16 %v297
    %v1258 = vunpack.c.h.b16 %v297
    %v1259 = vunpack.c.l.b16 %v298
    %v1260 = vunpack.c.h.b16 %v298
    %v1261 = vunpack.c.l.b16 %v299
    %v1262 = vunpack.c.h.b16 %v299
    %v1263 = vunpack.c.l.b16 %v300
    %v1264 = vunpack.c.h.b16 %v300
    %v1265 = vunpack.c.l.b16 %v301
    %v1266 = vunpack.c.h.b16 %v301
    %v1267 = vunpack.c.l.b16 %v302
    %v1268 = vunpack.c.h.b16 %v302
    %v1269 = vunpack.c.l.b16 %v303
    %v1270 = vunpack.c.h.b16 %v303
    %v1271 = vunpack.c.l.b16 %v304
    %v1272 = vunpack.c.h.b16 %v304
    %v1273 = vunpack.c.l.b16 %v305
    %v1274 = vunpack.c.h.b16 %v305
    %v1275 = vunpack.c.l.b16 %v306
    %v1276 = vunpack.c.h.b16 %v306
    %v1277 = vunpack.c.l.b16 %v307
    %v1278 = vunpack.c.h.b16 %v307
    %v1279 = vunpack.c.l.b16 %v308
    %v1280 = vunpack.c.h.b16 %v308
    %v1281 = vunpack.c.l.b16 %v309
    %v1282 = vunpack.c.h.b16 %v309
    %v1283 = vunpack.c.l.b16 %v310
    %v1284 = vunpack.c.h.b16 %v310
    %v1285 = vunpack.c.l.b16 %v311
    %v1286 = vunpack.c.h.b16 %v311
    %v1287 = vunpack.c.l.b16 %v312
    %v1288 = vunpack.c.h.b16 %v312
    %v1289 = vunpack.c.l.b16 %v313
    %v1290 = vunpack.c.h.b16 %v313
    %v1291 = vunpack.c.l.b16 %v314
    %v1292 = vunpack.c.h.b16 %v314
    %v1293 = vunpack.c.l.b16 %v315
    %v1294 = vunpack.c.h.b16 %v315
    %v1295 = vunpack.c.l.b16 %v316
    %v1296 = vunpack.c.h.b16 %v316
    %v1297 = vunpack.c.l.b16 %v317
    %v1298 = vunpack.c.h.b16 %v317
    %v1299 = vunpack.c.l.b16 %v318
    %v1300 = vunpack.c.h.b16 %v318
    %v1301 = vunpack.c.l.b16 %v319
    %v1302 = vunpack.c.h.b16 %v319
    %v1303 = vunpack.c.l.b16 %v320
    %v1304 = vunpack.c.h.b16 %v320
    %v1305 = vunpack.c.l.b16 %v321
    %v1306 = vunpack.c.h.b16 %v321
    %v1307 = vunpack.c.l.b16 %v322
    %v1308 = vunpack.c.h.b16 %v322
    %v1309 = vunpack.c.l.b16 %v323
    %v1310 = vunpack.c.h.b16 %v323
    %v1311 = vunpack.c.l.b16 %v324
    %v1312 = vunpack.c.h.b16 %v324
    %v1313 = vunpack.c.l.b16 %v325
    %v1314 = vunpack.c.h.b16 %v325
    %v1315 = vunpack.c.l.b16 %v326
    %v1316 = vunpack.c.h.b16 %v326
    %v1317 = vunpack.c.l.b16 %v327
    %v1318 = vunpack.c.h.b16 %v327
    %v1319 = vunpack.c.l.b16 %v328
    %v1320 = vunpack.c.h.b16 %v328
    %v1321 = vunpack.c.l.b16 %v329
    %v1322 = vunpack.c.h.b16 %v329
    %v1323 = vunpack.c.l.b16 %v330
    %v1324 = vunpack.c.h.b16 %v330
    %v1325 = vunpack.c.l.b16 %v331
    %v1326 = vunpack.c.h.b16 %v331
    %v1327 = vunpack.c.l.b16 %v332
    %v1328 = vunpack.c.h.b16 %v332
    %v1329 = vunpack.c.l.b16 %v333
    %v1330 = vunpack.c.h.b16 %v333
    %v1331 = vunpack.c.l.b16 %v334
    %v1332 = vunpack.c.h.b16 %v334
    %v1333 = vunpack.c.l.b16 %v335
    %v1334 = vunpack.c.h.b16 %v335
    %v1335 = vunpack.c.l.b16 %v336
    %v1336 = vunpack.c.h.b16 %v336
    %v1337 = vunpack.c.l.b16 %v337
    %v1338 = vunpack.c.h.b16 %v337
    %v1339 = vunpack.c.l.b16 %v338
    %v1340 = vunpack.c.h.b16 %v338
    %v1341 = vunpack.c.l.b16 %v339
    %v1342 = vunpack.c.h.b16 %v339
    %v1343 = vunpack.c.l.b16 %v340
    %v1344 = vunpack.c.h.b16 %v340
    %v1345 = vunpack.c.l.b16 %v341
    %v1346 = vunpack.c.h.b16 %v341
    %v1347 = vunpack.c.l.b16 %v342
    %v1348 = vunpack.c.h.b16 %v342
    %v1349 = vunpack.c.l.b16 %v343
    %v1350 = vunpack.c.h.b16 %v343
    %v1351 = vunpack.c.l.b16 %v344
    %v1352 = vunpack.c.h.b16 %v344
    %v1353 = vunpack.c.l.b16 %v345
    %v1354 = vunpack.c.h.b16 %v345
    %v1355 = vunpack.c.l.b16 %v346
    %v1356 = vunpack.c.h.b16 %v346
    %v1357 = vunpack.c.l.b16 %v347
    %v1358 = vunpack.c.h.b16 %v347
    %v1359 = vunpack.c.l.b16 %v348
    %v1360 = vunpack.c.h.b16 %v348
    %v1361 = vunpack.c.l.b16 %v349
    %v1362 = vunpack.c.h.b16 %v349
    %v1363 = vunpack.c.l.b16 %v350
    %v1364 = vunpack.c.h.b16 %v350
    %v1365 = vunpack.c.l.b16 %v351
    %v1366 = vunpack.c.h.b16 %v351
    %v1367 = vunpack.c.l.b16 %v352
    %v1368 = vunpack.c.h.b16 %v352
    %v1369 = vunpack.c.l.b16 %v353
    %v1370 = vunpack.c.h.b16 %v353
    %v1371 = vunpack.c.l.b16 %v354
    %v1372 = vunpack.c.h.b16 %v354
    %v1373 = vunpack.c.l.b16 %v355
    %v1374 = vunpack.c.h.b16 %v355
    %v1375 = vunpack.c.l.b16 %v356
    %v1376 = vunpack.c.h.b16 %v356
    %v1377 = vunpack.c.l.b16 %v357
    %v1378 = vunpack.c.h.b16 %v357
    %v1379 = vunpack.c.l.b16 %v358
    %v1380 = vunpack.c.h.b16 %v358
    %v1381 = vunpack.c.l.b16 %v359
    %v1382 = vunpack.c.h.b16 %v359
    %v1383 = vunpack.c.l.b16 %v360
    %v1384 = vunpack.c.h.b16 %v360
    %v1385 = vunpack.c.l.b16 %v361
    %v1386 = vunpack.c.h.b16 %v361
    %v1387 = vunpack.c.l.b16 %v362
    %v1388 = vunpack.c.h.b16 %v362
    %v1389 = vunpack.c.l.b16 %v363
    %v1390 = vunpack.c.h.b16 %v363
    %v1391 = vunpack.c.l.b16 %v364
    %v1392 = vunpack.c.h.b16 %v364
    %v1393 = vunpack.c.l.b16 %v365
    %v1394 = vunpack.c.h.b16 %v365
    %v1395 = vunpack.c.l.b16 %v366
    %v1396 = vunpack.c.h.b16 %v366
    %v1397 = vunpack.c.l.b16 %v367
    %v1398 = vunpack.c.h.b16 %v367
    %v1399 = vunpack.c.l.b16 %v368
    %v1400 = vunpack.c.h.b16 %v368
    %v1401 = vunpack.c.l.b16 %v369
    %v1402 = vunpack.c.h.b16 %v369
    %v1403 = vunpack.c.l.b16 %v370
    %v1404 = vunpack.c.h.b16 %v370
    %v1405 = vunpack.c.l.b16 %v371
    %v1406 = vunpack.c.h.b16 %v371
    %v1407 = vunpack.c.l.b16 %v372
    %v1408 = vunpack.c.h.b16 %v372
    %v1409 = vunpack.c.l.b16 %v373
    %v1410 = vunpack.c.h.b16 %v373
    %v1411 = vunpack.c.l.b16 %v374
    %v1412 = vunpack.c.h.b16 %v374
    %v1413 = vunpack.c.l.b16 %v375
    %v1414 = vunpack.c.h.b16 %v375
    %v1415 = vunpack.c.l.b16 %v376
    %v1416 = vunpack.c.h.b16 %v376
    %v1417 = vunpack.c.l.b16 %v377
    %v1418 = vunpack.c.h.b16 %v377
    %v1419 = vunpack.c.l.b16 %v378
    %v1420 = vunpack.c.h.b16 %v378
    %v1421 = vunpack.c.l.b16 %v379
    %v1422 = vunpack.c.h.b16 %v379
    %v1423 = vunpack.c.l.b16 %v380
    %v1424 = vunpack.c.h.b16 %v380
    %v1425 = vunpack.c.l.b16 %v381
    %v1426 = vunpack.c.h.b16 %v381
    %v1427 = vunpack.c.l.b16 %v382
    %v1428 = vunpack.c.h.b16 %v382
    %v1429 = vunpack.c.l.b16 %v383
    %v1430 = vunpack.c.h.b16 %v383
    %v1431 = vunpack.c.l.b16 %v384
    %v1432 = vunpack.c.h.b16 %v384
    %v1433 = vunpack.c.l.b16 %v385
    %v1434 = vunpack.c.h.b16 %v385
    %v1435 = vunpack.c.l.b16 %v386
    %v1436 = vunpack.c.h.b16 %v386
    %v1437 = vunpack.c.l.b16 %v387
    %v1438 = vunpack.c.h.b16 %v387
    %v1439 = vunpack.c.l.b16 %v388
    %v1440 = vunpack.c.h.b16 %v388
    %v1441 = vunpack.c.l.b16 %v389
    %v1442 = vunpack.c.h.b16 %v389
    %v1443 = vunpack.c.l.b16 %v390
    %v1444 = vunpack.c.h.b16 %v390
    %v1445 = vunpack.c.l.b16 %v391
    %v1446 = vunpack.c.h.b16 %v391
    %v1447 = vunpack.c.l.b16 %v392
    %v1448 = vunpack.c.h.b16 %v392
    %v1449 = vunpack.c.l.b16 %v393
    %v1450 = vunpack.c.h.b16 %v393
    %v1451 = vunpack.c.l.b16 %v394
    %v1452 = vunpack.c.h.b16 %v394
    %v1453 = vunpack.c.l.b16 %v395
    %v1454 = vunpack.c.h.b16 %v395
    %v1455 = vunpack.c.l.b16 %v396
    %v1456 = vunpack.c.h.b16 %v396
    %v1457 = vunpack.c.l.b16 %v397
    %v1458 = vunpack.c.h.b16 %v397
    %v1459 = vunpack.c.l.b16 %v398
    %v1460 = vunpack.c.h.b16 %v398
    %v1461 = vunpack.c.l.b16 %v399
    %v1462 = vunpack.c.h.b16 %v399
    %v1463 = vunpack.c.l.b16 %v400
    %v1464 = vunpack.c.h.b16 %v400
    %v1465 = vunpack.c.l.b16 %v401
    %v1466 = vunpack.c.h.b16 %v401
    %v1467 = vunpack.c.l.b16 %v402
    %v1468 = vunpack.c.h.b16 %v402
    %v1469 = vunpack.c.l.b16 %v403
    %v1470 = vunpack.c.h.b16 %v403
    %v1471 = vunpack.c.l.b16 %v404
    %v1472 = vunpack.c.h.b16 %v404
    %v1473 = vunpack.c.l.b16 %v405
    %v1474 = vunpack.c.h.b16 %v405
    %v1475 = vunpack.c.l.b16 %v406
    %v1476 = vunpack.c.h.b16 %v406
    %v1477 = vunpack.c.l.b16 %v407
    %v1478 = vunpack.c.h.b16 %v407
    %v1479 = vunpack.c.l.b16 %v408
    %v1480 = vunpack.c.h.b16 %v408
    %v1481 = vunpack.c.l.b16 %v409
    %v1482 = vunpack.c.h.b16 %v409
    %v1483 = vunpack.c.l.b16 %v410
    %v1484 = vunpack.c.h.b16 %v410
    %v1485 = vunpack.c.l.b16 %v411
    %v1486 = vunpack.c.h.b16 %v411
    %v1487 = vunpack.c.l.b16 %v412
    %v1488 = vunpack.c.h.b16 %v412
    %v1489 = vunpack.c.l.b16 %v413
    %v1490 = vunpack.c.h.b16 %v413
    %v1491 = vunpack.c.l.b16 %v414
    %v1492 = vunpack.c.h.b16 %v414
    %v1493 = vunpack.c.l.b16 %v415
    %v1494 = vunpack.c.h.b16 %v415
    %v1495 = vunpack.c.l.b16 %v416
    %v1496 = vunpack.c.h.b16 %v416
    %v1497 = vunpack.c.l.b16 %v417
    %v1498 = vunpack.c.h.b16 %v417
    %v1499 = vunpack.c.l.b16 %v418
    %v1500 = vunpack.c.h.b16 %v418
    %v1501 = vunpack.c.l.b16 %v419
    %v1502 = vunpack.c.h.b16 %v419
    %v1503 = vunpack.c.l.b16 %v420
    %v1504 = vunpack.c.h.b16 %v420
    %v1505 = vunpack.c.l.b16 %v421
    %v1506 = vunpack.c.h.b16 %v421
    %v1507 = vunpack.c.l.b16 %v422
    %v1508 = vunpack.c.h.b16 %v422
    %v1509 = vunpack.c.l.b16 %v423
    %v1510 = vunpack.c.h.b16 %v423
    %v1511 = vunpack.c.l.b16 %v424
    %v1512 = vunpack.c.h.b16 %v424
    %v1513 = vunpack.c.l.b16 %v425
    %v1514 = vunpack.c.h.b16 %v425
    %v1515 = vunpack.c.l.b16 %v426
    %v1516 = vunpack.c.h.b16 %v426
    %v1517 = vunpack.c.l.b16 %v427
    %v1518 = vunpack.c.h.b16 %v427
    %v1519 = vunpack.c.l.b16 %v428
    %v1520 = vunpack.c.h.b16 %v428
    %v1521 = vunpack.c.l.b16 %v429
    %v1522 = vunpack.c.h.b16 %v429
    %v1523 = vunpack.c.l.b16 %v430
    %v1524 = vunpack.c.h.b16 %v430
    %v1525 = vunpack.c.l.b16 %v431
    %v1526 = vunpack.c.h.b16 %v431
    %v1527 = vunpack.c.l.b16 %v432
    %v1528 = vunpack.c.h.b16 %v432
    %v1529 = vunpack.c.l.b16 %v433
    %v1530 = vunpack.c.h.b16 %v433
    %v1531 = vunpack.c.l.b16 %v434
    %v1532 = vunpack.c.h.b16 %v434
    %v1533 = vunpack.c.l.b16 %v435
    %v1534 = vunpack.c.h.b16 %v435
    %v1535 = vunpack.c.l.b16 %v436
    %v1536 = vunpack.c.h.b16 %v436
    %v1537 = vunpack.c.l.b16 %v437
    %v1538 = vunpack.c.h.b16 %v437
    %v1539 = vunpack.c.l.b16 %v438
    %v1540 = vunpack.c.h.b16 %v438
    %v1541 = vunpack.c.l.b16 %v439
    %v1542 = vunpack.c.h.b16 %v439
    %v1543 = vunpack.c.l.b16 %v440
    %v1544 = vunpack.c.h.b16 %v440
    %v1545 = vunpack.c.l.b16 %v441
    %v1546 = vunpack.c.h.b16 %v441
    %v1547 = vunpack.c.l.b16 %v442
    %v1548 = vunpack.c.h.b16 %v442
    %v1549 = vunpack.c.l.b16 %v443
    %v1550 = vunpack.c.h.b16 %v443
    %v1551 = vunpack.c.l.b16 %v444
    %v1552 = vunpack.c.h.b16 %v444
    %v1553 = vunpack.c.l.b16 %v445
    %v1554 = vunpack.c.h.b16 %v445
    %v1555 = vunpack.c.l.b16 %v446
    %v1556 = vunpack.c.h.b16 %v446
    %v1557 = vunpack.c.l.b16 %v447
    %v1558 = vunpack.c.h.b16 %v447
    %v1559 = vunpack.c.l.b16 %v448
    %v1560 = vunpack.c.h.b16 %v448
    %v1561 = vunpack.c.l.b16 %v449
    %v1562 = vunpack.c.h.b16 %v449
    %v1563 = vunpack.c.l.b16 %v450
    %v1564 = vunpack.c.h.b16 %v450
    %v1565 = vunpack.c.l.b16 %v451
    %v1566 = vunpack.c.h.b16 %v451
    %v1567 = vunpack.c.l.b16 %v452
    %v1568 = vunpack.c.h.b16 %v452
    %v1569 = vunpack.c.l.b16 %v453
    %v1570 = vunpack.c.h.b16 %v453
    %v1571 = vunpack.c.l.b16 %v454
    %v1572 = vunpack.c.h.b16 %v454
    %v1573 = vunpack.c.l.b16 %v455
    %v1574 = vunpack.c.h.b16 %v455
    %v1575 = vunpack.c.l.b16 %v456
    %v1576 = vunpack.c.h.b16 %v456
    %v1577 = vunpack.c.l.b16 %v457
    %v1578 = vunpack.c.h.b16 %v457
    %v1579 = vunpack.c.l.b16 %v458
    %v1580 = vunpack.c.h.b16 %v458
    %v1581 = vunpack.c.l.b16 %v459
    %v1582 = vunpack.c.h.b16 %v459
    %v1583 = vunpack.c.l.b16 %v460
    %v1584 = vunpack.c.h.b16 %v460
    %v1585 = vunpack.c.l.b16 %v461
    %v1586 = vunpack.c.h.b16 %v461
    %v1587 = vunpack.c.l.b16 %v462
    %v1588 = vunpack.c.h.b16 %v462
    %v1589 = vunpack.c.l.b16 %v463
    %v1590 = vunpack.c.h.b16 %v463
    %v1591 = vunpack.c.l.b16 %v464
    %v1592 = vunpack.c.h.b16 %v464
    %v1593 = vunpack.c.l.b16 %v465
    %v1594 = vunpack.c.h.b16 %v465
    %v1595 = vunpack.c.l.b16 %v466
    %v1596 = vunpack.c.h.b16 %v466
    %v1597 = vunpack.c.l.b16 %v467
    %v1598 = vunpack.c.h.b16 %v467
    %v1599 = vunpack.c.l.b16 %v468
    %v1600 = vunpack.c.h.b16 %v468
    %v1601 = vunpack.c.l.b16 %v469
    %v1602 = vunpack.c.h.b16 %v469
    %v1603 = vunpack.c.l.b16 %v470
    %v1604 = vunpack.c.h.b16 %v470
    %v1605 = vunpack.c.l.b16 %v471
    %v1606 = vunpack.c.h.b16 %v471
    %v1607 = vunpack.c.l.b16 %v472
    %v1608 = vunpack.c.h.b16 %v472
    %v1609 = vunpack.c.l.b16 %v473
    %v1610 = vunpack.c.h.b16 %v473
    %v1611 = vunpack.c.l.b16 %v474
    %v1612 = vunpack.c.h.b16 %v474
    %v1613 = vunpack.c.l.b16 %v475
    %v1614 = vunpack.c.h.b16 %v475
    %v1615 = vunpack.c.l.b16 %v476
    %v1616 = vunpack.c.h.b16 %v476
    %v1617 = vunpack.c.l.b16 %v477
    %v1618 = vunpack.c.h.b16 %v477
    %v1619 = vunpack.c.l.b16 %v478
    %v1620 = vunpack.c.h.b16 %v478
    %v1621 = vunpack.c.l.b16 %v479
    %v1622 = vunpack.c.h.b16 %v479
    %v1623 = vunpack.c.l.b16 %v480
    %v1624 = vunpack.c.h.b16 %v480
    %v1625 = vunpack.c.l.b16 %v481
    %v1626 = vunpack.c.h.b16 %v481
    %v1627 = vunpack.c.l.b16 %v482
    %v1628 = vunpack.c.h.b16 %v482
    %v1629 = vunpack.c.l.b16 %v483
    %v1630 = vunpack.c.h.b16 %v483
    %v1631 = vunpack.c.l.b16 %v484
    %v1632 = vunpack.c.h.b16 %v484
    %v1633 = vunpack.c.l.b16 %v485
    %v1634 = vunpack.c.h.b16 %v485
    %v1635 = vunpack.c.l.b16 %v486
    %v1636 = vunpack.c.h.b16 %v486
    %v1637 = vunpack.c.l.b16 %v487
    %v1638 = vunpack.c.h.b16 %v487
    %v1639 = vunpack.c.l.b16 %v488
    %v1640 = vunpack.c.h.b16 %v488
    %v1641 = vunpack.c.l.b16 %v489
    %v1642 = vunpack.c.h.b16 %v489
    %v1643 = vunpack.c.l.b16 %v490
    %v1644 = vunpack.c.h.b16 %v490
    %v1645 = vunpack.c.l.b16 %v491
    %v1646 = vunpack.c.h.b16 %v491
    %v1647 = vunpack.c.l.b16 %v492
    %v1648 = vunpack.c.h.b16 %v492
    %v1649 = vunpack.c.l.b16 %v493
    %v1650 = vunpack.c.h.b16 %v493
    %v1651 = vunpack.c.l.b16 %v494
    %v1652 = vunpack.c.h.b16 %v494
    %v1653 = vunpack.c.l.b16 %v495
    %v1654 = vunpack.c.h.b16 %v495
    %v1655 = vunpack.c.l.b16 %v496
    %v1656 = vunpack.c.h.b16 %v496
    %v1657 = vunpack.c.l.b16 %v497
    %v1658 = vunpack.c.h.b16 %v497
    %v1659 = vunpack.c.l.b16 %v498
    %v1660 = vunpack.c.h.b16 %v498
    %v1661 = vunpack.c.l.b16 %v499
    %v1662 = vunpack.c.h.b16 %v499
    %v1663 = vunpack.c.l.b16 %v500
    %v1664 = vunpack.c.h.b16 %v500
    %v1665 = vunpack.c.l.b16 %v501
    %v1666 = vunpack.c.h.b16 %v501
    %v1667 = vunpack.c.l.b16 %v502
    %v1668 = vunpack.c.h.b16 %v502
    %v1669 = vunpack.c.l.b16 %v503
    %v1670 = vunpack.c.h.b16 %v503
    %v1671 = vunpack.c.l.b16 %v504
    %v1672 = vunpack.c.h.b16 %v504
    %v1673 = vunpack.c.l.b16 %v505
    %v1674 = vunpack.c.h.b16 %v505
    %v1675 = vunpack.c.l.b16 %v506
    %v1676 = vunpack.c.h.b16 %v506
    %v1677 = vunpack.c.l.b16 %v507
    %v1678 = vunpack.c.h.b16 %v507
    %v1679 = vunpack.c.l.b16 %v508
    %v1680 = vunpack.c.h.b16 %v508
    %v1681 = vunpack.c.l.b16 %v509
    %v1682 = vunpack.c.h.b16 %v509
    %v1683 = vunpack.c.l.b16 %v510
    %v1684 = vunpack.c.h.b16 %v510
    %v1685 = vunpack.c.l.b16 %v511
    %v1686 = vunpack.c.h.b16 %v511
    %v1687 = vunpack.c.l.b16 %v512
    %v1688 = vunpack.c.h.b16 %v512
    %v1689 = vunpack.c.l.b16 %v513
    %v1690 = vunpack.c.h.b16 %v513
    %v1691 = vunpack.c.l.b16 %v514
    %v1692 = vunpack.c.h.b16 %v514
    %v1693 = vunpack.c.l.b16 %v515
    %v1694 = vunpack.c.h.b16 %v515
    %v1695 = vunpack.c.l.b16 %v516
    %v1696 = vunpack.c.h.b16 %v516
    %v1697 = vunpack.c.l.b16 %v517
    %v1698 = vunpack.c.h.b16 %v517
    %v1699 = vunpack.c.l.b16 %v518
    %v1700 = vunpack.c.h.b16 %v518
    %v1701 = vunpack.c.l.b16 %v519
    %v1702 = vunpack.c.h.b16 %v519
    %v1703 = vunpack.c.l.b16 %v520
    %v1704 = vunpack.c.h.b16 %v520
    %v1705 = vunpack.c.l.b16 %v521
    %v1706 = vunpack.c.h.b16 %v521
    %v1707 = vunpack.c.l.b16 %v522
    %v1708 = vunpack.c.h.b16 %v522
    %v1709 = vunpack.c.l.b16 %v523
    %v1710 = vunpack.c.h.b16 %v523
    %v1711 = vunpack.c.l.b16 %v524
    %v1712 = vunpack.c.h.b16 %v524
    %v1713 = vunpack.c.l.b16 %v525
    %v1714 = vunpack.c.h.b16 %v525
    %v1715 = vunpack.c.l.b16 %v526
    %v1716 = vunpack.c.h.b16 %v526
    %v1717 = vunpack.c.l.b16 %v527
    %v1718 = vunpack.c.h.b16 %v527
    %v1719 = vunpack.c.l.b16 %v528
    %v1720 = vunpack.c.h.b16 %v528
    %v1721 = vunpack.c.l.b16 %v529
    %v1722 = vunpack.c.h.b16 %v529
    %v1723 = vunpack.c.l.b16 %v530
    %v1724 = vunpack.c.h.b16 %v530
    %v1725 = vunpack.c.l.b16 %v531
    %v1726 = vunpack.c.h.b16 %v531
    %v1727 = vunpack.c.l.b16 %v532
    %v1728 = vunpack.c.h.b16 %v532
    %v1729 = vunpack.c.l.b16 %v533
    %v1730 = vunpack.c.h.b16 %v533
    %v1731 = vunpack.c.l.b16 %v534
    %v1732 = vunpack.c.h.b16 %v534
    %v1733 = vunpack.c.l.b16 %v535
    %v1734 = vunpack.c.h.b16 %v535
    %v1735 = vunpack.c.l.b16 %v536
    %v1736 = vunpack.c.h.b16 %v536
    %v1737 = vunpack.c.l.b16 %v537
    %v1738 = vunpack.c.h.b16 %v537
    %v1739 = vunpack.c.l.b16 %v538
    %v1740 = vunpack.c.h.b16 %v538
    %v1741 = vunpack.c.l.b16 %v539
    %v1742 = vunpack.c.h.b16 %v539
    %v1743 = vunpack.c.l.b16 %v540
    %v1744 = vunpack.c.h.b16 %v540
    %v1745 = vunpack.c.l.b16 %v541
    %v1746 = vunpack.c.h.b16 %v541
    %v1747 = vunpack.c.l.b16 %v542
    %v1748 = vunpack.c.h.b16 %v542
    %v1749 = vunpack.c.l.b16 %v543
    %v1750 = vunpack.c.h.b16 %v543
    %v1751 = vunpack.c.l.b16 %v544
    %v1752 = vunpack.c.h.b16 %v544
    %v1753 = vunpack.c.l.b16 %v545
    %v1754 = vunpack.c.h.b16 %v545
    %v1755 = vunpack.c.l.b16 %v546
    %v1756 = vunpack.c.h.b16 %v546
    %v1757 = vunpack.c.l.b16 %v547
    %v1758 = vunpack.c.h.b16 %v547
    %v1759 = vunpack.c.l.b16 %v548
    %v1760 = vunpack.c.h.b16 %v548
    %v1761 = vunpack.c.l.b16 %v549
    %v1762 = vunpack.c.h.b16 %v549
    %v1763 = vunpack.c.l.b16 %v550
    %v1764 = vunpack.c.h.b16 %v550
    %v1765 = vunpack.c.l.b16 %v551
    %v1766 = vunpack.c.h.b16 %v551
    %v1767 = vunpack.c.l.b16 %v552
    %v1768 = vunpack.c.h.b16 %v552
    %v1769 = vunpack.c.l.b16 %v553
    %v1770 = vunpack.c.h.b16 %v553
    %v1771 = vunpack.c.l.b16 %v554
    %v1772 = vunpack.c.h.b16 %v554
    %v1773 = vunpack.c.l.b16 %v555
    %v1774 = vunpack.c.h.b16 %v555
    %v1775 = vunpack.c.l.b16 %v556
    %v1776 = vunpack.c.h.b16 %v556
    %v1777 = vunpack.c.l.b16 %v557
    %v1778 = vunpack.c.h.b16 %v557
    %v1779 = vunpack.c.l.b16 %v558
    %v1780 = vunpack.c.h.b16 %v558
    %v1781 = vpack.c.b16 %v985, %v981
    %v1782 = vpack.c.b16 %v986, %v982
    %v1783 = vpack.c.b16 %v987, %v983
    %v1784 = vpack.c.b16 %v988, %v984
    %v1785 = vpack.c.b16 %v993, %v989
    %v1786 = vpack.c.b16 %v994, %v990
    %v1787 = vpack.c.b16 %v995, %v991
    %v1788 = vpack.c.b16 %v996, %v992
    %v1789 = vpack.c.b16 %v1001, %v997
    %v1790 = vpack.c.b16 %v1002, %v998
    %v1791 = vpack.c.b16 %v1003, %v999
    %v1792 = vpack.c.b16 %v1004, %v1000
    %v1793 = vpack.c.b16 %v1009, %v1005
    %v1794 = vpack.c.b16 %v1010, %v1006
    %v1795 = vpack.c.b16 %v1011, %v1007
    %v1796 = vpack.c.b16 %v1012, %v1008
    %v1797 = vpack.c.b16 %v1017, %v1013
    %v1798 = vpack.c.b16 %v1018, %v1014
    %v1799 = vpack.c.b16 %v1019, %v1015
    %v1800 = vpack.c.b16 %v1020, %v1016
    %v1801 = vpack.c.b16 %v1025, %v1021
    %v1802 = vpack.c.b16 %v1026, %v1022
    %v1803 = vpack.c.b16 %v1027, %v1023
    %v1804 = vpack.c.b16 %v1028, %v1024
    %v1805 = vpack.c.b16 %v1033, %v1029
    %v1806 = vpack.c.b16 %v1034, %v1030
    %v1807 = vpack.c.b16 %v1035, %v1031
    %v1808 = vpack.c.b16 %v1036, %v1032
    %v1809 = vpack.c.b16 %v1041, %v1037
    %v1810 = vpack.c.b16 %v1042, %v1038
    %v1811 = vpack.c.b16 %v1043, %v1039
    %v1812 = vpack.c.b16 %v1044, %v1040
    %v1813 = vpack.c.b16 %v1049, %v1045
    %v1814 = vpack.c.b16 %v1050, %v1046
    %v1815 = vpack.c.b16 %v1051, %v1047
    %v1816 = vpack.c.b16 %v1052, %v1048
    %v1817 = vpack.c.b16 %v1057, %v1053
    %v1818 = vpack.c.b16 %v1058, %v1054
    %v1819 = vpack.c.b16 %v1059, %v1055
    %v1820 = vpack.c.b16 %v1060, %v1056
    %v1821 = vpack.c.b16 %v1065, %v1061
    %v1822 = vpack.c.b16 %v1066, %v1062
    %v1823 = vpack.c.b16 %v1067, %v1063
    %v1824 = vpack.c.b16 %v1068, %v1064
    %v1825 = vpack.c.b16 %v1073, %v1069
    %v1826 = vpack.c.b16 %v1074, %v1070
    %v1827 = vpack.c.b16 %v1075, %v1071
    %v1828 = vpack.c.b16 %v1076, %v1072
    %v1829 = vpack.c.b16 %v1081, %v1077
    %v1830 = vpack.c.b16 %v1082, %v1078
    %v1831 = vpack.c.b16 %v1083, %v1079
    %v1832 = vpack.c.b16 %v1084, %v1080
    %v1833 = vpack.c.b16 %v1089, %v1085
    %v1834 = vpack.c.b16 %v1090, %v1086
    %v1835 = vpack.c.b16 %v1091, %v1087
    %v1836 = vpack.c.b16 %v1092, %v1088
    %v1837 = vpack.c.b16 %v1097, %v1093
    %v1838 = vpack.c.b16 %v1098, %v1094
    %v1839 = vpack.c.b16 %v1099, %v1095
    %v1840 = vpack.c.b16 %v1100, %v1096
    %v1841 = vpack.c.b16 %v1105, %v1101
    %v1842 = vpack.c.b16 %v1106, %v1102
    %v1843 = vpack.c.b16 %v1107, %v1103
    %v1844 = vpack.c.b16 %v1108, %v1104
    %v1845 = vpack.c.b16 %v1113, %v1109
    %v1846 = vpack.c.b16 %v1114, %v1110
    %v1847 = vpack.c.b16 %v1115, %v1111
    %v1848 = vpack.c.b16 %v1116, %v1112
    %v1849 = vpack.c.b16 %v1121, %v1117
    %v1850 = vpack.c.b16 %v1122, %v1118
    %v1851 = vpack.c.b16 %v1123, %v1119
    %v1852 = vpack.c.b16 %v1124, %v1120
    %v1853 = vpack.c.b16 %v1129, %v1125
    %v1854 = vpack.c.b16 %v1130, %v1126
    %v1855 = vpack.c.b16 %v1131, %v1127
    %v1856 = vpack.c.b16 %v1132, %v1128
    %v1857 = vpack.c.b16 %v1137, %v1133
    %v1858 = vpack.c.b16 %v1138, %v1134
    %v1859 = vpack.c.b16 %v1139, %v1135
    %v1860 = vpack.c.b16 %v1140, %v1136
    %v1861 = vpack.c.b16 %v1145, %v1141
    %v1862 = vpack.c.b16 %v1146, %v1142
    %v1863 = vpack.c.b16 %v1147, %v1143
    %v1864 = vpack.c.b16 %v1148, %v1144
    %v1865 = vpack.c.b16 %v1153, %v1149
    %v1866 = vpack.c.b16 %v1154, %v1150
    %v1867 = vpack.c.b16 %v1155, %v1151
    %v1868 = vpack.c.b16 %v1156, %v1152
    %v1869 = vpack.c.b16 %v1161, %v1157
    %v1870 = vpack.c.b16 %v1162, %v1158
    %v1871 = vpack.c.b16 %v1163, %v1159
    %v1872 = vpack.c.b16 %v1164, %v1160
    %v1873 = vpack.c.b16 %v1169, %v1165
    %v1874 = vpack.c.b16 %v1170, %v1166
    %v1875 = vpack.c.b16 %v1171, %v1167
    %v1876 = vpack.c.b16 %v1172, %v1168
    %v1877 = vpack.c.b16 %v1177, %v1173
    %v1878 = vpack.c.b16 %v1178, %v1174
    %v1879 = vpack.c.b16 %v1179, %v1175
    %v1880 = vpack.c.b16 %v1180, %v1176
    %v1881 = vpack.c.b16 %v1185, %v1181
    %v1882 = vpack.c.b16 %v1186, %v1182
    %v1883 = vpack.c.b16 %v1187, %v1183
    %v1884 = vpack.c.b16 %v1188, %v1184
    %v1885 = vpack.c.b16 %v1193, %v1189
    %v1886 = vpack.c.b16 %v1194, %v1190
    %v1887 = vpack.c.b16 %v1195, %v1191
    %v1888 = vpack.c.b16 %v1196, %v1192
    %v1889 = vpack.c.b16 %v1201, %v1197
    %v1890 = vpack.c.b16 %v1202, %v1198
    %v1891 = vpack.c.b16 %v1203, %v1199
    %v1892 = vpack.c.b16 %v1204, %v1200
    %v1893 = vpack.c.b16 %v1209, %v1205
    %v1894 = vpack.c.b16 %v1210, %v1206
    %v1895 = vpack.c.b16 %v1211, %v1207
    %v1896 = vpack.c.b16 %v1212, %v1208
    %v1897 = vpack.c.b16 %v1217, %v1213
    %v1898 = vpack.c.b16 %v1218, %v1214
    %v1899 = vpack.c.b16 %v1219, %v1215
    %v1900 = vpack.c.b16 %v1220, %v1216
    %v1901 = vpack.c.b16 %v1225, %v1221
    %v1902 = vpack.c.b16 %v1226, %v1222
    %v1903 = vpack.c.b16 %v1227, %v1223
    %v1904 = vpack.c.b16 %v1228, %v1224
    %v1905 = vpack.c.b16 %v1233, %v1229
    %v1906 = vpack.c.b16 %v1234, %v1230
    %v1907 = vpack.c.b16 %v1235, %v1231
    %v1908 = vpack.c.b16 %v1236, %v1232
    %v1909 = vpack.c.b16 %v1241, %v1237
    %v1910 = vpack.c.b16 %v1242, %v1238
    %v1911 = vpack.c.b16 %v1243, %v1239
    %v1912 = vpack.c.b16 %v1244, %v1240
    %v1913 = vpack.c.b16 %v1249, %v1245
    %v1914 = vpack.c.b16 %v1250, %v1246
    %v1915 = vpack.c.b16 %v1251, %v1247
    %v1916 = vpack.c.b16 %v1252, %v1248
    %v1917 = vpack.c.b16 %v1257, %v1253
    %v1918 = vpack.c.b16 %v1258, %v1254
    %v1919 = vpack.c.b16 %v1259, %v1255
    %v1920 = vpack.c.b16 %v1260, %v1256
    %v1921 = vpack.c.b16 %v1265, %v1261
    %v1922 = vpack.c.b16 %v1266, %v1262
    %v1923 = vpack.c.b16 %v1267, %v1263
    %v1924 = vpack.c.b16 %v1268, %v1264
    %v1925 = vpack.c.b16 %v1273, %v1269
    %v1926 = vpack.c.b16 %v1274, %v1270
    %v1927 = vpack.c.b16 %v1275, %v1271
    %v1928 = vpack.c.b16 %v1276, %v1272
    %v1929 = vpack.c.b16 %v1281, %v1277
    %v1930 = vpack.c.b16 %v1282, %v1278
    %v1931 = vpack.c.b16 %v1283, %v1279
    %v1932 = vpack.c.b16 %v1284, %v1280
    %v1933 = vpack.c.b16 %v1289, %v1285
    %v1934 = vpack.c.b16 %v1290, %v1286
    %v1935 = vpack.c.b16 %v1291, %v1287
    %v1936 = vpack.c.b16 %v1292, %v1288
    %v1937 = vpack.c.b16 %v1297, %v1293
    %v1938 = vpack.c.b16 %v1298, %v1294
    %v1939 = vpack.c.b16 %v1299, %v1295
    %v1940 = vpack.c.b16 %v1300, %v1296
    %v1941 = vpack.c.b16 %v1305, %v1301
    %v1942 = vpack.c.b16 %v1306, %v1302
    %v1943 = vpack.c.b16 %v1307, %v1303
    %v1944 = vpack.c.b16 %v1308, %v1304
    %v1945 = vpack.c.b16 %v1313, %v1309
    %v1946 = vpack.c.b16 %v1314, %v1310
    %v1947 = vpack.c.b16 %v1315, %v1311
    %v1948 = vpack.c.b16 %v1316, %v1312
    %v1949 = vpack.c.b16 %v1321, %v1317
    %v1950 = vpack.c.b16 %v1322, %v1318
    %v1951 = vpack.c.b16 %v1323, %v1319
    %v1952 = vpack.c.b16 %v1324, %v1320
    %v1953 = vpack.c.b16 %v1329, %v1325
    %v1954 = vpack.c.b16 %v1330, %v1326
    %v1955 = vpack.c.b16 %v1331, %v1327
    %v1956 = vpack.c.b16 %v1332, %v1328
    %v1957 = vpack.c.b16 %v1337, %v1333
    %v1958 = vpack.c.b16 %v1338, %v1334
    %v1959 = vpack.c.b16 %v1339, %v1335
    %v1960 = vpack.c.b16 %v1340, %v1336
    %v1961 = vpack.c.b16 %v1345, %v1341
    %v1962 = vpack.c.b16 %v1346, %v1342
    %v1963 = vpack.c.b16 %v1347, %v1343
    %v1964 = vpack.c.b16 %v1348, %v1344
    %v1965 = vpack.c.b16 %v1353, %v1349
    %v1966 = vpack.c.b16 %v1354, %v1350
    %v1967 = vpack.c.b16 %v1355, %v1351
    %v1968 = vpack.c.b16 %v1356, %v1352
    %v1969 = vpack.c.b16 %v1361, %v1357
    %v1970 = vpack.c.b16 %v1362, %v1358
    %v1971 = vpack.c.b16 %v1363, %v1359
    %v1972 = vpack.c.b16 %v1364, %v1360
    %v1973 = vpack.c.b16 %v1369, %v1365
    %v1974 = vpack.c.b16 %v1370, %v1366
    %v1975 = vpack.c.b16 %v1371, %v1367
    %v1976 = vpack.c.b16 %v1372, %v1368
    %v1977 = vpack.c.b16 %v1377, %v1373
    %v1978 = vpack.c.b16 %v1378, %v1374
    %v1979 = vpack.c.b16 %v1379, %v1375
    %v1980 = vpack.c.b16 %v1380, %v1376
    %v1981 = vpack.c.b16 %v1385, %v1381
    %v1982 = vpack.c.b16 %v1386, %v1382
    %v1983 = vpack.c.b16 %v1387, %v1383
    %v1984 = vpack.c.b16 %v1388, %v1384
    %v1985 = vpack.c.b16 %v1393, %v1389
    %v1986 = vpack.c.b16 %v1394, %v1390
    %v1987 = vpack.c.b16 %v1395, %v1391
    %v1988 = vpack.c.b16 %v1396, %v1392
    %v1989 = vpack.c.b16 %v1401, %v1397
    %v1990 = vpack.c.b16 %v1402, %v1398
    %v1991 = vpack.c.b16 %v1403, %v1399
    %v1992 = vpack.c.b16 %v1404, %v1400
    %v1993 = vpack.c.b16 %v1409, %v1405
    %v1994 = vpack.c.b16 %v1410, %v1406
    %v1995 = vpack.c.b16 %v1411, %v1407
    %v1996 = vpack.c.b16 %v1412, %v1408
    %v1997 = vpack.c.b16 %v1417, %v1413
    %v1998 = vpack.c.b16 %v1418, %v1414
    %v1999 = vpack.c.b16 %v1419, %v1415
    %v2000 = vpack.c.b16 %v1420, %v1416
    %v2001 = vpack.c.b16 %v1425, %v1421
    %v2002 = vpack.c.b16 %v1426, %v1422
    %v2003 = vpack.c.b16 %v1427, %v1423
    %v2004 = vpack.c.b16 %v1428, %v1424
    %v2005 = vpack.c.b16 %v1433, %v1429
    %v2006 = vpack.c.b16 %v1434, %v1430
    %v2007 = vpack.c.b16 %v1435, %v1431
    %v2008 = vpack.c.b16 %v1436, %v1432
    %v2009 = vpack.c.b16 %v1441, %v1437
    %v2010 = vpack.c.b16 %v1442, %v1438
    %v2011 = vpack.c.b16 %v1443, %v1439
    %v2012 = vpack.c.b16 %v1444, %v1440
    %v2013 = vpack.c.b16 %v1449, %v1445
    %v2014 = vpack.c.b16 %v1450, %v1446
    %v2015 = vpack.c.b16 %v1451, %v1447
    %v2016 = vpack.c.b16 %v1452, %v1448
    %v2017 = vpack.c.b16 %v1457, %v1453
    %v2018 = vpack.c.b16 %v1458, %v1454
    %v2019 = vpack.c.b16 %v1459, %v1455
    %v2020 = vpack.c.b16 %v1460, %v1456
    %v2021 = vpack.c.b16 %v1465, %v1461
    %v2022 = vpack.c.b16 %v1466, %v1462
    %v2023 = vpack.c.b16 %v1467, %v1463
    %v2024 = vpack.c.b16 %v1468, %v1464
    %v2025 = vpack.c.b16 %v1473, %v1469
    %v2026 = vpack.c.b16 %v1474, %v1470
    %v2027 = vpack.c.b16 %v1475, %v1471
    %v2028 = vpack.c.b16 %v1476, %v1472
    %v2029 = vpack.c.b16 %v1481, %v1477
    %v2030 = vpack.c.b16 %v1482, %v1478
    %v2031 = vpack.c.b16 %v1483, %v1479
    %v2032 = vpack.c.b16 %v1484, %v1480
    %v2033 = vpack.c.b16 %v1489, %v1485
    %v2034 = vpack.c.b16 %v1490, %v1486
    %v2035 = vpack.c.b16 %v1491, %v1487
    %v2036 = vpack.c.b16 %v1492, %v1488
    %v2037 = vpack.c.b16 %v1497, %v1493
    %v2038 = vpack.c.b16 %v1498, %v1494
    %v2039 = vpack.c.b16 %v1499, %v1495
    %v2040 = vpack.c.b16 %v1500, %v1496
    %v2041 = vpack.c.b16 %v1505, %v1501
    %v2042 = vpack.c.b16 %v1506, %v1502
    %v2043 = vpack.c.b16 %v1507, %v1503
    %v2044 = vpack.c.b16 %v1508, %v1504
    %v2045 = vpack.c.b16 %v1513, %v1509
    %v2046 = vpack.c.b16 %v1514, %v1510
    %v2047 = vpack.c.b16 %v1515, %v1511
    %v2048 = vpack.c.b16 %v1516, %v1512
    %v2049 = vpack.c.b16 %v1521, %v1517
    %v2050 = vpack.c.b16 %v1522, %v1518
    %v2051 = vpack.c.b16 %v1523, %v1519
    %v2052 = vpack.c.b16 %v1524, %v1520
    %v2053 = vpack.c.b16 %v1529, %v1525
    %v2054 = vpack.c.b16 %v1530, %v1526
    %v2055 = vpack.c.b16 %v1531, %v1527
    %v2056 = vpack.c.b16 %v1532, %v1528
    %v2057 = vpack.c.b16 %v1537, %v1533
    %v2058 = vpack.c.b16 %v1538, %v1534
    %v2059 = vpack.c.b16 %v1539, %v1535
    %v2060 = vpack.c.b16 %v1540, %v1536
    %v2061 = vpack.c.b16 %v1545, %v1541
    %v2062 = vpack.c.b16 %v1546, %v1542
    %v2063 = vpack.c.b16 %v1547, %v1543
    %v2064 = vpack.c.b16 %v1548, %v1544
    %v2065 = vpack.c.b16 %v1553, %v1549
    %v2066 = vpack.c.b16 %v1554, %v1550
    %v2067 = vpack.c.b16 %v1555, %v1551
    %v2068 = vpack.c.b16 %v1556, %v1552
    %v2069 = vpack.c.b16 %v1561, %v1557
    %v2070 = vpack.c.b16 %v1562, %v1558
    %v2071 = vpack.c.b16 %v1563, %v1559
    %v2072 = vpack.c.b16 %v1564, %v1560
    %v2073 = vpack.c.b16 %v1569, %v1565
    %v2074 = vpack.c.b16 %v1570, %v1566
    %v2075 = vpack.c.b16 %v1571, %v1567
    %v2076 = vpack.c.b16 %v1572, %v1568
    %v2077 = vpack.c.b16 %v1577, %v1573
    %v2078 = vpack.c.b16 %v1578, %v1574
    %v2079 = vpack.c.b16 %v1579, %v1575
    %v2080 = vpack.c.b16 %v1580, %v1576
    %v2081 = vpack.c.b16 %v1585, %v1581
    %v2082 = vpack.c.b16 %v1586, %v1582
    %v2083 = vpack.c.b16 %v1587, %v1583
    %v2084 = vpack.c.b16 %v1588, %v1584
    %v2085 = vpack.c.b16 %v1593, %v1589
    %v2086 = vpack.c.b16 %v1594, %v1590
    %v2087 = vpack.c.b16 %v1595, %v1591
    %v2088 = vpack.c.b16 %v1596, %v1592
    %v2089 = vpack.c.b16 %v1601, %v1597
    %v2090 = vpack.c.b16 %v1602, %v1598
    %v2091 = vpack.c.b16 %v1603, %v1599
    %v2092 = vpack.c.b16 %v1604, %v1600
    %v2093 = vpack.c.b16 %v1609, %v1605
    %v2094 = vpack.c.b16 %v1610, %v1606
    %v2095 = vpack.c.b16 %v1611, %v1607
    %v2096 = vpack.c.b16 %v1612, %v1608
    %v2097 = vpack.c.b16 %v1617, %v1613
    %v2098 = vpack.c.b16 %v1618, %v1614
    %v2099 = vpack.c.b16 %v1619, %v1615
    %v2100 = vpack.c.b16 %v1620, %v1616
    %v2101 = vpack.c.b16 %v1625, %v1621
    %v2102 = vpack.c.b16 %v1626, %v1622
    %v2103 = vpack.c.b16 %v1627, %v1623
    %v2104 = vpack.c.b16 %v1628, %v1624
    %v2105 = vpack.c.b16 %v1633, %v1629
    %v2106 = vpack.c.b16 %v1634, %v1630
    %v2107 = vpack.c.b16 %v1635, %v1631
    %v2108 = vpack.c.b16 %v1636, %v1632
    %v2109 = vpack.c.b16 %v1641, %v1637
    %v2110 = vpack.c.b16 %v1642, %v1638
    %v2111 = vpack.c.b16 %v1643, %v1639
    %v2112 = vpack.c.b16 %v1644, %v1640
    %v2113 = vpack.c.b16 %v1649, %v1645
    %v2114 = vpack.c.b16 %v1650, %v1646
    %v2115 = vpack.c.b16 %v1651, %v1647
    %v2116 = vpack.c.b16 %v1652, %v1648
    %v2117 = vpack.c.b16 %v1657, %v1653
    %v2118 = vpack.c.b16 %v1658, %v1654
    %v2119 = vpack.c.b16 %v1659, %v1655
    %v2120 = vpack.c.b16 %v1660, %v1656
    %v2121 = vpack.c.b16 %v1665, %v1661
    %v2122 = vpack.c.b16 %v1666, %v1662
    %v2123 = vpack.c.b16 %v1667, %v1663
    %v2124 = vpack.c.b16 %v1668, %v1664
    %v2125 = vpack.c.b16 %v1673, %v1669
    %v2126 = vpack.c.b16 %v1674, %v1670
    %v2127 = vpack.c.b16 %v1675, %v1671
    %v2128 = vpack.c.b16 %v1676, %v1672
    %v2129 = vpack.c.b16 %v1681, %v1677
    %v2130 = vpack.c.b16 %v1682, %v1678
    %v2131 = vpack.c.b16 %v1683, %v1679
    %v2132 = vpack.c.b16 %v1684, %v1680
    %v2133 = vpack.c.b16 %v1689, %v1685
    %v2134 = vpack.c.b16 %v1690, %v1686
    %v2135 = vpack.c.b16 %v1691, %v1687
    %v2136 = vpack.c.b16 %v1692, %v1688
    %v2137 = vpack.c.b16 %v1697, %v1693
    %v2138 = vpack.c.b16 %v1698, %v1694
    %v2139 = vpack.c.b16 %v1699, %v1695
    %v2140 = vpack.c.b16 %v1700, %v1696
    %v2141 = vpack.c.b16 %v1705, %v1701
    %v2142 = vpack.c.b16 %v1706, %v1702
    %v2143 = vpack.c.b16 %v1707, %v1703
    %v2144 = vpack.c.b16 %v1708, %v1704
    %v2145 = vpack.c.b16 %v1713, %v1709
    %v2146 = vpack.c.b16 %v1714, %v1710
    %v2147 = vpack.c.b16 %v1715, %v1711
    %v2148 = vpack.c.b16 %v1716, %v1712
    %v2149 = vpack.c.b16 %v1721, %v1717
    %v2150 = vpack.c.b16 %v1722, %v1718
    %v2151 = vpack.c.b16 %v1723, %v1719
    %v2152 = vpack.c.b16 %v1724, %v1720
    %v2153 = vpack.c.b16 %v1729, %v1725
    %v2154 = vpack.c.b16 %v1730, %v1726
    %v2155 = vpack.c.b16 %v1731, %v1727
    %v2156 = vpack.c.b16 %v1732, %v1728
    %v2157 = vpack.c.b16 %v1737, %v1733
    %v2158 = vpack.c.b16 %v1738, %v1734
    %v2159 = vpack.c.b16 %v1739, %v1735
    %v2160 = vpack.c.b16 %v1740, %v1736
    %v2161 = vpack.c.b16 %v1745, %v1741
    %v2162 = vpack.c.b16 %v1746, %v1742
    %v2163 = vpack.c.b16 %v1747, %v1743
    %v2164 = vpack.c.b16 %v1748, %v1744
    %v2165 = vpack.c.b16 %v1753, %v1749
    %v2166 = vpack.c.b16 %v1754, %v1750
    %v2167 = vpack.c.b16 %v1755, %v1751
    %v2168 = vpack.c.b16 %v1756, %v1752
    %v2169 = vpack.c.b16 %v1761, %v1757
    %v2170 = vpack.c.b16 %v1762, %v1758
    %v2171 = vpack.c.b16 %v1763, %v1759
    %v2172 = vpack.c.b16 %v1764, %v1760
    %v2173 = vpack.c.b16 %v1769, %v1765
    %v2174 = vpack.c.b16 %v1770, %v1766
    %v2175 = vpack.c.b16 %v1771, %v1767
    %v2176 = vpack.c.b16 %v1772, %v1768
    %v2177 = vpack.c.b16 %v1777, %v1773
    %v2178 = vpack.c.b16 %v1778, %v1774
    %v2179 = vpack.c.b16 %v1779, %v1775
    %v2180 = vpack.c.b16 %v1780, %v1776
    %vm2581 = vcmask 523264
    %v2583 = vsel %vm2581, %v158, 0
    %2585 = vmatprep.subr.bf16.mxu0 %v1782
    %2586 = vmatpush1.bf16.msra.mxu0 %v1781
    %2587 = vmatprep.subr.bf16.mxu0 %v1786
    %2588 = vmatpush1.bf16.msra.mxu0 %v1785
    %2589 = vmatprep.subr.bf16.mxu0 %v1790
    %2590 = vmatpush1.bf16.msra.mxu0 %v1789
    %2591 = vmatprep.subr.bf16.mxu0 %v1794
    %2592 = vmatpush1.bf16.msra.mxu0 %v1793
    %2593 = vmatprep.subr.bf16.mxu0 %v1798
    %2594 = vmatpush1.bf16.msra.mxu0 %v1797
    %2595 = vmatprep.subr.bf16.mxu0 %v1802
    %2596 = vmatpush1.bf16.msra.mxu0 %v1801
    %2597 = vmatprep.subr.bf16.mxu0 %v1806
    %2598 = vmatpush1.bf16.msra.mxu0 %v1805
    %2599 = vmatprep.subr.bf16.mxu0 %v1810
    %2600 = vmatpush1.bf16.msra.mxu0 %v1809
    %2601 = vmatprep.subr.bf16.mxu0 %v1814
    %2602 = vmatpush1.bf16.msra.mxu0 %v1813
    %2603 = vmatprep.subr.bf16.mxu0 %v1818
    %2604 = vmatpush1.bf16.msra.mxu0 %v1817
    %2605 = vmatprep.subr.bf16.mxu0 %v1822
    %2606 = vmatpush1.bf16.msra.mxu0 %v1821
    %2607 = vmatprep.subr.bf16.mxu0 %v1826
    %2608 = vmatpush1.bf16.msra.mxu0 %v1825
    %2609 = vmatprep.subr.bf16.mxu0 %v1830
    %2610 = vmatpush1.bf16.msra.mxu0 %v1829
    %2611 = vmatprep.subr.bf16.mxu0 %v1834
    %2612 = vmatpush1.bf16.msra.mxu0 %v1833
    %2613 = vmatprep.subr.bf16.mxu0 %v1838
    %2614 = vmatpush1.bf16.msra.mxu0 %v1837
    %2615 = vmatprep.subr.bf16.mxu0 %v1842
    %2616 = vmatpush1.bf16.msra.mxu0 %v1841
    %2617 = vmatprep.mubr.bf16.mxu0 %v147
    %2618 = vmatmul.mubr.bf16.gmra.mrb[0].mxu0 %v146
    %v2619 = vpop.f32.mrb[0].mxu0
    %v2620 = vadd.f32 %v564, %v2619
    %v2621 = vpop.f32.mrb[0].mxu0
    %v2622 = vadd.f32 %v568, %v2621
    %v2623 = vpop.f32.mrb[0].mxu0
    %v2624 = vadd.f32 %v564, %v2623
    %v2625 = vpop.f32.mrb[0].mxu0
    %v2626 = vadd.f32 %v568, %v2625
    %2627 = vdwg.mxu0
    %2628 = vmatprep.subr.bf16.mxu0 %v1846
    %2629 = vmatpush1.bf16.msra.mxu0 %v1845
    %2630 = vmatprep.subr.bf16.mxu0 %v1850
    %2631 = vmatpush1.bf16.msra.mxu0 %v1849
    %2632 = vmatprep.subr.bf16.mxu0 %v1854
    %2633 = vmatpush1.bf16.msra.mxu0 %v1853
    %2634 = vmatprep.subr.bf16.mxu0 %v1858
    %2635 = vmatpush1.bf16.msra.mxu0 %v1857
    %2636 = vmatprep.subr.bf16.mxu0 %v1862
    %2637 = vmatpush1.bf16.msra.mxu0 %v1861
    %2638 = vmatprep.subr.bf16.mxu0 %v1866
    %2639 = vmatpush1.bf16.msra.mxu0 %v1865
    %2640 = vmatprep.subr.bf16.mxu0 %v1870
    %2641 = vmatpush1.bf16.msra.mxu0 %v1869
    %2642 = vmatprep.subr.bf16.mxu0 %v1874
    %2643 = vmatpush1.bf16.msra.mxu0 %v1873
    %2644 = vmatprep.subr.bf16.mxu0 %v1878
    %2645 = vmatpush1.bf16.msra.mxu0 %v1877
    %2646 = vmatprep.subr.bf16.mxu0 %v1882
    %2647 = vmatpush1.bf16.msra.mxu0 %v1881
    %2648 = vmatprep.subr.bf16.mxu0 %v1886
    %2649 = vmatpush1.bf16.msra.mxu0 %v1885
    %2650 = vmatprep.subr.bf16.mxu0 %v1890
    %2651 = vmatpush1.bf16.msra.mxu0 %v1889
    %2652 = vmatprep.subr.bf16.mxu0 %v1894
    %2653 = vmatpush1.bf16.msra.mxu0 %v1893
    %2654 = vmatprep.subr.bf16.mxu0 %v1898
    %2655 = vmatpush1.bf16.msra.mxu0 %v1897
    %2656 = vmatprep.subr.bf16.mxu0 %v1902
    %2657 = vmatpush1.bf16.msra.mxu0 %v1901
    %2658 = vmatprep.subr.bf16.mxu0 %v1906
    %2659 = vmatpush1.bf16.msra.mxu0 %v1905
    %2660 = vmatprep.mubr.bf16.mxu0 %v149
    %2661 = vmatmul.mubr.bf16.gmra.mrb[0].mxu0 %v148
    %v2662 = vpop.f32.mrb[0].mxu0
    %v2663 = vadd.f32 %v2620, %v2662
    %v2664 = vpop.f32.mrb[0].mxu0
    %v2665 = vadd.f32 %v2622, %v2664
    %v2666 = vpop.f32.mrb[0].mxu0
    %v2667 = vadd.f32 %v2624, %v2666
    %v2668 = vpop.f32.mrb[0].mxu0
    %v2669 = vadd.f32 %v2626, %v2668
    %2670 = vdwg.mxu0
    %2671 = vmatprep.subr.bf16.mxu0 %v1910
    %2672 = vmatpush1.bf16.msra.mxu0 %v1909
    %2673 = vmatprep.subr.bf16.mxu0 %v1914
    %2674 = vmatpush1.bf16.msra.mxu0 %v1913
    %2675 = vmatprep.subr.bf16.mxu0 %v1918
    %2676 = vmatpush1.bf16.msra.mxu0 %v1917
    %2677 = vmatprep.subr.bf16.mxu0 %v1922
    %2678 = vmatpush1.bf16.msra.mxu0 %v1921
    %2679 = vmatprep.subr.bf16.mxu0 %v1926
    %2680 = vmatpush1.bf16.msra.mxu0 %v1925
    %2681 = vmatprep.subr.bf16.mxu0 %v1930
    %2682 = vmatpush1.bf16.msra.mxu0 %v1929
    %2683 = vmatprep.subr.bf16.mxu0 %v1934
    %2684 = vmatpush1.bf16.msra.mxu0 %v1933
    %2685 = vmatprep.subr.bf16.mxu0 %v1938
    %2686 = vmatpush1.bf16.msra.mxu0 %v1937
    %2687 = vmatprep.subr.bf16.mxu0 %v1942
    %2688 = vmatpush1.bf16.msra.mxu0 %v1941
    %2689 = vmatprep.subr.bf16.mxu0 %v1946
    %2690 = vmatpush1.bf16.msra.mxu0 %v1945
    %2691 = vmatprep.subr.bf16.mxu0 %v1950
    %2692 = vmatpush1.bf16.msra.mxu0 %v1949
    %2693 = vmatprep.subr.bf16.mxu0 %v1954
    %2694 = vmatpush1.bf16.msra.mxu0 %v1953
    %2695 = vmatprep.subr.bf16.mxu0 %v1958
    %2696 = vmatpush1.bf16.msra.mxu0 %v1957
    %2697 = vmatprep.subr.bf16.mxu0 %v1962
    %2698 = vmatpush1.bf16.msra.mxu0 %v1961
    %2699 = vmatprep.subr.bf16.mxu0 %v1966
    %2700 = vmatpush1.bf16.msra.mxu0 %v1965
    %2701 = vmatprep.subr.bf16.mxu0 %v1970
    %2702 = vmatpush1.bf16.msra.mxu0 %v1969
    %2703 = vmatprep.mubr.bf16.mxu0 %v151
    %2704 = vmatmul.mubr.bf16.gmra.mrb[0].mxu0 %v150
    %v2705 = vpop.f32.mrb[0].mxu0
    %v2706 = vadd.f32 %v2663, %v2705
    %v2707 = vpop.f32.mrb[0].mxu0
    %v2708 = vadd.f32 %v2665, %v2707
    %v2709 = vpop.f32.mrb[0].mxu0
    %v2710 = vadd.f32 %v2667, %v2709
    %v2711 = vpop.f32.mrb[0].mxu0
    %v2712 = vadd.f32 %v2669, %v2711
    %2713 = vdwg.mxu0
    %2714 = vmatprep.subr.bf16.mxu0 %v1974
    %2715 = vmatpush1.bf16.msra.mxu0 %v1973
    %2716 = vmatprep.subr.bf16.mxu0 %v1978
    %2717 = vmatpush1.bf16.msra.mxu0 %v1977
    %2718 = vmatprep.subr.bf16.mxu0 %v1982
    %2719 = vmatpush1.bf16.msra.mxu0 %v1981
    %2720 = vmatprep.subr.bf16.mxu0 %v1986
    %2721 = vmatpush1.bf16.msra.mxu0 %v1985
    %2722 = vmatprep.subr.bf16.mxu0 %v1990
    %2723 = vmatpush1.bf16.msra.mxu0 %v1989
    %2724 = vmatprep.subr.bf16.mxu0 %v1994
    %2725 = vmatpush1.bf16.msra.mxu0 %v1993
    %2726 = vmatprep.subr.bf16.mxu0 %v1998
    %2727 = vmatpush1.bf16.msra.mxu0 %v1997
    %2728 = vmatprep.subr.bf16.mxu0 %v2002
    %2729 = vmatpush1.bf16.msra.mxu0 %v2001
    %2730 = vmatprep.subr.bf16.mxu0 %v2006
    %2731 = vmatpush1.bf16.msra.mxu0 %v2005
    %2732 = vmatprep.subr.bf16.mxu0 %v2010
    %2733 = vmatpush1.bf16.msra.mxu0 %v2009
    %2734 = vmatprep.subr.bf16.mxu0 %v2014
    %2735 = vmatpush1.bf16.msra.mxu0 %v2013
    %2736 = vmatprep.subr.bf16.mxu0 %v2018
    %2737 = vmatpush1.bf16.msra.mxu0 %v2017
    %2738 = vmatprep.subr.bf16.mxu0 %v2022
    %2739 = vmatpush1.bf16.msra.mxu0 %v2021
    %2740 = vmatprep.subr.bf16.mxu0 %v2026
    %2741 = vmatpush1.bf16.msra.mxu0 %v2025
    %2742 = vmatprep.subr.bf16.mxu0 %v2030
    %2743 = vmatpush1.bf16.msra.mxu0 %v2029
    %2744 = vmatprep.subr.bf16.mxu0 %v2034
    %2745 = vmatpush1.bf16.msra.mxu0 %v2033
    %2746 = vmatprep.mubr.bf16.mxu0 %v153
    %2747 = vmatmul.mubr.bf16.gmra.mrb[0].mxu0 %v152
    %v2748 = vpop.f32.mrb[0].mxu0
    %v2749 = vadd.f32 %v2706, %v2748
    %v2750 = vpop.f32.mrb[0].mxu0
    %v2751 = vadd.f32 %v2708, %v2750
    %v2752 = vpop.f32.mrb[0].mxu0
    %v2753 = vadd.f32 %v2710, %v2752
    %v2754 = vpop.f32.mrb[0].mxu0
    %v2755 = vadd.f32 %v2712, %v2754
    %2756 = vdwg.mxu0
    %2757 = vmatprep.subr.bf16.mxu0 %v2038
    %2758 = vmatpush1.bf16.msra.mxu0 %v2037
    %2759 = vmatprep.subr.bf16.mxu0 %v2042
    %2760 = vmatpush1.bf16.msra.mxu0 %v2041
    %2761 = vmatprep.subr.bf16.mxu0 %v2046
    %2762 = vmatpush1.bf16.msra.mxu0 %v2045
    %2763 = vmatprep.subr.bf16.mxu0 %v2050
    %2764 = vmatpush1.bf16.msra.mxu0 %v2049
    %2765 = vmatprep.subr.bf16.mxu0 %v2054
    %2766 = vmatpush1.bf16.msra.mxu0 %v2053
    %2767 = vmatprep.subr.bf16.mxu0 %v2058
    %2768 = vmatpush1.bf16.msra.mxu0 %v2057
    %2769 = vmatprep.subr.bf16.mxu0 %v2062
    %2770 = vmatpush1.bf16.msra.mxu0 %v2061
    %2771 = vmatprep.subr.bf16.mxu0 %v2066
    %2772 = vmatpush1.bf16.msra.mxu0 %v2065
    %2773 = vmatprep.subr.bf16.mxu0 %v2070
    %2774 = vmatpush1.bf16.msra.mxu0 %v2069
    %2775 = vmatprep.subr.bf16.mxu0 %v2074
    %2776 = vmatpush1.bf16.msra.mxu0 %v2073
    %2777 = vmatprep.subr.bf16.mxu0 %v2078
    %2778 = vmatpush1.bf16.msra.mxu0 %v2077
    %2779 = vmatprep.subr.bf16.mxu0 %v2082
    %2780 = vmatpush1.bf16.msra.mxu0 %v2081
    %2781 = vmatprep.subr.bf16.mxu0 %v2086
    %2782 = vmatpush1.bf16.msra.mxu0 %v2085
    %2783 = vmatprep.subr.bf16.mxu0 %v2090
    %2784 = vmatpush1.bf16.msra.mxu0 %v2089
    %2785 = vmatprep.subr.bf16.mxu0 %v2094
    %2786 = vmatpush1.bf16.msra.mxu0 %v2093
    %2787 = vmatprep.subr.bf16.mxu0 %v2098
    %2788 = vmatpush1.bf16.msra.mxu0 %v2097
    %2789 = vmatprep.mubr.bf16.mxu0 %v155
    %2790 = vmatmul.mubr.bf16.gmra.mrb[0].mxu0 %v154
    %v2791 = vpop.f32.mrb[0].mxu0
    %v2792 = vadd.f32 %v2749, %v2791
    %v2793 = vpop.f32.mrb[0].mxu0
    %v2794 = vadd.f32 %v2751, %v2793
    %v2795 = vpop.f32.mrb[0].mxu0
    %v2796 = vadd.f32 %v2753, %v2795
    %v2797 = vpop.f32.mrb[0].mxu0
    %v2798 = vadd.f32 %v2755, %v2797
    %2799 = vdwg.mxu0
    %2800 = vmatprep.subr.bf16.mxu0 %v2102
    %2801 = vmatpush1.bf16.msra.mxu0 %v2101
    %2802 = vmatprep.subr.bf16.mxu0 %v2106
    %2803 = vmatpush1.bf16.msra.mxu0 %v2105
    %2804 = vmatprep.subr.bf16.mxu0 %v2110
    %2805 = vmatpush1.bf16.msra.mxu0 %v2109
    %2806 = vmatprep.subr.bf16.mxu0 %v2114
    %2807 = vmatpush1.bf16.msra.mxu0 %v2113
    %2808 = vmatprep.subr.bf16.mxu0 %v2118
    %2809 = vmatpush1.bf16.msra.mxu0 %v2117
    %2810 = vmatprep.subr.bf16.mxu0 %v2122
    %2811 = vmatpush1.bf16.msra.mxu0 %v2121
    %2812 = vmatprep.subr.bf16.mxu0 %v2126
    %2813 = vmatpush1.bf16.msra.mxu0 %v2125
    %2814 = vmatprep.subr.bf16.mxu0 %v2130
    %2815 = vmatpush1.bf16.msra.mxu0 %v2129
    %2816 = vmatprep.subr.bf16.mxu0 %v2134
    %2817 = vmatpush1.bf16.msra.mxu0 %v2133
    %2818 = vmatprep.subr.bf16.mxu0 %v2138
    %2819 = vmatpush1.bf16.msra.mxu0 %v2137
    %2820 = vmatprep.subr.bf16.mxu0 %v2142
    %2821 = vmatpush1.bf16.msra.mxu0 %v2141
    %2822 = vmatprep.subr.bf16.mxu0 %v2146
    %2823 = vmatpush1.bf16.msra.mxu0 %v2145
    %2824 = vmatprep.subr.bf16.mxu0 %v2150
    %2825 = vmatpush1.bf16.msra.mxu0 %v2149
    %2826 = vmatprep.subr.bf16.mxu0 %v2154
    %2827 = vmatpush1.bf16.msra.mxu0 %v2153
    %2828 = vmatprep.subr.bf16.mxu0 %v2158
    %2829 = vmatpush1.bf16.msra.mxu0 %v2157
    %2830 = vmatprep.subr.bf16.mxu0 %v2162
    %2831 = vmatpush1.bf16.msra.mxu0 %v2161
    %2832 = vmatprep.mubr.bf16.mxu0 %v157
    %2833 = vmatmul.mubr.bf16.gmra.mrb[0].mxu0 %v156
    %v2834 = vpop.f32.mrb[0].mxu0
    %v2835 = vadd.f32 %v2792, %v2834
    %v2836 = vpop.f32.mrb[0].mxu0
    %v2837 = vadd.f32 %v2794, %v2836
    %v2838 = vpop.f32.mrb[0].mxu0
    %v2839 = vadd.f32 %v2796, %v2838
    %v2840 = vpop.f32.mrb[0].mxu0
    %v2841 = vadd.f32 %v2798, %v2840
    %2842 = vdwg.mxu0
    %2843 = vmatprep.subr.bf16.mxu0 %v2166
    %2844 = vmatpush1.bf16.msra.mxu0 %v2165
    %2845 = vmatprep.subr.bf16.mxu0 %v2170
    %2846 = vmatpush1.bf16.msra.mxu0 %v2169
    %2847 = vmatprep.subr.bf16.mxu0 %v2174
    %2848 = vmatpush1.bf16.msra.mxu0 %v2173
    %2849 = vmatprep.subr.bf16.mxu0 %v2178
    %2850 = vmatpush1.bf16.msra.mxu0 %v2177
    %2851 = vmatprep.subr.bf16.mxu0 0
    %2852 = vmatpush1.bf16.msra.mxu0 0
    %2853 = vmatprep.subr.bf16.mxu0 0
    %2854 = vmatpush1.bf16.msra.mxu0 0
    %2855 = vmatprep.subr.bf16.mxu0 0
    %2856 = vmatpush1.bf16.msra.mxu0 0
    %2857 = vmatprep.subr.bf16.mxu0 0
    %2858 = vmatpush1.bf16.msra.mxu0 0
    %2859 = vmatprep.subr.bf16.mxu0 0
    %2860 = vmatpush1.bf16.msra.mxu0 0
    %2861 = vmatprep.subr.bf16.mxu0 0
    %2862 = vmatpush1.bf16.msra.mxu0 0
    %2863 = vmatprep.subr.bf16.mxu0 0
    %2864 = vmatpush1.bf16.msra.mxu0 0
    %2865 = vmatprep.subr.bf16.mxu0 0
    %2866 = vmatpush1.bf16.msra.mxu0 0
    %2867 = vmatprep.subr.bf16.mxu0 0
    %2868 = vmatpush1.bf16.msra.mxu0 0
    %2869 = vmatprep.subr.bf16.mxu0 0
    %2870 = vmatpush1.bf16.msra.mxu0 0
    %2871 = vmatprep.subr.bf16.mxu0 0
    %2872 = vmatpush1.bf16.msra.mxu0 0
    %2873 = vmatprep.subr.bf16.mxu0 0
    %2874 = vmatpush1.bf16.msra.mxu0 0
    %2875 = vmatprep.mubr.bf16.mxu0 0
    %2876 = vmatmul.mubr.bf16.gmra.mrb[0].mxu0 %v2583
    %v2877 = vpop.f32.mrb[0].mxu0
    %v2878 = vadd.f32 %v2835, %v2877
    %v2879 = vpop.f32.mrb[0].mxu0
    %v2880 = vadd.f32 %v2837, %v2879
    %v2881 = vpop.f32.mrb[0].mxu0
    %v2882 = vadd.f32 %v2839, %v2881
    %v2883 = vpop.f32.mrb[0].mxu0
    %v2884 = vadd.f32 %v2841, %v2883
    %2885 = vdwg.mxu0
    %2886 = vmatprep.subr.bf16.mxu0 %v1784
    %2887 = vmatpush1.bf16.msra.mxu0 %v1783
    %2888 = vmatprep.subr.bf16.mxu0 %v1788
    %2889 = vmatpush1.bf16.msra.mxu0 %v1787
    %2890 = vmatprep.subr.bf16.mxu0 %v1792
    %2891 = vmatpush1.bf16.msra.mxu0 %v1791
    %2892 = vmatprep.subr.bf16.mxu0 %v1796
    %2893 = vmatpush1.bf16.msra.mxu0 %v1795
    %2894 = vmatprep.subr.bf16.mxu0 %v1800
    %2895 = vmatpush1.bf16.msra.mxu0 %v1799
    %2896 = vmatprep.subr.bf16.mxu0 %v1804
    %2897 = vmatpush1.bf16.msra.mxu0 %v1803
    %2898 = vmatprep.subr.bf16.mxu0 %v1808
    %2899 = vmatpush1.bf16.msra.mxu0 %v1807
    %2900 = vmatprep.subr.bf16.mxu0 %v1812
    %2901 = vmatpush1.bf16.msra.mxu0 %v1811
    %2902 = vmatprep.subr.bf16.mxu0 %v1816
    %2903 = vmatpush1.bf16.msra.mxu0 %v1815
    %2904 = vmatprep.subr.bf16.mxu0 %v1820
    %2905 = vmatpush1.bf16.msra.mxu0 %v1819
    %2906 = vmatprep.subr.bf16.mxu0 %v1824
    %2907 = vmatpush1.bf16.msra.mxu0 %v1823
    %2908 = vmatprep.subr.bf16.mxu0 %v1828
    %2909 = vmatpush1.bf16.msra.mxu0 %v1827
    %2910 = vmatprep.subr.bf16.mxu0 %v1832
    %2911 = vmatpush1.bf16.msra.mxu0 %v1831
    %2912 = vmatprep.subr.bf16.mxu0 %v1836
    %2913 = vmatpush1.bf16.msra.mxu0 %v1835
    %2914 = vmatprep.subr.bf16.mxu0 %v1840
    %2915 = vmatpush1.bf16.msra.mxu0 %v1839
    %2916 = vmatprep.subr.bf16.mxu0 %v1844
    %2917 = vmatpush1.bf16.msra.mxu0 %v1843
    %2918 = vmatprep.mubr.bf16.mxu0 %v147
    %2919 = vmatmul.mubr.bf16.gmra.mrb[0].mxu0 %v146
    %v2920 = vpop.f32.mrb[0].mxu0
    %v2921 = vadd.f32 %v572, %v2920
    %v2922 = vpop.f32.mrb[0].mxu0
    %v2923 = vadd.f32 %v576, %v2922
    %v2924 = vpop.f32.mrb[0].mxu0
    %v2925 = vadd.f32 %v572, %v2924
    %v2926 = vpop.f32.mrb[0].mxu0
    %v2927 = vadd.f32 %v576, %v2926
    %2928 = vdwg.mxu0
    %2929 = vmatprep.subr.bf16.mxu0 %v1848
    %2930 = vmatpush1.bf16.msra.mxu0 %v1847
    %2931 = vmatprep.subr.bf16.mxu0 %v1852
    %2932 = vmatpush1.bf16.msra.mxu0 %v1851
    %2933 = vmatprep.subr.bf16.mxu0 %v1856
    %2934 = vmatpush1.bf16.msra.mxu0 %v1855
    %2935 = vmatprep.subr.bf16.mxu0 %v1860
    %2936 = vmatpush1.bf16.msra.mxu0 %v1859
    %2937 = vmatprep.subr.bf16.mxu0 %v1864
    %2938 = vmatpush1.bf16.msra.mxu0 %v1863
    %2939 = vmatprep.subr.bf16.mxu0 %v1868
    %2940 = vmatpush1.bf16.msra.mxu0 %v1867
    %2941 = vmatprep.subr.bf16.mxu0 %v1872
    %2942 = vmatpush1.bf16.msra.mxu0 %v1871
    %2943 = vmatprep.subr.bf16.mxu0 %v1876
    %2944 = vmatpush1.bf16.msra.mxu0 %v1875
    %2945 = vmatprep.subr.bf16.mxu0 %v1880
    %2946 = vmatpush1.bf16.msra.mxu0 %v1879
    %2947 = vmatprep.subr.bf16.mxu0 %v1884
    %2948 = vmatpush1.bf16.msra.mxu0 %v1883
    %2949 = vmatprep.subr.bf16.mxu0 %v1888
    %2950 = vmatpush1.bf16.msra.mxu0 %v1887
    %2951 = vmatprep.subr.bf16.mxu0 %v1892
    %2952 = vmatpush1.bf16.msra.mxu0 %v1891
    %2953 = vmatprep.subr.bf16.mxu0 %v1896
    %2954 = vmatpush1.bf16.msra.mxu0 %v1895
    %2955 = vmatprep.subr.bf16.mxu0 %v1900
    %2956 = vmatpush1.bf16.msra.mxu0 %v1899
    %2957 = vmatprep.subr.bf16.mxu0 %v1904
    %2958 = vmatpush1.bf16.msra.mxu0 %v1903
    %2959 = vmatprep.subr.bf16.mxu0 %v1908
    %2960 = vmatpush1.bf16.msra.mxu0 %v1907
    %2961 = vmatprep.mubr.bf16.mxu0 %v149
    %2962 = vmatmul.mubr.bf16.gmra.mrb[0].mxu0 %v148
    %v2963 = vpop.f32.mrb[0].mxu0
    %v2964 = vadd.f32 %v2921, %v2963
    %v2965 = vpop.f32.mrb[0].mxu0
    %v2966 = vadd.f32 %v2923, %v2965
    %v2967 = vpop.f32.mrb[0].mxu0
    %v2968 = vadd.f32 %v2925, %v2967
    %v2969 = vpop.f32.mrb[0].mxu0
    %v2970 = vadd.f32 %v2927, %v2969
    %2971 = vdwg.mxu0
    %2972 = vmatprep.subr.bf16.mxu0 %v1912
    %2973 = vmatpush1.bf16.msra.mxu0 %v1911
    %2974 = vmatprep.subr.bf16.mxu0 %v1916
    %2975 = vmatpush1.bf16.msra.mxu0 %v1915
    %2976 = vmatprep.subr.bf16.mxu0 %v1920
    %2977 = vmatpush1.bf16.msra.mxu0 %v1919
    %2978 = vmatprep.subr.bf16.mxu0 %v1924
    %2979 = vmatpush1.bf16.msra.mxu0 %v1923
    %2980 = vmatprep.subr.bf16.mxu0 %v1928
    %2981 = vmatpush1.bf16.msra.mxu0 %v1927
    %2982 = vmatprep.subr.bf16.mxu0 %v1932
    %2983 = vmatpush1.bf16.msra.mxu0 %v1931
    %2984 = vmatprep.subr.bf16.mxu0 %v1936
    %2985 = vmatpush1.bf16.msra.mxu0 %v1935
    %2986 = vmatprep.subr.bf16.mxu0 %v1940
    %2987 = vmatpush1.bf16.msra.mxu0 %v1939
    %2988 = vmatprep.subr.bf16.mxu0 %v1944
    %2989 = vmatpush1.bf16.msra.mxu0 %v1943
    %2990 = vmatprep.subr.bf16.mxu0 %v1948
    %2991 = vmatpush1.bf16.msra.mxu0 %v1947
    %2992 = vmatprep.subr.bf16.mxu0 %v1952
    %2993 = vmatpush1.bf16.msra.mxu0 %v1951
    %2994 = vmatprep.subr.bf16.mxu0 %v1956
    %2995 = vmatpush1.bf16.msra.mxu0 %v1955
    %2996 = vmatprep.subr.bf16.mxu0 %v1960
    %2997 = vmatpush1.bf16.msra.mxu0 %v1959
    %2998 = vmatprep.subr.bf16.mxu0 %v1964
    %2999 = vmatpush1.bf16.msra.mxu0 %v1963
    %3000 = vmatprep.subr.bf16.mxu0 %v1968
    %3001 = vmatpush1.bf16.msra.mxu0 %v1967
    %3002 = vmatprep.subr.bf16.mxu0 %v1972
    %3003 = vmatpush1.bf16.msra.mxu0 %v1971
    %3004 = vmatprep.mubr.bf16.mxu0 %v151
    %3005 = vmatmul.mubr.bf16.gmra.mrb[0].mxu0 %v150
    %v3006 = vpop.f32.mrb[0].mxu0
    %v3007 = vadd.f32 %v2964, %v3006
    %v3008 = vpop.f32.mrb[0].mxu0
    %v3009 = vadd.f32 %v2966, %v3008
    %v3010 = vpop.f32.mrb[0].mxu0
    %v3011 = vadd.f32 %v2968, %v3010
    %v3012 = vpop.f32.mrb[0].mxu0
    %v3013 = vadd.f32 %v2970, %v3012
    %3014 = vdwg.mxu0
    %3015 = vmatprep.subr.bf16.mxu0 %v1976
    %3016 = vmatpush1.bf16.msra.mxu0 %v1975
    %3017 = vmatprep.subr.bf16.mxu0 %v1980
    %3018 = vmatpush1.bf16.msra.mxu0 %v1979
    %3019 = vmatprep.subr.bf16.mxu0 %v1984
    %3020 = vmatpush1.bf16.msra.mxu0 %v1983
    %3021 = vmatprep.subr.bf16.mxu0 %v1988
    %3022 = vmatpush1.bf16.msra.mxu0 %v1987
    %3023 = vmatprep.subr.bf16.mxu0 %v1992
    %3024 = vmatpush1.bf16.msra.mxu0 %v1991
    %3025 = vmatprep.subr.bf16.mxu0 %v1996
    %3026 = vmatpush1.bf16.msra.mxu0 %v1995
    %3027 = vmatprep.subr.bf16.mxu0 %v2000
    %3028 = vmatpush1.bf16.msra.mxu0 %v1999
    %3029 = vmatprep.subr.bf16.mxu0 %v2004
    %3030 = vmatpush1.bf16.msra.mxu0 %v2003
    %3031 = vmatprep.subr.bf16.mxu0 %v2008
    %3032 = vmatpush1.bf16.msra.mxu0 %v2007
    %3033 = vmatprep.subr.bf16.mxu0 %v2012
    %3034 = vmatpush1.bf16.msra.mxu0 %v2011
    %3035 = vmatprep.subr.bf16.mxu0 %v2016
    %3036 = vmatpush1.bf16.msra.mxu0 %v2015
    %3037 = vmatprep.subr.bf16.mxu0 %v2020
    %3038 = vmatpush1.bf16.msra.mxu0 %v2019
    %3039 = vmatprep.subr.bf16.mxu0 %v2024
    %3040 = vmatpush1.bf16.msra.mxu0 %v2023
    %3041 = vmatprep.subr.bf16.mxu0 %v2028
    %3042 = vmatpush1.bf16.msra.mxu0 %v2027
    %3043 = vmatprep.subr.bf16.mxu0 %v2032
    %3044 = vmatpush1.bf16.msra.mxu0 %v2031
    %3045 = vmatprep.subr.bf16.mxu0 %v2036
    %3046 = vmatpush1.bf16.msra.mxu0 %v2035
    %3047 = vmatprep.mubr.bf16.mxu0 %v153
    %3048 = vmatmul.mubr.bf16.gmra.mrb[0].mxu0 %v152
    %v3049 = vpop.f32.mrb[0].mxu0
    %v3050 = vadd.f32 %v3007, %v3049
    %v3051 = vpop.f32.mrb[0].mxu0
    %v3052 = vadd.f32 %v3009, %v3051
    %v3053 = vpop.f32.mrb[0].mxu0
    %v3054 = vadd.f32 %v3011, %v3053
    %v3055 = vpop.f32.mrb[0].mxu0
    %v3056 = vadd.f32 %v3013, %v3055
    %3057 = vdwg.mxu0
    %3058 = vmatprep.subr.bf16.mxu0 %v2040
    %3059 = vmatpush1.bf16.msra.mxu0 %v2039
    %3060 = vmatprep.subr.bf16.mxu0 %v2044
    %3061 = vmatpush1.bf16.msra.mxu0 %v2043
    %3062 = vmatprep.subr.bf16.mxu0 %v2048
    %3063 = vmatpush1.bf16.msra.mxu0 %v2047
    %3064 = vmatprep.subr.bf16.mxu0 %v2052
    %3065 = vmatpush1.bf16.msra.mxu0 %v2051
    %3066 = vmatprep.subr.bf16.mxu0 %v2056
    %3067 = vmatpush1.bf16.msra.mxu0 %v2055
    %3068 = vmatprep.subr.bf16.mxu0 %v2060
    %3069 = vmatpush1.bf16.msra.mxu0 %v2059
    %3070 = vmatprep.subr.bf16.mxu0 %v2064
    %3071 = vmatpush1.bf16.msra.mxu0 %v2063
    %3072 = vmatprep.subr.bf16.mxu0 %v2068
    %3073 = vmatpush1.bf16.msra.mxu0 %v2067
    %3074 = vmatprep.subr.bf16.mxu0 %v2072
    %3075 = vmatpush1.bf16.msra.mxu0 %v2071
    %3076 = vmatprep.subr.bf16.mxu0 %v2076
    %3077 = vmatpush1.bf16.msra.mxu0 %v2075
    %3078 = vmatprep.subr.bf16.mxu0 %v2080
    %3079 = vmatpush1.bf16.msra.mxu0 %v2079
    %3080 = vmatprep.subr.bf16.mxu0 %v2084
    %3081 = vmatpush1.bf16.msra.mxu0 %v2083
    %3082 = vmatprep.subr.bf16.mxu0 %v2088
    %3083 = vmatpush1.bf16.msra.mxu0 %v2087
    %3084 = vmatprep.subr.bf16.mxu0 %v2092
    %3085 = vmatpush1.bf16.msra.mxu0 %v2091
    %3086 = vmatprep.subr.bf16.mxu0 %v2096
    %3087 = vmatpush1.bf16.msra.mxu0 %v2095
    %3088 = vmatprep.subr.bf16.mxu0 %v2100
    %3089 = vmatpush1.bf16.msra.mxu0 %v2099
    %3090 = vmatprep.mubr.bf16.mxu0 %v155
    %3091 = vmatmul.mubr.bf16.gmra.mrb[0].mxu0 %v154
    %v3092 = vpop.f32.mrb[0].mxu0
    %v3093 = vadd.f32 %v3050, %v3092
    %v3094 = vpop.f32.mrb[0].mxu0
    %v3095 = vadd.f32 %v3052, %v3094
    %v3096 = vpop.f32.mrb[0].mxu0
    %v3097 = vadd.f32 %v3054, %v3096
    %v3098 = vpop.f32.mrb[0].mxu0
    %v3099 = vadd.f32 %v3056, %v3098
    %3100 = vdwg.mxu0
    %3101 = vmatprep.subr.bf16.mxu0 %v2104
    %3102 = vmatpush1.bf16.msra.mxu0 %v2103
    %3103 = vmatprep.subr.bf16.mxu0 %v2108
    %3104 = vmatpush1.bf16.msra.mxu0 %v2107
    %3105 = vmatprep.subr.bf16.mxu0 %v2112
    %3106 = vmatpush1.bf16.msra.mxu0 %v2111
    %3107 = vmatprep.subr.bf16.mxu0 %v2116
    %3108 = vmatpush1.bf16.msra.mxu0 %v2115
    %3109 = vmatprep.subr.bf16.mxu0 %v2120
    %3110 = vmatpush1.bf16.msra.mxu0 %v2119
    %3111 = vmatprep.subr.bf16.mxu0 %v2124
    %3112 = vmatpush1.bf16.msra.mxu0 %v2123
    %3113 = vmatprep.subr.bf16.mxu0 %v2128
    %3114 = vmatpush1.bf16.msra.mxu0 %v2127
    %3115 = vmatprep.subr.bf16.mxu0 %v2132
    %3116 = vmatpush1.bf16.msra.mxu0 %v2131
    %3117 = vmatprep.subr.bf16.mxu0 %v2136
    %3118 = vmatpush1.bf16.msra.mxu0 %v2135
    %3119 = vmatprep.subr.bf16.mxu0 %v2140
    %3120 = vmatpush1.bf16.msra.mxu0 %v2139
    %3121 = vmatprep.subr.bf16.mxu0 %v2144
    %3122 = vmatpush1.bf16.msra.mxu0 %v2143
    %3123 = vmatprep.subr.bf16.mxu0 %v2148
    %3124 = vmatpush1.bf16.msra.mxu0 %v2147
    %3125 = vmatprep.subr.bf16.mxu0 %v2152
    %3126 = vmatpush1.bf16.msra.mxu0 %v2151
    %3127 = vmatprep.subr.bf16.mxu0 %v2156
    %3128 = vmatpush1.bf16.msra.mxu0 %v2155
    %3129 = vmatprep.subr.bf16.mxu0 %v2160
    %3130 = vmatpush1.bf16.msra.mxu0 %v2159
    %3131 = vmatprep.subr.bf16.mxu0 %v2164
    %3132 = vmatpush1.bf16.msra.mxu0 %v2163
    %3133 = vmatprep.mubr.bf16.mxu0 %v157
    %3134 = vmatmul.mubr.bf16.gmra.mrb[0].mxu0 %v156
    %v3135 = vpop.f32.mrb[0].mxu0
    %v3136 = vadd.f32 %v3093, %v3135
    %v3137 = vpop.f32.mrb[0].mxu0
    %v3138 = vadd.f32 %v3095, %v3137
    %v3139 = vpop.f32.mrb[0].mxu0
    %v3140 = vadd.f32 %v3097, %v3139
    %v3141 = vpop.f32.mrb[0].mxu0
    %v3142 = vadd.f32 %v3099, %v3141
    %3143 = vdwg.mxu0
    %3144 = vmatprep.subr.bf16.mxu0 %v2168
    %3145 = vmatpush1.bf16.msra.mxu0 %v2167
    %3146 = vmatprep.subr.bf16.mxu0 %v2172
    %3147 = vmatpush1.bf16.msra.mxu0 %v2171
    %3148 = vmatprep.subr.bf16.mxu0 %v2176
    %3149 = vmatpush1.bf16.msra.mxu0 %v2175
    %3150 = vmatprep.subr.bf16.mxu0 %v2180
    %3151 = vmatpush1.bf16.msra.mxu0 %v2179
    %3152 = vmatprep.subr.bf16.mxu0 0
    %3153 = vmatpush1.bf16.msra.mxu0 0
    %3154 = vmatprep.subr.bf16.mxu0 0
    %3155 = vmatpush1.bf16.msra.mxu0 0
    %3156 = vmatprep.subr.bf16.mxu0 0
    %3157 = vmatpush1.bf16.msra.mxu0 0
    %3158 = vmatprep.subr.bf16.mxu0 0
    %3159 = vmatpush1.bf16.msra.mxu0 0
    %3160 = vmatprep.subr.bf16.mxu0 0
    %3161 = vmatpush1.bf16.msra.mxu0 0
    %3162 = vmatprep.subr.bf16.mxu0 0
    %3163 = vmatpush1.bf16.msra.mxu0 0
    %3164 = vmatprep.subr.bf16.mxu0 0
    %3165 = vmatpush1.bf16.msra.mxu0 0
    %3166 = vmatprep.subr.bf16.mxu0 0
    %3167 = vmatpush1.bf16.msra.mxu0 0
    %3168 = vmatprep.subr.bf16.mxu0 0
    %3169 = vmatpush1.bf16.msra.mxu0 0
    %3170 = vmatprep.subr.bf16.mxu0 0
    %3171 = vmatpush1.bf16.msra.mxu0 0
    %3172 = vmatprep.subr.bf16.mxu0 0
    %3173 = vmatpush1.bf16.msra.mxu0 0
    %3174 = vmatprep.subr.bf16.mxu0 0
    %3175 = vmatpush1.bf16.msra.mxu0 0
    %3176 = vmatprep.mubr.bf16.mxu0 0
    %3177 = vmatmul.mubr.bf16.gmra.mrb[0].mxu0 %v2583
    %v3178 = vpop.f32.mrb[0].mxu0
    %v3179 = vadd.f32 %v3136, %v3178
    %v3180 = vpop.f32.mrb[0].mxu0
    %v3181 = vadd.f32 %v3138, %v3180
    %v3182 = vpop.f32.mrb[0].mxu0
    %v3183 = vadd.f32 %v3140, %v3182
    %v3184 = vpop.f32.mrb[0].mxu0
    %v3185 = vadd.f32 %v3142, %v3184
    %3186 = vdwg.mxu0
    %v3187 = vmax.f32 %v2878, 0.0
    %v3188 = vmax.f32 %v2880, 0.0
    %v3189 = vmax.f32 %v3179, 0.0
    %v3190 = vmax.f32 %v3181, 0.0
    %v3191 = vmax.f32 %v2882, 0.0
    %v3192 = vmax.f32 %v2884, 0.0
    %v3193 = vmax.f32 %v3183, 0.0
    %v3194 = vmax.f32 %v3185, 0.0
    %v3195 = vpack.c.bf16 %v3191, %v3187
    %v3196 = vpack.c.bf16 %v3192, %v3188
    %v3197 = vpack.c.bf16 %v3193, %v3189
    %v3198 = vpack.c.bf16 %v3194, %v3190
    %v3199 = vld [vmem:[#allocation6] sm:$0xff]
    %v3200 = vld [vmem:[#allocation6 + $0x8] sm:$0xff]
    %v3201 = vld [vmem:[#allocation6 + $0x10] sm:$0xff]
    %v3202 = vld [vmem:[#allocation6 + $0x18] sm:$0xff]
    %v3203 = vld [vmem:[#allocation6 + $0x20] sm:$0xff]
    %v3204 = vld [vmem:[#allocation6 + $0x28] sm:$0xff]
    %v3205 = vld [vmem:[#allocation6 + $0x30] sm:$0xff]
    %v3206 = vld [vmem:[#allocation6 + $0x38] sm:$0xff]
    %v3207 = vld [vmem:[#allocation6 + $0x40] sm:$0xff]
    %v3208 = vld [vmem:[#allocation6 + $0x48] sm:$0xff]
    %v3209 = vld [vmem:[#allocation6 + $0x50] sm:$0xff]
    %v3210 = vld [vmem:[#allocation6 + $0x58] sm:$0xff]
    %v3211 = vld [vmem:[#allocation6 + $0x60] sm:$0xff]
    %v3212 = vld [vmem:[#allocation6 + $0x68] sm:$0xff]
    %v3213 = vld [vmem:[#allocation6 + $0x70] sm:$0xff]
    %v3214 = vld [vmem:[#allocation6 + $0x78] sm:$0xff]
    %v3215 = vld [vmem:[#allocation6 + $0x80] sm:$0xff]
    %v3216 = vld [vmem:[#allocation6 + $0x88] sm:$0xff]
    %v3217 = vld [vmem:[#allocation6 + $0x90] sm:$0xff]
    %v3218 = vld [vmem:[#allocation6 + $0x98] sm:$0xff]
    %v3219 = vld [vmem:[#allocation6 + $0xa0] sm:$0xff]
    %v3220 = vld [vmem:[#allocation6 + $0xa8] sm:$0xff]
    %v3221 = vld [vmem:[#allocation6 + $0xb0] sm:$0xff]
    %v3222 = vld [vmem:[#allocation6 + $0xb8] sm:$0xff]
    %v3223 = vld [vmem:[#allocation6 + $0xc0] sm:$0xff]
    %v3224 = vld [vmem:[#allocation6 + $0xc8] sm:$0xff]
    %v3225 = vld [vmem:[#allocation6 + $0xd0] sm:$0xff]
    %v3226 = vld [vmem:[#allocation6 + $0xd8] sm:$0xff]
    %v3227 = vld [vmem:[#allocation6 + $0xe0] sm:$0xff]
    %v3228 = vld [vmem:[#allocation6 + $0xe8] sm:$0xff]
    %v3229 = vld [vmem:[#allocation6 + $0xf0] sm:$0xff]
    %v3230 = vld [vmem:[#allocation6 + $0xf8] sm:$0xff]
    %v3231 = vld [vmem:[#allocation6 + $0x100] sm:$0xff]
    %v3232 = vld [vmem:[#allocation6 + $0x108] sm:$0xff]
    %v3233 = vld [vmem:[#allocation6 + $0x110] sm:$0xff]
    %v3234 = vld [vmem:[#allocation6 + $0x118] sm:$0xff]
    %v3235 = vld [vmem:[#allocation6 + $0x120] sm:$0xff]
    %v3236 = vld [vmem:[#allocation6 + $0x128] sm:$0xff]
    %v3237 = vld [vmem:[#allocation6 + $0x130] sm:$0xff]
    %v3238 = vld [vmem:[#allocation6 + $0x138] sm:$0xff]
    %v3239 = vld [vmem:[#allocation6 + $0x140] sm:$0xff]
    %v3240 = vld [vmem:[#allocation6 + $0x148] sm:$0xff]
    %v3241 = vld [vmem:[#allocation6 + $0x150] sm:$0xff]
    %v3242 = vld [vmem:[#allocation6 + $0x158] sm:$0xff]
    %v3243 = vld [vmem:[#allocation6 + $0x160] sm:$0xff]
    %v3244 = vld [vmem:[#allocation6 + $0x168] sm:$0xff]
    %v3245 = vld [vmem:[#allocation6 + $0x170] sm:$0xff]
    %v3246 = vld [vmem:[#allocation6 + $0x178] sm:$0xff]
    %v3247 = vld [vmem:[#allocation6 + $0x180] sm:$0xff]
    %v3248 = vld [vmem:[#allocation6 + $0x188] sm:$0xff]
    %v3249 = vld [vmem:[#allocation6 + $0x190] sm:$0xff]
    %v3250 = vld [vmem:[#allocation6 + $0x198] sm:$0xff]
    %v3251 = vld [vmem:[#allocation6 + $0x1a0] sm:$0xff]
    %v3252 = vld [vmem:[#allocation6 + $0x1a8] sm:$0xff]
    %v3253 = vld [vmem:[#allocation6 + $0x1b0] sm:$0xff]
    %v3254 = vld [vmem:[#allocation6 + $0x1b8] sm:$0xff]
    %v3255 = vld [vmem:[#allocation6 + $0x1c0] sm:$0xff]
    %v3256 = vld [vmem:[#allocation6 + $0x1c8] sm:$0xff]
    %v3257 = vld [vmem:[#allocation6 + $0x1d0] sm:$0xff]
    %v3258 = vld [vmem:[#allocation6 + $0x1d8] sm:$0xff]
    %v3259 = vld [vmem:[#allocation6 + $0x1e0] sm:$0xff]
    %v3260 = vld [vmem:[#allocation6 + $0x1e8] sm:$0xff]
    %v3261 = vld [vmem:[#allocation6 + $0x1f0] sm:$0xff]
    %v3262 = vld [vmem:[#allocation6 + $0x1f8] sm:$0xff]
    %v3263 = vld [vmem:[#allocation7] sm:$0x3]
    %v3265 = vlaneseq
    %v3266 = vshrl.u32 %v3265, 7
    %v3267 = vsub.s32 0, %v3266
    %v3268 = vrot.slane %v3263, %v3267
    %v3269 = vlaneseq
    %v3270 = vshrl.u32 %v3269, 7
    %v3271 = vsub.s32 1, %v3270
    %v3272 = vrot.slane %v3263, %v3271
    %v3339 = vunpack.c.l.b16 %v3199
    %v3340 = vunpack.c.h.b16 %v3199
    %v3341 = vunpack.c.l.b16 %v3200
    %v3342 = vunpack.c.h.b16 %v3200
    %v3343 = vunpack.c.l.b16 %v3201
    %v3344 = vunpack.c.h.b16 %v3201
    %v3345 = vunpack.c.l.b16 %v3202
    %v3346 = vunpack.c.h.b16 %v3202
    %v3347 = vunpack.c.l.b16 %v3203
    %v3348 = vunpack.c.h.b16 %v3203
    %v3349 = vunpack.c.l.b16 %v3204
    %v3350 = vunpack.c.h.b16 %v3204
    %v3351 = vunpack.c.l.b16 %v3205
    %v3352 = vunpack.c.h.b16 %v3205
    %v3353 = vunpack.c.l.b16 %v3206
    %v3354 = vunpack.c.h.b16 %v3206
    %v3355 = vunpack.c.l.b16 %v3207
    %v3356 = vunpack.c.h.b16 %v3207
    %v3357 = vunpack.c.l.b16 %v3208
    %v3358 = vunpack.c.h.b16 %v3208
    %v3359 = vunpack.c.l.b16 %v3209
    %v3360 = vunpack.c.h.b16 %v3209
    %v3361 = vunpack.c.l.b16 %v3210
    %v3362 = vunpack.c.h.b16 %v3210
    %v3363 = vunpack.c.l.b16 %v3211
    %v3364 = vunpack.c.h.b16 %v3211
    %v3365 = vunpack.c.l.b16 %v3212
    %v3366 = vunpack.c.h.b16 %v3212
    %v3367 = vunpack.c.l.b16 %v3213
    %v3368 = vunpack.c.h.b16 %v3213
    %v3369 = vunpack.c.l.b16 %v3214
    %v3370 = vunpack.c.h.b16 %v3214
    %v3371 = vunpack.c.l.b16 %v3215
    %v3372 = vunpack.c.h.b16 %v3215
    %v3373 = vunpack.c.l.b16 %v3216
    %v3374 = vunpack.c.h.b16 %v3216
    %v3375 = vunpack.c.l.b16 %v3217
    %v3376 = vunpack.c.h.b16 %v3217
    %v3377 = vunpack.c.l.b16 %v3218
    %v3378 = vunpack.c.h.b16 %v3218
    %v3379 = vunpack.c.l.b16 %v3219
    %v3380 = vunpack.c.h.b16 %v3219
    %v3381 = vunpack.c.l.b16 %v3220
    %v3382 = vunpack.c.h.b16 %v3220
    %v3383 = vunpack.c.l.b16 %v3221
    %v3384 = vunpack.c.h.b16 %v3221
    %v3385 = vunpack.c.l.b16 %v3222
    %v3386 = vunpack.c.h.b16 %v3222
    %v3387 = vunpack.c.l.b16 %v3223
    %v3388 = vunpack.c.h.b16 %v3223
    %v3389 = vunpack.c.l.b16 %v3224
    %v3390 = vunpack.c.h.b16 %v3224
    %v3391 = vunpack.c.l.b16 %v3225
    %v3392 = vunpack.c.h.b16 %v3225
    %v3393 = vunpack.c.l.b16 %v3226
    %v3394 = vunpack.c.h.b16 %v3226
    %v3395 = vunpack.c.l.b16 %v3227
    %v3396 = vunpack.c.h.b16 %v3227
    %v3397 = vunpack.c.l.b16 %v3228
    %v3398 = vunpack.c.h.b16 %v3228
    %v3399 = vunpack.c.l.b16 %v3229
    %v3400 = vunpack.c.h.b16 %v3229
    %v3401 = vunpack.c.l.b16 %v3230
    %v3402 = vunpack.c.h.b16 %v3230
    %v3403 = vunpack.c.l.b16 %v3231
    %v3404 = vunpack.c.h.b16 %v3231
    %v3405 = vunpack.c.l.b16 %v3232
    %v3406 = vunpack.c.h.b16 %v3232
    %v3407 = vunpack.c.l.b16 %v3233
    %v3408 = vunpack.c.h.b16 %v3233
    %v3409 = vunpack.c.l.b16 %v3234
    %v3410 = vunpack.c.h.b16 %v3234
    %v3411 = vunpack.c.l.b16 %v3235
    %v3412 = vunpack.c.h.b16 %v3235
    %v3413 = vunpack.c.l.b16 %v3236
    %v3414 = vunpack.c.h.b16 %v3236
    %v3415 = vunpack.c.l.b16 %v3237
    %v3416 = vunpack.c.h.b16 %v3237
    %v3417 = vunpack.c.l.b16 %v3238
    %v3418 = vunpack.c.h.b16 %v3238
    %v3419 = vunpack.c.l.b16 %v3239
    %v3420 = vunpack.c.h.b16 %v3239
    %v3421 = vunpack.c.l.b16 %v3240
    %v3422 = vunpack.c.h.b16 %v3240
    %v3423 = vunpack.c.l.b16 %v3241
    %v3424 = vunpack.c.h.b16 %v3241
    %v3425 = vunpack.c.l.b16 %v3242
    %v3426 = vunpack.c.h.b16 %v3242
    %v3427 = vunpack.c.l.b16 %v3243
    %v3428 = vunpack.c.h.b16 %v3243
    %v3429 = vunpack.c.l.b16 %v3244
    %v3430 = vunpack.c.h.b16 %v3244
    %v3431 = vunpack.c.l.b16 %v3245
    %v3432 = vunpack.c.h.b16 %v3245
    %v3433 = vunpack.c.l.b16 %v3246
    %v3434 = vunpack.c.h.b16 %v3246
    %v3435 = vunpack.c.l.b16 %v3247
    %v3436 = vunpack.c.h.b16 %v3247
    %v3437 = vunpack.c.l.b16 %v3248
    %v3438 = vunpack.c.h.b16 %v3248
    %v3439 = vunpack.c.l.b16 %v3249
    %v3440 = vunpack.c.h.b16 %v3249
    %v3441 = vunpack.c.l.b16 %v3250
    %v3442 = vunpack.c.h.b16 %v3250
    %v3443 = vunpack.c.l.b16 %v3251
    %v3444 = vunpack.c.h.b16 %v3251
    %v3445 = vunpack.c.l.b16 %v3252
    %v3446 = vunpack.c.h.b16 %v3252
    %v3447 = vunpack.c.l.b16 %v3253
    %v3448 = vunpack.c.h.b16 %v3253
    %v3449 = vunpack.c.l.b16 %v3254
    %v3450 = vunpack.c.h.b16 %v3254
    %v3451 = vunpack.c.l.b16 %v3255
    %v3452 = vunpack.c.h.b16 %v3255
    %v3453 = vunpack.c.l.b16 %v3256
    %v3454 = vunpack.c.h.b16 %v3256
    %v3455 = vunpack.c.l.b16 %v3257
    %v3456 = vunpack.c.h.b16 %v3257
    %v3457 = vunpack.c.l.b16 %v3258
    %v3458 = vunpack.c.h.b16 %v3258
    %v3459 = vunpack.c.l.b16 %v3259
    %v3460 = vunpack.c.h.b16 %v3259
    %v3461 = vunpack.c.l.b16 %v3260
    %v3462 = vunpack.c.h.b16 %v3260
    %v3463 = vunpack.c.l.b16 %v3261
    %v3464 = vunpack.c.h.b16 %v3261
    %v3465 = vunpack.c.l.b16 %v3262
    %v3466 = vunpack.c.h.b16 %v3262
    %v3467 = vpack.c.b16 %v3341, %v3339
    %v3468 = vpack.c.b16 %v3342, %v3340
    %v3469 = vpack.c.b16 %v3345, %v3343
    %v3470 = vpack.c.b16 %v3346, %v3344
    %v3471 = vpack.c.b16 %v3349, %v3347
    %v3472 = vpack.c.b16 %v3350, %v3348
    %v3473 = vpack.c.b16 %v3353, %v3351
    %v3474 = vpack.c.b16 %v3354, %v3352
    %v3475 = vpack.c.b16 %v3357, %v3355
    %v3476 = vpack.c.b16 %v3358, %v3356
    %v3477 = vpack.c.b16 %v3361, %v3359
    %v3478 = vpack.c.b16 %v3362, %v3360
    %v3479 = vpack.c.b16 %v3365, %v3363
    %v3480 = vpack.c.b16 %v3366, %v3364
    %v3481 = vpack.c.b16 %v3369, %v3367
    %v3482 = vpack.c.b16 %v3370, %v3368
    %v3483 = vpack.c.b16 %v3373, %v3371
    %v3484 = vpack.c.b16 %v3374, %v3372
    %v3485 = vpack.c.b16 %v3377, %v3375
    %v3486 = vpack.c.b16 %v3378, %v3376
    %v3487 = vpack.c.b16 %v3381, %v3379
    %v3488 = vpack.c.b16 %v3382, %v3380
    %v3489 = vpack.c.b16 %v3385, %v3383
    %v3490 = vpack.c.b16 %v3386, %v3384
    %v3491 = vpack.c.b16 %v3389, %v3387
    %v3492 = vpack.c.b16 %v3390, %v3388
    %v3493 = vpack.c.b16 %v3393, %v3391
    %v3494 = vpack.c.b16 %v3394, %v3392
    %v3495 = vpack.c.b16 %v3397, %v3395
    %v3496 = vpack.c.b16 %v3398, %v3396
    %v3497 = vpack.c.b16 %v3401, %v3399
    %v3498 = vpack.c.b16 %v3402, %v3400
    %v3499 = vpack.c.b16 %v3405, %v3403
    %v3500 = vpack.c.b16 %v3406, %v3404
    %v3501 = vpack.c.b16 %v3409, %v3407
    %v3502 = vpack.c.b16 %v3410, %v3408
    %v3503 = vpack.c.b16 %v3413, %v3411
    %v3504 = vpack.c.b16 %v3414, %v3412
    %v3505 = vpack.c.b16 %v3417, %v3415
    %v3506 = vpack.c.b16 %v3418, %v3416
    %v3507 = vpack.c.b16 %v3421, %v3419
    %v3508 = vpack.c.b16 %v3422, %v3420
    %v3509 = vpack.c.b16 %v3425, %v3423
    %v3510 = vpack.c.b16 %v3426, %v3424
    %v3511 = vpack.c.b16 %v3429, %v3427
    %v3512 = vpack.c.b16 %v3430, %v3428
    %v3513 = vpack.c.b16 %v3433, %v3431
    %v3514 = vpack.c.b16 %v3434, %v3432
    %v3515 = vpack.c.b16 %v3437, %v3435
    %v3516 = vpack.c.b16 %v3438, %v3436
    %v3517 = vpack.c.b16 %v3441, %v3439
    %v3518 = vpack.c.b16 %v3442, %v3440
    %v3519 = vpack.c.b16 %v3445, %v3443
    %v3520 = vpack.c.b16 %v3446, %v3444
    %v3521 = vpack.c.b16 %v3449, %v3447
    %v3522 = vpack.c.b16 %v3450, %v3448
    %v3523 = vpack.c.b16 %v3453, %v3451
    %v3524 = vpack.c.b16 %v3454, %v3452
    %v3525 = vpack.c.b16 %v3457, %v3455
    %v3526 = vpack.c.b16 %v3458, %v3456
    %v3527 = vpack.c.b16 %v3461, %v3459
    %v3528 = vpack.c.b16 %v3462, %v3460
    %v3529 = vpack.c.b16 %v3465, %v3463
    %v3530 = vpack.c.b16 %v3466, %v3464
    %3595 = vmatprep.subr.bf16.mxu0 %v3468
    %3596 = vmatpush1.bf16.msra.mxu0 %v3467
    %3597 = vmatprep.subr.bf16.mxu0 %v3470
    %3598 = vmatpush1.bf16.msra.mxu0 %v3469
    %3599 = vmatprep.subr.bf16.mxu0 %v3472
    %3600 = vmatpush1.bf16.msra.mxu0 %v3471
    %3601 = vmatprep.subr.bf16.mxu0 %v3474
    %3602 = vmatpush1.bf16.msra.mxu0 %v3473
    %3603 = vmatprep.subr.bf16.mxu0 %v3476
    %3604 = vmatpush1.bf16.msra.mxu0 %v3475
    %3605 = vmatprep.subr.bf16.mxu0 %v3478
    %3606 = vmatpush1.bf16.msra.mxu0 %v3477
    %3607 = vmatprep.subr.bf16.mxu0 %v3480
    %3608 = vmatpush1.bf16.msra.mxu0 %v3479
    %3609 = vmatprep.subr.bf16.mxu0 %v3482
    %3610 = vmatpush1.bf16.msra.mxu0 %v3481
    %3611 = vmatprep.subr.bf16.mxu0 %v3484
    %3612 = vmatpush1.bf16.msra.mxu0 %v3483
    %3613 = vmatprep.subr.bf16.mxu0 %v3486
    %3614 = vmatpush1.bf16.msra.mxu0 %v3485
    %3615 = vmatprep.subr.bf16.mxu0 %v3488
    %3616 = vmatpush1.bf16.msra.mxu0 %v3487
    %3617 = vmatprep.subr.bf16.mxu0 %v3490
    %3618 = vmatpush1.bf16.msra.mxu0 %v3489
    %3619 = vmatprep.subr.bf16.mxu0 %v3492
    %3620 = vmatpush1.bf16.msra.mxu0 %v3491
    %3621 = vmatprep.subr.bf16.mxu0 %v3494
    %3622 = vmatpush1.bf16.msra.mxu0 %v3493
    %3623 = vmatprep.subr.bf16.mxu0 %v3496
    %3624 = vmatpush1.bf16.msra.mxu0 %v3495
    %3625 = vmatprep.subr.bf16.mxu0 %v3498
    %3626 = vmatpush1.bf16.msra.mxu0 %v3497
    %3627 = vmatprep.mubr.bf16.mxu0 %v3196
    %3628 = vmatmul.mubr.bf16.gmra.mrb[0].mxu0 %v3195
    %v3629 = vpop.f32.mrb[0].mxu0
    %v3630 = vadd.f32 %v3268, %v3629
    %v3631 = vpop.f32.mrb[0].mxu0
    %v3632 = vadd.f32 %v3272, %v3631
    %v3633 = vpop.f32.mrb[0].mxu0
    %v3634 = vadd.f32 %v3268, %v3633
    %v3635 = vpop.f32.mrb[0].mxu0
    %v3636 = vadd.f32 %v3272, %v3635
    %3637 = vdwg.mxu0
    %3638 = vmatprep.subr.bf16.mxu0 %v3500
    %3639 = vmatpush1.bf16.msra.mxu0 %v3499
    %3640 = vmatprep.subr.bf16.mxu0 %v3502
    %3641 = vmatpush1.bf16.msra.mxu0 %v3501
    %3642 = vmatprep.subr.bf16.mxu0 %v3504
    %3643 = vmatpush1.bf16.msra.mxu0 %v3503
    %3644 = vmatprep.subr.bf16.mxu0 %v3506
    %3645 = vmatpush1.bf16.msra.mxu0 %v3505
    %3646 = vmatprep.subr.bf16.mxu0 %v3508
    %3647 = vmatpush1.bf16.msra.mxu0 %v3507
    %3648 = vmatprep.subr.bf16.mxu0 %v3510
    %3649 = vmatpush1.bf16.msra.mxu0 %v3509
    %3650 = vmatprep.subr.bf16.mxu0 %v3512
    %3651 = vmatpush1.bf16.msra.mxu0 %v3511
    %3652 = vmatprep.subr.bf16.mxu0 %v3514
    %3653 = vmatpush1.bf16.msra.mxu0 %v3513
    %3654 = vmatprep.subr.bf16.mxu0 %v3516
    %3655 = vmatpush1.bf16.msra.mxu0 %v3515
    %3656 = vmatprep.subr.bf16.mxu0 %v3518
    %3657 = vmatpush1.bf16.msra.mxu0 %v3517
    %3658 = vmatprep.subr.bf16.mxu0 %v3520
    %3659 = vmatpush1.bf16.msra.mxu0 %v3519
    %3660 = vmatprep.subr.bf16.mxu0 %v3522
    %3661 = vmatpush1.bf16.msra.mxu0 %v3521
    %3662 = vmatprep.subr.bf16.mxu0 %v3524
    %3663 = vmatpush1.bf16.msra.mxu0 %v3523
    %3664 = vmatprep.subr.bf16.mxu0 %v3526
    %3665 = vmatpush1.bf16.msra.mxu0 %v3525
    %3666 = vmatprep.subr.bf16.mxu0 %v3528
    %3667 = vmatpush1.bf16.msra.mxu0 %v3527
    %3668 = vmatprep.subr.bf16.mxu0 %v3530
    %3669 = vmatpush1.bf16.msra.mxu0 %v3529
    %3670 = vmatprep.mubr.bf16.mxu0 %v3198
    %3671 = vmatmul.mubr.bf16.gmra.mrb[0].mxu0 %v3197
    %v3672 = vpop.f32.mrb[0].mxu0
    %v3673 = vadd.f32 %v3630, %v3672
    %v3674 = vpop.f32.mrb[0].mxu0
    %v3675 = vadd.f32 %v3632, %v3674
    %v3676 = vpop.f32.mrb[0].mxu0
    %v3677 = vadd.f32 %v3634, %v3676
    %v3678 = vpop.f32.mrb[0].mxu0
    %v3679 = vadd.f32 %v3636, %v3678
    %3680 = vdwg.mxu0
    %v3681 = vmax.f32 %v3673, 0.0
    %v3682 = vmax.f32 %v3675, 0.0
    %v3683 = vmax.f32 %v3677, 0.0
    %v3684 = vmax.f32 %v3679, 0.0
    %v3685 = vpack.c.bf16 %v3683, %v3681
    %v3686 = vpack.c.bf16 %v3684, %v3682
    %v3687 = vld [vmem:[%s5] sm:$0xf]
    %v3688 = vld [vmem:[%s5 + $0x4] sm:$0xf]
    %v3689 = vld [vmem:[%s5 + $0x8] sm:$0xf]
    %v3690 = vld [vmem:[%s5 + $0xc] sm:$0xf]
    %v3691 = vld [vmem:[%s5 + $0x10] sm:$0xf]
    %v3692 = vld [vmem:[%s5 + $0x14] sm:$0xf]
    %v3693 = vld [vmem:[%s5 + $0x18] sm:$0xf]
    %v3694 = vld [vmem:[%s5 + $0x1c] sm:$0xf]
    %v3695 = vld [vmem:[%s5 + $0x20] sm:$0xf]
    %v3696 = vld [vmem:[%s5 + $0x24] sm:$0xf]
    %v3697 = vld [vmem:[%s5 + $0x28] sm:$0xf]
    %v3698 = vld [vmem:[%s5 + $0x2c] sm:$0xf]
    %v3699 = vld [vmem:[%s5 + $0x30] sm:$0xf]
    %v3700 = vld [vmem:[%s5 + $0x34] sm:$0xf]
    %v3701 = vld [vmem:[%s5 + $0x38] sm:$0xf]
    %v3702 = vld [vmem:[%s5 + $0x3c] sm:$0xf]
    %v3703 = vld [vmem:[%s5 + $0x40] sm:$0xf]
    %v3704 = vld [vmem:[%s5 + $0x44] sm:$0xf]
    %v3705 = vld [vmem:[%s5 + $0x48] sm:$0xf]
    %v3706 = vld [vmem:[%s5 + $0x4c] sm:$0xf]
    %v3707 = vld [vmem:[%s5 + $0x50] sm:$0xf]
    %v3708 = vld [vmem:[%s5 + $0x54] sm:$0xf]
    %v3709 = vld [vmem:[%s5 + $0x58] sm:$0xf]
    %v3710 = vld [vmem:[%s5 + $0x5c] sm:$0xf]
    %v3711 = vld [vmem:[%s5 + $0x60] sm:$0xf]
    %v3712 = vld [vmem:[%s5 + $0x64] sm:$0xf]
    %v3713 = vld [vmem:[%s5 + $0x68] sm:$0xf]
    %v3714 = vld [vmem:[%s5 + $0x6c] sm:$0xf]
    %v3715 = vld [vmem:[%s5 + $0x70] sm:$0xf]
    %v3716 = vld [vmem:[%s5 + $0x74] sm:$0xf]
    %v3717 = vld [vmem:[%s5 + $0x78] sm:$0xf]
    %v3718 = vld [vmem:[%s5 + $0x7c] sm:$0xf]
    %v3719 = vld [vmem:[#allocation9] sm:$0x1]
    %v3721 = vlaneseq
    %v3722 = vshrl.u32 %v3721, 7
    %v3723 = vsub.s32 0, %v3722
    %v3724 = vrot.slane %v3719, %v3723
    %v3758 = vunpack.c.l.b16 %v3687
    %v3759 = vunpack.c.l.b16 %v3688
    %v3760 = vunpack.c.l.b16 %v3689
    %v3761 = vunpack.c.l.b16 %v3690
    %v3762 = vunpack.c.l.b16 %v3691
    %v3763 = vunpack.c.l.b16 %v3692
    %v3764 = vunpack.c.l.b16 %v3693
    %v3765 = vunpack.c.l.b16 %v3694
    %v3766 = vunpack.c.l.b16 %v3695
    %v3767 = vunpack.c.l.b16 %v3696
    %v3768 = vunpack.c.l.b16 %v3697
    %v3769 = vunpack.c.l.b16 %v3698
    %v3770 = vunpack.c.l.b16 %v3699
    %v3771 = vunpack.c.l.b16 %v3700
    %v3772 = vunpack.c.l.b16 %v3701
    %v3773 = vunpack.c.l.b16 %v3702
    %v3774 = vunpack.c.l.b16 %v3703
    %v3775 = vunpack.c.l.b16 %v3704
    %v3776 = vunpack.c.l.b16 %v3705
    %v3777 = vunpack.c.l.b16 %v3706
    %v3778 = vunpack.c.l.b16 %v3707
    %v3779 = vunpack.c.l.b16 %v3708
    %v3780 = vunpack.c.l.b16 %v3709
    %v3781 = vunpack.c.l.b16 %v3710
    %v3782 = vunpack.c.l.b16 %v3711
    %v3783 = vunpack.c.l.b16 %v3712
    %v3784 = vunpack.c.l.b16 %v3713
    %v3785 = vunpack.c.l.b16 %v3714
    %v3786 = vunpack.c.l.b16 %v3715
    %v3787 = vunpack.c.l.b16 %v3716
    %v3788 = vunpack.c.l.b16 %v3717
    %v3789 = vunpack.c.l.b16 %v3718
    %v3790 = vpack.c.b16 %v3759, %v3758
    %v3791 = vpack.c.b16 %v3761, %v3760
    %v3792 = vpack.c.b16 %v3763, %v3762
    %v3793 = vpack.c.b16 %v3765, %v3764
    %v3794 = vpack.c.b16 %v3767, %v3766
    %v3795 = vpack.c.b16 %v3769, %v3768
    %v3796 = vpack.c.b16 %v3771, %v3770
    %v3797 = vpack.c.b16 %v3773, %v3772
    %v3798 = vpack.c.b16 %v3775, %v3774
    %v3799 = vpack.c.b16 %v3777, %v3776
    %v3800 = vpack.c.b16 %v3779, %v3778
    %v3801 = vpack.c.b16 %v3781, %v3780
    %v3802 = vpack.c.b16 %v3783, %v3782
    %v3803 = vpack.c.b16 %v3785, %v3784
    %v3804 = vpack.c.b16 %v3787, %v3786
    %v3805 = vpack.c.b16 %v3789, %v3788
    %3822 = vmatprep.subr.bf16.mxu0 0
    %3823 = vmatpush1.bf16.msra.mxu0 %v3790
    %3824 = vmatprep.subr.bf16.mxu0 0
    %3825 = vmatpush1.bf16.msra.mxu0 %v3791
    %3826 = vmatprep.subr.bf16.mxu0 0
    %3827 = vmatpush1.bf16.msra.mxu0 %v3792
    %3828 = vmatprep.subr.bf16.mxu0 0
    %3829 = vmatpush1.bf16.msra.mxu0 %v3793
    %3830 = vmatprep.subr.bf16.mxu0 0
    %3831 = vmatpush1.bf16.msra.mxu0 %v3794
    %3832 = vmatprep.subr.bf16.mxu0 0
    %3833 = vmatpush1.bf16.msra.mxu0 %v3795
    %3834 = vmatprep.subr.bf16.mxu0 0
    %3835 = vmatpush1.bf16.msra.mxu0 %v3796
    %3836 = vmatprep.subr.bf16.mxu0 0
    %3837 = vmatpush1.bf16.msra.mxu0 %v3797
    %3838 = vmatprep.subr.bf16.mxu0 0
    %3839 = vmatpush1.bf16.msra.mxu0 %v3798
    %3840 = vmatprep.subr.bf16.mxu0 0
    %3841 = vmatpush1.bf16.msra.mxu0 %v3799
    %3842 = vmatprep.subr.bf16.mxu0 0
    %3843 = vmatpush1.bf16.msra.mxu0 %v3800
    %3844 = vmatprep.subr.bf16.mxu0 0
    %3845 = vmatpush1.bf16.msra.mxu0 %v3801
    %3846 = vmatprep.subr.bf16.mxu0 0
    %3847 = vmatpush1.bf16.msra.mxu0 %v3802
    %3848 = vmatprep.subr.bf16.mxu0 0
    %3849 = vmatpush1.bf16.msra.mxu0 %v3803
    %3850 = vmatprep.subr.bf16.mxu0 0
    %3851 = vmatpush1.bf16.msra.mxu0 %v3804
    %3852 = vmatprep.subr.bf16.mxu0 0
    %3853 = vmatpush1.bf16.msra.mxu0 %v3805
    %3854 = vmatprep.mubr.bf16.mxu0 %v3686
    %3855 = vmatmul.mubr.bf16.gmra.mrb[0].mxu0 %v3685
    %v3856 = vpop.f32.mrb[0].mxu0
    %v3857 = vadd.f32 %v3724, %v3856
    %v3858 = vpop.f32.mrb[0].mxu0
    %v3859 = vpop.f32.mrb[0].mxu0
    %v3860 = vadd.f32 %v3724, %v3859
    %v3861 = vpop.f32.mrb[0].mxu0
    %3862 = vdwg.mxu0
    %v3863 = vmax.f32 %v3857, 0.0
    %v3864 = vmax.f32 %v3860, 0.0
    %v3865 = vpack.c.bf16 %v3864, %v3863
    %v3866 = vld [vmem:[#allocation10] sm:$0xf]
    %v3867 = vld [vmem:[#allocation10 + $0x4] sm:$0xf]
    %v3868 = vld [vmem:[#allocation10 + $0x8] sm:$0xf]
    %v3869 = vld [vmem:[#allocation10 + $0xc] sm:$0xf]
    %v3870 = vld [vmem:[#allocation10 + $0x10] sm:$0xf]
    %v3871 = vld [vmem:[#allocation10 + $0x14] sm:$0xf]
    %v3872 = vld [vmem:[#allocation10 + $0x18] sm:$0xf]
    %v3873 = vld [vmem:[#allocation10 + $0x1c] sm:$0xf]
    %v3874 = vld [vmem:[#allocation12] sm:$0x1]
    %v3876 = vlaneseq
    %v3877 = vshrl.u32 %v3876, 7
    %v3878 = vsub.s32 0, %v3877
    %v3879 = vrot.slane %v3874, %v3878
    %v3889 = vunpack.c.l.b16 %v3866
    %v3890 = vunpack.c.l.b16 %v3867
    %v3891 = vunpack.c.l.b16 %v3868
    %v3892 = vunpack.c.l.b16 %v3869
    %v3893 = vunpack.c.l.b16 %v3870
    %v3894 = vunpack.c.l.b16 %v3871
    %v3895 = vunpack.c.l.b16 %v3872
    %v3896 = vunpack.c.l.b16 %v3873
    %v3897 = vpack.c.b16 %v3890, %v3889
    %v3898 = vpack.c.b16 %v3892, %v3891
    %v3899 = vpack.c.b16 %v3894, %v3893
    %v3900 = vpack.c.b16 %v3896, %v3895
    %v3906 = vsel %vm2581, %v3865, 0
    %3908 = vmatprep.subr.bf16.mxu0 0
    %3909 = vmatpush1.bf16.msra.mxu0 %v3897
    %3910 = vmatprep.subr.bf16.mxu0 0
    %3911 = vmatpush1.bf16.msra.mxu0 %v3898
    %3912 = vmatprep.subr.bf16.mxu0 0
    %3913 = vmatpush1.bf16.msra.mxu0 %v3899
    %3914 = vmatprep.subr.bf16.mxu0 0
    %3915 = vmatpush1.bf16.msra.mxu0 %v3900
    %3916 = vmatprep.subr.bf16.mxu0 0
    %3917 = vmatpush1.bf16.msra.mxu0 0
    %3918 = vmatprep.subr.bf16.mxu0 0
    %3919 = vmatpush1.bf16.msra.mxu0 0
    %3920 = vmatprep.subr.bf16.mxu0 0
    %3921 = vmatpush1.bf16.msra.mxu0 0
    %3922 = vmatprep.subr.bf16.mxu0 0
    %3923 = vmatpush1.bf16.msra.mxu0 0
    %3924 = vmatprep.subr.bf16.mxu0 0
    %3925 = vmatpush1.bf16.msra.mxu0 0
    %3926 = vmatprep.subr.bf16.mxu0 0
    %3927 = vmatpush1.bf16.msra.mxu0 0
    %3928 = vmatprep.subr.bf16.mxu0 0
    %3929 = vmatpush1.bf16.msra.mxu0 0
    %3930 = vmatprep.subr.bf16.mxu0 0
    %3931 = vmatpush1.bf16.msra.mxu0 0
    %3932 = vmatprep.subr.bf16.mxu0 0
    %3933 = vmatpush1.bf16.msra.mxu0 0
    %3934 = vmatprep.subr.bf16.mxu0 0
    %3935 = vmatpush1.bf16.msra.mxu0 0
    %3936 = vmatprep.subr.bf16.mxu0 0
    %3937 = vmatpush1.bf16.msra.mxu0 0
    %3938 = vmatprep.subr.bf16.mxu0 0
    %3939 = vmatpush1.bf16.msra.mxu0 0
    %3940 = vmatprep.mubr.bf16.mxu0 0
    %3941 = vmatmul.mubr.bf16.gmra.mrb[0].mxu0 %v3906
    %v3942 = vpop.f32.mrb[0].mxu0
    %v3943 = vadd.f32 %v3879, %v3942
    %v3944 = vpop.f32.mrb[0].mxu0
    %v3945 = vpop.f32.mrb[0].mxu0
    %v3946 = vadd.f32 %v3879, %v3945
    %v3947 = vpop.f32.mrb[0].mxu0
    %3948 = vdwg.mxu0
    %3949 = vst [vmem:[%s9] sm:$0xff] %v3943
    %3950 = vst [vmem:[%s9 + $0x8] sm:$0xff] %v3946
    // Predicated region
    $region66: #{three_layer_fc_forward.1} parent=1 // pred_check
      _
    $region67: #{three_layer_fc_forward.1} parent=1 // pred_check_branch
      %3952 = sbr.rel (0) target = $region69
    $region68: #{three_layer_fc_forward.1} parent=1 // pred_region
      _
    $region69: #{three_layer_fc_forward.1} parent=1 // pred_fallthru
      _
    // Predicated region
    $region70: #{three_layer_fc_forward.1} parent=1 // pred_check
      _
    $region71: #{three_layer_fc_forward.1} parent=1 // pred_check_branch
      %3954 = sbr.rel (0) target = $region73
    $region72: #{three_layer_fc_forward.1} parent=1 // pred_region
      _
    $region73: #{three_layer_fc_forward.1} parent=1 // pred_fallthru
      _
    %3955 = vsyncpa [#allocation3], 1
    %3956 = vsyncpa [#allocation5], 1
    %3957 = vsyncpa [#allocation8], 1
    %3958 = vsyncpa [#allocation11], 1

</llo_original>
